<compile_context>
chip_gen: v7x
topology: tpu7x:2x2x1
jax: 0.10.0
libtpu: 0.0.40
codegen_flags: <defaults>
</compile_context>

<pallas_src>
import jax
import jax.numpy as jnp
from jax.experimental import pallas as pl
from jax.experimental.pallas import tpu as pltpu


def fused_net_kernel(x_ref, w1_ref, b1_ref, w2_ref, b2_ref, w34_ref, b34_ref,
                     out_ref):
    """One batch tile: x_ref (tile_b, 784) f32 -> out_ref (tile_b, 10) f32."""
    acc = jnp.zeros(out_ref.shape, jnp.float32)
    w1 = w1_ref[...]          # (28, 128)   bf16, resident
    w2 = w2_ref[...]          # (128, 64)   bf16, resident
    b1 = b1_ref[...]          # (1, 128)    f32
    b2 = b2_ref[...]          # (1, 64)     f32
    for r in range(28):       # one image row per (unrolled) iteration
        xr = x_ref[:, r * 28:(r + 1) * 28].astype(jnp.bfloat16)   # (tile_b, 28)
        h1 = jnp.dot(xr, w1, preferred_element_type=jnp.float32) + b1
        h1 = jnp.maximum(h1, 0.0).astype(jnp.bfloat16)            # ReLU
        h2 = jnp.dot(h1, w2, preferred_element_type=jnp.float32) + b2
        h2 = jnp.tanh(h2).astype(jnp.bfloat16)                    # Tanh
        # folded layer3 + flatten + layer4 contribution of image-row r
        acc = acc + jnp.dot(h2, w34_ref[r], preferred_element_type=jnp.float32)
    logits = acc + b34_ref[...]                                   # (tile_b, 10)
    # log_softmax over classes (dim=1), numerically stable
    m = jnp.max(logits, axis=1, keepdims=True)
    s = logits - m
    lse = jnp.log(jnp.sum(jnp.exp(s), axis=1, keepdims=True))
    out_ref[...] = s - lse


def _fold_tail(w3, b3, w4, b4):
    """Fold layer3 + torch.flatten + layer4 into (W34, b34). Exact (all linear).

    W34[r, k, c] = sum_j w3[k, j] * w4[r*10 + j, c]      (28, 64, 10)
    b34[c]       = sum_{r,j} b3[j] * w4[r*10 + j, c] + b4[c]
    """
    w4r = w4.reshape(28, 10, 10)                        # [r, j, c] = w4[r*10+j, c]
    w34 = jnp.einsum("kj,rjc->rkc", w3, w4r)            # (28, 64, 10)
    b34 = jnp.einsum("j,rjc->c", b3[0], w4r) + b4[0]    # (10,)
    return w34, b34[None, :]


def net_forward(x, params, tile_b=128):
    w1, b1, w2, b2, w3, b3, w4, b4 = params
    B = x.shape[0]
    x2 = x.reshape(B, 28 * 28).astype(jnp.float32)      # free row-major reshape

    w34, b34 = _fold_tail(w3, b3, w4, b4)
    w1b, w2b, w34b = (w1.astype(jnp.bfloat16), w2.astype(jnp.bfloat16),
                      w34.astype(jnp.bfloat16))

    # Batch tiling in whole images, sublane-aligned.
    if B < tile_b:
        tile_b = max(8, ((B + 7) // 8) * 8)
    grid_b = pl.cdiv(B, tile_b)
    b_pad = grid_b * tile_b
    if b_pad != B:
        x2 = jnp.pad(x2, ((0, b_pad - B), (0, 0)))

    out = pl.pallas_call(
        fused_net_kernel,
        out_shape=jax.ShapeDtypeStruct((b_pad, 10), jnp.float32),
        grid=(grid_b,),
        in_specs=[
            pl.BlockSpec((tile_b, 28 * 28), lambda i: (i, 0)),   # x (streamed)
            pl.BlockSpec((28, 128), lambda i: (0, 0)),           # w1 (resident)
            pl.BlockSpec((1, 128), lambda i: (0, 0)),            # b1
            pl.BlockSpec((128, 64), lambda i: (0, 0)),           # w2
            pl.BlockSpec((1, 64), lambda i: (0, 0)),             # b2
            pl.BlockSpec((28, 64, 10), lambda i: (0, 0, 0)),     # folded W34
            pl.BlockSpec((1, 10), lambda i: (0, 0)),             # folded b34
        ],
        out_specs=pl.BlockSpec((tile_b, 10), lambda i: (i, 0)),
        compiler_params=pltpu.CompilerParams(
            dimension_semantics=("parallel",),       # v7x: shard batch over 2 TCs
            vmem_limit_bytes=32 * 1024 * 1024,       # safe on v7x's 64 MiB VMEM
        ),
    )(x2, w1b, b1, w2b, b2, w34b, b34)
    return out[:B]


def init_params(key):
    # Deterministic init mirroring nn.Linear's default U(-1/sqrt(fan_in), +1/sqrt(fan_in)).
    def linear(k, fan_in, fan_out):
        kw, kb = jax.random.split(k)
        bound = float(fan_in) ** -0.5
        w = jax.random.uniform(kw, (fan_in, fan_out), jnp.float32, -bound, bound)
        b = jax.random.uniform(kb, (1, fan_out), jnp.float32, -bound, bound)
        return w, b

    k1, k2, k3, k4 = jax.random.split(key, 4)
    w1, b1 = linear(k1, 28, 128)
    w2, b2 = linear(k2, 128, 64)
    w3, b3 = linear(k3, 64, 10)
    w4, b4 = linear(k4, 280, 10)
    return (w1, b1, w2, b2, w3, b3, w4, b4)


def net_forward_ref(x, params):
    # Pure-JAX f32 reference (matches the PyTorch forward exactly).
    w1, b1, w2, b2, w3, b3, w4, b4 = params
    h = jnp.maximum(x @ w1 + b1, 0.0)
    h = jnp.tanh(h @ w2 + b2)
    h = h @ w3 + b3                       # (B, 28, 10)
    h = h.reshape(x.shape[0], 280)        # flatten(2) then flatten(1)
    logits = h @ w4 + b4
    return jax.nn.log_softmax(logits, axis=1)


if __name__ == "__main__":
    key = jax.random.PRNGKey(0)
    kx, kp = jax.random.split(key)

    B = 2
    x = jax.random.normal(kx, (B, 28, 28), dtype=jnp.float32)
    params = init_params(kp)

    out = jax.block_until_ready(net_forward(x, params))
    ref = jax.block_until_ready(net_forward_ref(x, params))

    assert out.shape == (B, 10)
    # bf16 matmul operands with f32 accumulation -> loose-ish tolerance vs f32 ref.
    assert jnp.max(jnp.abs(out - ref)) < 5e-2, "mismatch vs reference"

    print("KERNEL_OK")
</pallas_src>

<mosaic_0001>
module attributes {stable_mosaic.version = 11 : i64} {
  func.func @fused_net_kernel(%arg0: i32, %arg1: memref<8x784xf32, #tpu.memory_space<vmem>>, %arg2: memref<28x128xbf16, #tpu.memory_space<vmem>>, %arg3: memref<1x128xf32, #tpu.memory_space<vmem>>, %arg4: memref<128x64xbf16, #tpu.memory_space<vmem>>, %arg5: memref<1x64xf32, #tpu.memory_space<vmem>>, %arg6: memref<28x64x10xbf16, #tpu.memory_space<vmem>>, %arg7: memref<1x10xf32, #tpu.memory_space<vmem>>, %arg8: memref<8x10xf32, #tpu.memory_space<vmem>>) attributes {dimension_semantics = [#tpu.dimension_semantics<parallel>], iteration_bounds = array<i64: 1>, scalar_prefetch = 0 : i64, scratch_operands = 0 : i64, tpu.core_type = #tpu.core_type<tc>, window_params = [{transform_indices = @transform_0, window_bounds = array<i64: 8, 784>}, {pipeline_mode = #tpu.pipeline_mode<synchronous>, transform_indices = @transform_1, window_bounds = array<i64: 28, 128>}, {pipeline_mode = #tpu.pipeline_mode<synchronous>, transform_indices = @transform_2, window_bounds = array<i64: 1, 128>}, {pipeline_mode = #tpu.pipeline_mode<synchronous>, transform_indices = @transform_3, window_bounds = array<i64: 128, 64>}, {pipeline_mode = #tpu.pipeline_mode<synchronous>, transform_indices = @transform_4, window_bounds = array<i64: 1, 64>}, {pipeline_mode = #tpu.pipeline_mode<synchronous>, transform_indices = @transform_5, window_bounds = array<i64: 28, 64, 10>}, {pipeline_mode = #tpu.pipeline_mode<synchronous>, transform_indices = @transform_6, window_bounds = array<i64: 1, 10>}, {transform_indices = @transform_7, window_bounds = array<i64: 8, 10>}]} {
    %cst = arith.constant 0.000000e+00 : f32
    %0 = vector.broadcast %cst : f32 to vector<8x10xf32>
    %c0 = arith.constant 0 : index
    %c0_0 = arith.constant 0 : index
    %1 = vector.load %arg2[%c0, %c0_0] : memref<28x128xbf16, #tpu.memory_space<vmem>>, vector<28x128xbf16>
    %c0_1 = arith.constant 0 : index
    %c0_2 = arith.constant 0 : index
    %2 = vector.load %arg4[%c0_1, %c0_2] : memref<128x64xbf16, #tpu.memory_space<vmem>>, vector<128x64xbf16>
    %c0_3 = arith.constant 0 : index
    %c0_4 = arith.constant 0 : index
    %3 = vector.load %arg3[%c0_3, %c0_4] : memref<1x128xf32, #tpu.memory_space<vmem>>, vector<1x128xf32>
    %c0_5 = arith.constant 0 : index
    %c0_6 = arith.constant 0 : index
    %4 = vector.load %arg5[%c0_5, %c0_6] : memref<1x64xf32, #tpu.memory_space<vmem>>, vector<1x64xf32>
    %c0_7 = arith.constant 0 : index
    %c0_8 = arith.constant 0 : index
    %5 = vector.load %arg1[%c0_7, %c0_8] : memref<8x784xf32, #tpu.memory_space<vmem>>, vector<8x28xf32>
    %6 = arith.truncf %5 : vector<8x28xf32> to vector<8x28xbf16>
    %cst_9 = arith.constant dense<0.000000e+00> : vector<8x128xf32>
    %7 = tpu.matmul %6, %1, %cst_9 {dimension_numbers = #tpu.dot_dimension_numbers<[1], [0], [0], [1], [0, 0, 1, 1], [], []>} : vector<8x28xbf16>, vector<28x128xbf16>, vector<8x128xf32> -> vector<8x128xf32>
    %8 = vector.broadcast %3 : vector<1x128xf32> to vector<8x128xf32>
    %9 = arith.addf %7, %8 : vector<8x128xf32>
    %cst_10 = arith.constant 0.000000e+00 : f32
    %10 = vector.broadcast %cst_10 : f32 to vector<8x128xf32>
    %11 = arith.maximumf %9, %10 : vector<8x128xf32>
    %12 = arith.truncf %11 : vector<8x128xf32> to vector<8x128xbf16>
    %cst_11 = arith.constant dense<0.000000e+00> : vector<8x64xf32>
    %13 = tpu.matmul %12, %2, %cst_11 {dimension_numbers = #tpu.dot_dimension_numbers<[1], [0], [0], [1], [0, 0, 1, 1], [], []>} : vector<8x128xbf16>, vector<128x64xbf16>, vector<8x64xf32> -> vector<8x64xf32>
    %14 = vector.broadcast %4 : vector<1x64xf32> to vector<8x64xf32>
    %15 = arith.addf %13, %14 : vector<8x64xf32>
    %16 = math.tanh %15 : vector<8x64xf32>
    %17 = arith.truncf %16 : vector<8x64xf32> to vector<8x64xbf16>
    %c0_12 = arith.constant 0 : index
    %c0_13 = arith.constant 0 : index
    %c0_14 = arith.constant 0 : index
    %18 = vector.load %arg6[%c0_12, %c0_13, %c0_14] : memref<28x64x10xbf16, #tpu.memory_space<vmem>>, vector<1x64x10xbf16>
    %19 = vector.shape_cast %18 : vector<1x64x10xbf16> to vector<64x10xbf16>
    %cst_15 = arith.constant dense<0.000000e+00> : vector<8x10xf32>
    %20 = tpu.matmul %17, %19, %cst_15 {dimension_numbers = #tpu.dot_dimension_numbers<[1], [0], [0], [1], [0, 0, 1, 1], [], []>} : vector<8x64xbf16>, vector<64x10xbf16>, vector<8x10xf32> -> vector<8x10xf32>
    %21 = arith.addf %0, %20 : vector<8x10xf32>
    %c0_16 = arith.constant 0 : index
    %c28 = arith.constant 28 : index
    %22 = vector.load %arg1[%c0_16, %c28] : memref<8x784xf32, #tpu.memory_space<vmem>>, vector<8x28xf32>
    %23 = arith.truncf %22 : vector<8x28xf32> to vector<8x28xbf16>
    %cst_17 = arith.constant dense<0.000000e+00> : vector<8x128xf32>
    %24 = tpu.matmul %23, %1, %cst_17 {dimension_numbers = #tpu.dot_dimension_numbers<[1], [0], [0], [1], [0, 0, 1, 1], [], []>} : vector<8x28xbf16>, vector<28x128xbf16>, vector<8x128xf32> -> vector<8x128xf32>
    %25 = vector.broadcast %3 : vector<1x128xf32> to vector<8x128xf32>
    %26 = arith.addf %24, %25 : vector<8x128xf32>
    %cst_18 = arith.constant 0.000000e+00 : f32
    %27 = vector.broadcast %cst_18 : f32 to vector<8x128xf32>
    %28 = arith.maximumf %26, %27 : vector<8x128xf32>
    %29 = arith.truncf %28 : vector<8x128xf32> to vector<8x128xbf16>
    %cst_19 = arith.constant dense<0.000000e+00> : vector<8x64xf32>
    %30 = tpu.matmul %29, %2, %cst_19 {dimension_numbers = #tpu.dot_dimension_numbers<[1], [0], [0], [1], [0, 0, 1, 1], [], []>} : vector<8x128xbf16>, vector<128x64xbf16>, vector<8x64xf32> -> vector<8x64xf32>
    %31 = vector.broadcast %4 : vector<1x64xf32> to vector<8x64xf32>
    %32 = arith.addf %30, %31 : vector<8x64xf32>
    %33 = math.tanh %32 : vector<8x64xf32>
    %34 = arith.truncf %33 : vector<8x64xf32> to vector<8x64xbf16>
    %c1 = arith.constant 1 : index
    %c0_20 = arith.constant 0 : index
    %c0_21 = arith.constant 0 : index
    %35 = vector.load %arg6[%c1, %c0_20, %c0_21] : memref<28x64x10xbf16, #tpu.memory_space<vmem>>, vector<1x64x10xbf16>
    %36 = vector.shape_cast %35 : vector<1x64x10xbf16> to vector<64x10xbf16>
    %cst_22 = arith.constant dense<0.000000e+00> : vector<8x10xf32>
    %37 = tpu.matmul %34, %36, %cst_22 {dimension_numbers = #tpu.dot_dimension_numbers<[1], [0], [0], [1], [0, 0, 1, 1], [], []>} : vector<8x64xbf16>, vector<64x10xbf16>, vector<8x10xf32> -> vector<8x10xf32>
    %38 = arith.addf %21, %37 : vector<8x10xf32>
    %c0_23 = arith.constant 0 : index
    %c56 = arith.constant 56 : index
    %39 = vector.load %arg1[%c0_23, %c56] : memref<8x784xf32, #tpu.memory_space<vmem>>, vector<8x28xf32>
    %40 = arith.truncf %39 : vector<8x28xf32> to vector<8x28xbf16>
    %cst_24 = arith.constant dense<0.000000e+00> : vector<8x128xf32>
    %41 = tpu.matmul %40, %1, %cst_24 {dimension_numbers = #tpu.dot_dimension_numbers<[1], [0], [0], [1], [0, 0, 1, 1], [], []>} : vector<8x28xbf16>, vector<28x128xbf16>, vector<8x128xf32> -> vector<8x128xf32>
    %42 = vector.broadcast %3 : vector<1x128xf32> to vector<8x128xf32>
    %43 = arith.addf %41, %42 : vector<8x128xf32>
    %cst_25 = arith.constant 0.000000e+00 : f32
    %44 = vector.broadcast %cst_25 : f32 to vector<8x128xf32>
    %45 = arith.maximumf %43, %44 : vector<8x128xf32>
    %46 = arith.truncf %45 : vector<8x128xf32> to vector<8x128xbf16>
    %cst_26 = arith.constant dense<0.000000e+00> : vector<8x64xf32>
    %47 = tpu.matmul %46, %2, %cst_26 {dimension_numbers = #tpu.dot_dimension_numbers<[1], [0], [0], [1], [0, 0, 1, 1], [], []>} : vector<8x128xbf16>, vector<128x64xbf16>, vector<8x64xf32> -> vector<8x64xf32>
    %48 = vector.broadcast %4 : vector<1x64xf32> to vector<8x64xf32>
    %49 = arith.addf %47, %48 : vector<8x64xf32>
    %50 = math.tanh %49 : vector<8x64xf32>
    %51 = arith.truncf %50 : vector<8x64xf32> to vector<8x64xbf16>
    %c2 = arith.constant 2 : index
    %c0_27 = arith.constant 0 : index
    %c0_28 = arith.constant 0 : index
    %52 = vector.load %arg6[%c2, %c0_27, %c0_28] : memref<28x64x10xbf16, #tpu.memory_space<vmem>>, vector<1x64x10xbf16>
    %53 = vector.shape_cast %52 : vector<1x64x10xbf16> to vector<64x10xbf16>
    %cst_29 = arith.constant dense<0.000000e+00> : vector<8x10xf32>
    %54 = tpu.matmul %51, %53, %cst_29 {dimension_numbers = #tpu.dot_dimension_numbers<[1], [0], [0], [1], [0, 0, 1, 1], [], []>} : vector<8x64xbf16>, vector<64x10xbf16>, vector<8x10xf32> -> vector<8x10xf32>
    %55 = arith.addf %38, %54 : vector<8x10xf32>
    %c0_30 = arith.constant 0 : index
    %c84 = arith.constant 84 : index
    %56 = vector.load %arg1[%c0_30, %c84] : memref<8x784xf32, #tpu.memory_space<vmem>>, vector<8x28xf32>
    %57 = arith.truncf %56 : vector<8x28xf32> to vector<8x28xbf16>
    %cst_31 = arith.constant dense<0.000000e+00> : vector<8x128xf32>
    %58 = tpu.matmul %57, %1, %cst_31 {dimension_numbers = #tpu.dot_dimension_numbers<[1], [0], [0], [1], [0, 0, 1, 1], [], []>} : vector<8x28xbf16>, vector<28x128xbf16>, vector<8x128xf32> -> vector<8x128xf32>
    %59 = vector.broadcast %3 : vector<1x128xf32> to vector<8x128xf32>
    %60 = arith.addf %58, %59 : vector<8x128xf32>
    %cst_32 = arith.constant 0.000000e+00 : f32
    %61 = vector.broadcast %cst_32 : f32 to vector<8x128xf32>
    %62 = arith.maximumf %60, %61 : vector<8x128xf32>
    %63 = arith.truncf %62 : vector<8x128xf32> to vector<8x128xbf16>
    %cst_33 = arith.constant dense<0.000000e+00> : vector<8x64xf32>
    %64 = tpu.matmul %63, %2, %cst_33 {dimension_numbers = #tpu.dot_dimension_numbers<[1], [0], [0], [1], [0, 0, 1, 1], [], []>} : vector<8x128xbf16>, vector<128x64xbf16>, vector<8x64xf32> -> vector<8x64xf32>
    %65 = vector.broadcast %4 : vector<1x64xf32> to vector<8x64xf32>
    %66 = arith.addf %64, %65 : vector<8x64xf32>
    %67 = math.tanh %66 : vector<8x64xf32>
    %68 = arith.truncf %67 : vector<8x64xf32> to vector<8x64xbf16>
    %c3 = arith.constant 3 : index
    %c0_34 = arith.constant 0 : index
    %c0_35 = arith.constant 0 : index
    %69 = vector.load %arg6[%c3, %c0_34, %c0_35] : memref<28x64x10xbf16, #tpu.memory_space<vmem>>, vector<1x64x10xbf16>
    %70 = vector.shape_cast %69 : vector<1x64x10xbf16> to vector<64x10xbf16>
    %cst_36 = arith.constant dense<0.000000e+00> : vector<8x10xf32>
    %71 = tpu.matmul %68, %70, %cst_36 {dimension_numbers = #tpu.dot_dimension_numbers<[1], [0], [0], [1], [0, 0, 1, 1], [], []>} : vector<8x64xbf16>, vector<64x10xbf16>, vector<8x10xf32> -> vector<8x10xf32>
    %72 = arith.addf %55, %71 : vector<8x10xf32>
    %c0_37 = arith.constant 0 : index
    %c112 = arith.constant 112 : index
    %73 = vector.load %arg1[%c0_37, %c112] : memref<8x784xf32, #tpu.memory_space<vmem>>, vector<8x28xf32>
    %74 = arith.truncf %73 : vector<8x28xf32> to vector<8x28xbf16>
    %cst_38 = arith.constant dense<0.000000e+00> : vector<8x128xf32>
    %75 = tpu.matmul %74, %1, %cst_38 {dimension_numbers = #tpu.dot_dimension_numbers<[1], [0], [0], [1], [0, 0, 1, 1], [], []>} : vector<8x28xbf16>, vector<28x128xbf16>, vector<8x128xf32> -> vector<8x128xf32>
    %76 = vector.broadcast %3 : vector<1x128xf32> to vector<8x128xf32>
    %77 = arith.addf %75, %76 : vector<8x128xf32>
    %cst_39 = arith.constant 0.000000e+00 : f32
    %78 = vector.broadcast %cst_39 : f32 to vector<8x128xf32>
    %79 = arith.maximumf %77, %78 : vector<8x128xf32>
    %80 = arith.truncf %79 : vector<8x128xf32> to vector<8x128xbf16>
    %cst_40 = arith.constant dense<0.000000e+00> : vector<8x64xf32>
    %81 = tpu.matmul %80, %2, %cst_40 {dimension_numbers = #tpu.dot_dimension_numbers<[1], [0], [0], [1], [0, 0, 1, 1], [], []>} : vector<8x128xbf16>, vector<128x64xbf16>, vector<8x64xf32> -> vector<8x64xf32>
    %82 = vector.broadcast %4 : vector<1x64xf32> to vector<8x64xf32>
    %83 = arith.addf %81, %82 : vector<8x64xf32>
    %84 = math.tanh %83 : vector<8x64xf32>
    %85 = arith.truncf %84 : vector<8x64xf32> to vector<8x64xbf16>
    %c4 = arith.constant 4 : index
    %c0_41 = arith.constant 0 : index
    %c0_42 = arith.constant 0 : index
    %86 = vector.load %arg6[%c4, %c0_41, %c0_42] : memref<28x64x10xbf16, #tpu.memory_space<vmem>>, vector<1x64x10xbf16>
    %87 = vector.shape_cast %86 : vector<1x64x10xbf16> to vector<64x10xbf16>
    %cst_43 = arith.constant dense<0.000000e+00> : vector<8x10xf32>
    %88 = tpu.matmul %85, %87, %cst_43 {dimension_numbers = #tpu.dot_dimension_numbers<[1], [0], [0], [1], [0, 0, 1, 1], [], []>} : vector<8x64xbf16>, vector<64x10xbf16>, vector<8x10xf32> -> vector<8x10xf32>
    %89 = arith.addf %72, %88 : vector<8x10xf32>
    %c0_44 = arith.constant 0 : index
    %c140 = arith.constant 140 : index
    %90 = vector.load %arg1[%c0_44, %c140] : memref<8x784xf32, #tpu.memory_space<vmem>>, vector<8x28xf32>
    %91 = arith.truncf %90 : vector<8x28xf32> to vector<8x28xbf16>
    %cst_45 = arith.constant dense<0.000000e+00> : vector<8x128xf32>
    %92 = tpu.matmul %91, %1, %cst_45 {dimension_numbers = #tpu.dot_dimension_numbers<[1], [0], [0], [1], [0, 0, 1, 1], [], []>} : vector<8x28xbf16>, vector<28x128xbf16>, vector<8x128xf32> -> vector<8x128xf32>
    %93 = vector.broadcast %3 : vector<1x128xf32> to vector<8x128xf32>
    %94 = arith.addf %92, %93 : vector<8x128xf32>
    %cst_46 = arith.constant 0.000000e+00 : f32
    %95 = vector.broadcast %cst_46 : f32 to vector<8x128xf32>
    %96 = arith.maximumf %94, %95 : vector<8x128xf32>
    %97 = arith.truncf %96 : vector<8x128xf32> to vector<8x128xbf16>
    %cst_47 = arith.constant dense<0.000000e+00> : vector<8x64xf32>
    %98 = tpu.matmul %97, %2, %cst_47 {dimension_numbers = #tpu.dot_dimension_numbers<[1], [0], [0], [1], [0, 0, 1, 1], [], []>} : vector<8x128xbf16>, vector<128x64xbf16>, vector<8x64xf32> -> vector<8x64xf32>
    %99 = vector.broadcast %4 : vector<1x64xf32> to vector<8x64xf32>
    %100 = arith.addf %98, %99 : vector<8x64xf32>
    %101 = math.tanh %100 : vector<8x64xf32>
    %102 = arith.truncf %101 : vector<8x64xf32> to vector<8x64xbf16>
    %c5 = arith.constant 5 : index
    %c0_48 = arith.constant 0 : index
    %c0_49 = arith.constant 0 : index
    %103 = vector.load %arg6[%c5, %c0_48, %c0_49] : memref<28x64x10xbf16, #tpu.memory_space<vmem>>, vector<1x64x10xbf16>
    %104 = vector.shape_cast %103 : vector<1x64x10xbf16> to vector<64x10xbf16>
    %cst_50 = arith.constant dense<0.000000e+00> : vector<8x10xf32>
    %105 = tpu.matmul %102, %104, %cst_50 {dimension_numbers = #tpu.dot_dimension_numbers<[1], [0], [0], [1], [0, 0, 1, 1], [], []>} : vector<8x64xbf16>, vector<64x10xbf16>, vector<8x10xf32> -> vector<8x10xf32>
    %106 = arith.addf %89, %105 : vector<8x10xf32>
    %c0_51 = arith.constant 0 : index
    %c168 = arith.constant 168 : index
    %107 = vector.load %arg1[%c0_51, %c168] : memref<8x784xf32, #tpu.memory_space<vmem>>, vector<8x28xf32>
    %108 = arith.truncf %107 : vector<8x28xf32> to vector<8x28xbf16>
    %cst_52 = arith.constant dense<0.000000e+00> : vector<8x128xf32>
    %109 = tpu.matmul %108, %1, %cst_52 {dimension_numbers = #tpu.dot_dimension_numbers<[1], [0], [0], [1], [0, 0, 1, 1], [], []>} : vector<8x28xbf16>, vector<28x128xbf16>, vector<8x128xf32> -> vector<8x128xf32>
    %110 = vector.broadcast %3 : vector<1x128xf32> to vector<8x128xf32>
    %111 = arith.addf %109, %110 : vector<8x128xf32>
    %cst_53 = arith.constant 0.000000e+00 : f32
    %112 = vector.broadcast %cst_53 : f32 to vector<8x128xf32>
    %113 = arith.maximumf %111, %112 : vector<8x128xf32>
    %114 = arith.truncf %113 : vector<8x128xf32> to vector<8x128xbf16>
    %cst_54 = arith.constant dense<0.000000e+00> : vector<8x64xf32>
    %115 = tpu.matmul %114, %2, %cst_54 {dimension_numbers = #tpu.dot_dimension_numbers<[1], [0], [0], [1], [0, 0, 1, 1], [], []>} : vector<8x128xbf16>, vector<128x64xbf16>, vector<8x64xf32> -> vector<8x64xf32>
    %116 = vector.broadcast %4 : vector<1x64xf32> to vector<8x64xf32>
    %117 = arith.addf %115, %116 : vector<8x64xf32>
    %118 = math.tanh %117 : vector<8x64xf32>
    %119 = arith.truncf %118 : vector<8x64xf32> to vector<8x64xbf16>
    %c6 = arith.constant 6 : index
    %c0_55 = arith.constant 0 : index
    %c0_56 = arith.constant 0 : index
    %120 = vector.load %arg6[%c6, %c0_55, %c0_56] : memref<28x64x10xbf16, #tpu.memory_space<vmem>>, vector<1x64x10xbf16>
    %121 = vector.shape_cast %120 : vector<1x64x10xbf16> to vector<64x10xbf16>
    %cst_57 = arith.constant dense<0.000000e+00> : vector<8x10xf32>
    %122 = tpu.matmul %119, %121, %cst_57 {dimension_numbers = #tpu.dot_dimension_numbers<[1], [0], [0], [1], [0, 0, 1, 1], [], []>} : vector<8x64xbf16>, vector<64x10xbf16>, vector<8x10xf32> -> vector<8x10xf32>
    %123 = arith.addf %106, %122 : vector<8x10xf32>
    %c0_58 = arith.constant 0 : index
    %c196 = arith.constant 196 : index
    %124 = vector.load %arg1[%c0_58, %c196] : memref<8x784xf32, #tpu.memory_space<vmem>>, vector<8x28xf32>
    %125 = arith.truncf %124 : vector<8x28xf32> to vector<8x28xbf16>
    %cst_59 = arith.constant dense<0.000000e+00> : vector<8x128xf32>
    %126 = tpu.matmul %125, %1, %cst_59 {dimension_numbers = #tpu.dot_dimension_numbers<[1], [0], [0], [1], [0, 0, 1, 1], [], []>} : vector<8x28xbf16>, vector<28x128xbf16>, vector<8x128xf32> -> vector<8x128xf32>
    %127 = vector.broadcast %3 : vector<1x128xf32> to vector<8x128xf32>
    %128 = arith.addf %126, %127 : vector<8x128xf32>
    %cst_60 = arith.constant 0.000000e+00 : f32
    %129 = vector.broadcast %cst_60 : f32 to vector<8x128xf32>
    %130 = arith.maximumf %128, %129 : vector<8x128xf32>
    %131 = arith.truncf %130 : vector<8x128xf32> to vector<8x128xbf16>
    %cst_61 = arith.constant dense<0.000000e+00> : vector<8x64xf32>
    %132 = tpu.matmul %131, %2, %cst_61 {dimension_numbers = #tpu.dot_dimension_numbers<[1], [0], [0], [1], [0, 0, 1, 1], [], []>} : vector<8x128xbf16>, vector<128x64xbf16>, vector<8x64xf32> -> vector<8x64xf32>
    %133 = vector.broadcast %4 : vector<1x64xf32> to vector<8x64xf32>
    %134 = arith.addf %132, %133 : vector<8x64xf32>
    %135 = math.tanh %134 : vector<8x64xf32>
    %136 = arith.truncf %135 : vector<8x64xf32> to vector<8x64xbf16>
    %c7 = arith.constant 7 : index
    %c0_62 = arith.constant 0 : index
    %c0_63 = arith.constant 0 : index
    %137 = vector.load %arg6[%c7, %c0_62, %c0_63] : memref<28x64x10xbf16, #tpu.memory_space<vmem>>, vector<1x64x10xbf16>
    %138 = vector.shape_cast %137 : vector<1x64x10xbf16> to vector<64x10xbf16>
    %cst_64 = arith.constant dense<0.000000e+00> : vector<8x10xf32>
    %139 = tpu.matmul %136, %138, %cst_64 {dimension_numbers = #tpu.dot_dimension_numbers<[1], [0], [0], [1], [0, 0, 1, 1], [], []>} : vector<8x64xbf16>, vector<64x10xbf16>, vector<8x10xf32> -> vector<8x10xf32>
    %140 = arith.addf %123, %139 : vector<8x10xf32>
    %c0_65 = arith.constant 0 : index
    %c224 = arith.constant 224 : index
    %141 = vector.load %arg1[%c0_65, %c224] : memref<8x784xf32, #tpu.memory_space<vmem>>, vector<8x28xf32>
    %142 = arith.truncf %141 : vector<8x28xf32> to vector<8x28xbf16>
    %cst_66 = arith.constant dense<0.000000e+00> : vector<8x128xf32>
    %143 = tpu.matmul %142, %1, %cst_66 {dimension_numbers = #tpu.dot_dimension_numbers<[1], [0], [0], [1], [0, 0, 1, 1], [], []>} : vector<8x28xbf16>, vector<28x128xbf16>, vector<8x128xf32> -> vector<8x128xf32>
    %144 = vector.broadcast %3 : vector<1x128xf32> to vector<8x128xf32>
    %145 = arith.addf %143, %144 : vector<8x128xf32>
    %cst_67 = arith.constant 0.000000e+00 : f32
    %146 = vector.broadcast %cst_67 : f32 to vector<8x128xf32>
    %147 = arith.maximumf %145, %146 : vector<8x128xf32>
    %148 = arith.truncf %147 : vector<8x128xf32> to vector<8x128xbf16>
    %cst_68 = arith.constant dense<0.000000e+00> : vector<8x64xf32>
    %149 = tpu.matmul %148, %2, %cst_68 {dimension_numbers = #tpu.dot_dimension_numbers<[1], [0], [0], [1], [0, 0, 1, 1], [], []>} : vector<8x128xbf16>, vector<128x64xbf16>, vector<8x64xf32> -> vector<8x64xf32>
    %150 = vector.broadcast %4 : vector<1x64xf32> to vector<8x64xf32>
    %151 = arith.addf %149, %150 : vector<8x64xf32>
    %152 = math.tanh %151 : vector<8x64xf32>
    %153 = arith.truncf %152 : vector<8x64xf32> to vector<8x64xbf16>
    %c8 = arith.constant 8 : index
    %c0_69 = arith.constant 0 : index
    %c0_70 = arith.constant 0 : index
    %154 = vector.load %arg6[%c8, %c0_69, %c0_70] : memref<28x64x10xbf16, #tpu.memory_space<vmem>>, vector<1x64x10xbf16>
    %155 = vector.shape_cast %154 : vector<1x64x10xbf16> to vector<64x10xbf16>
    %cst_71 = arith.constant dense<0.000000e+00> : vector<8x10xf32>
    %156 = tpu.matmul %153, %155, %cst_71 {dimension_numbers = #tpu.dot_dimension_numbers<[1], [0], [0], [1], [0, 0, 1, 1], [], []>} : vector<8x64xbf16>, vector<64x10xbf16>, vector<8x10xf32> -> vector<8x10xf32>
    %157 = arith.addf %140, %156 : vector<8x10xf32>
    %c0_72 = arith.constant 0 : index
    %c252 = arith.constant 252 : index
    %158 = vector.load %arg1[%c0_72, %c252] : memref<8x784xf32, #tpu.memory_space<vmem>>, vector<8x28xf32>
    %159 = arith.truncf %158 : vector<8x28xf32> to vector<8x28xbf16>
    %cst_73 = arith.constant dense<0.000000e+00> : vector<8x128xf32>
    %160 = tpu.matmul %159, %1, %cst_73 {dimension_numbers = #tpu.dot_dimension_numbers<[1], [0], [0], [1], [0, 0, 1, 1], [], []>} : vector<8x28xbf16>, vector<28x128xbf16>, vector<8x128xf32> -> vector<8x128xf32>
    %161 = vector.broadcast %3 : vector<1x128xf32> to vector<8x128xf32>
    %162 = arith.addf %160, %161 : vector<8x128xf32>
    %cst_74 = arith.constant 0.000000e+00 : f32
    %163 = vector.broadcast %cst_74 : f32 to vector<8x128xf32>
    %164 = arith.maximumf %162, %163 : vector<8x128xf32>
    %165 = arith.truncf %164 : vector<8x128xf32> to vector<8x128xbf16>
    %cst_75 = arith.constant dense<0.000000e+00> : vector<8x64xf32>
    %166 = tpu.matmul %165, %2, %cst_75 {dimension_numbers = #tpu.dot_dimension_numbers<[1], [0], [0], [1], [0, 0, 1, 1], [], []>} : vector<8x128xbf16>, vector<128x64xbf16>, vector<8x64xf32> -> vector<8x64xf32>
    %167 = vector.broadcast %4 : vector<1x64xf32> to vector<8x64xf32>
    %168 = arith.addf %166, %167 : vector<8x64xf32>
    %169 = math.tanh %168 : vector<8x64xf32>
    %170 = arith.truncf %169 : vector<8x64xf32> to vector<8x64xbf16>
    %c9 = arith.constant 9 : index
    %c0_76 = arith.constant 0 : index
    %c0_77 = arith.constant 0 : index
    %171 = vector.load %arg6[%c9, %c0_76, %c0_77] : memref<28x64x10xbf16, #tpu.memory_space<vmem>>, vector<1x64x10xbf16>
    %172 = vector.shape_cast %171 : vector<1x64x10xbf16> to vector<64x10xbf16>
    %cst_78 = arith.constant dense<0.000000e+00> : vector<8x10xf32>
    %173 = tpu.matmul %170, %172, %cst_78 {dimension_numbers = #tpu.dot_dimension_numbers<[1], [0], [0], [1], [0, 0, 1, 1], [], []>} : vector<8x64xbf16>, vector<64x10xbf16>, vector<8x10xf32> -> vector<8x10xf32>
    %174 = arith.addf %157, %173 : vector<8x10xf32>
    %c0_79 = arith.constant 0 : index
    %c280 = arith.constant 280 : index
    %175 = vector.load %arg1[%c0_79, %c280] : memref<8x784xf32, #tpu.memory_space<vmem>>, vector<8x28xf32>
    %176 = arith.truncf %175 : vector<8x28xf32> to vector<8x28xbf16>
    %cst_80 = arith.constant dense<0.000000e+00> : vector<8x128xf32>
    %177 = tpu.matmul %176, %1, %cst_80 {dimension_numbers = #tpu.dot_dimension_numbers<[1], [0], [0], [1], [0, 0, 1, 1], [], []>} : vector<8x28xbf16>, vector<28x128xbf16>, vector<8x128xf32> -> vector<8x128xf32>
    %178 = vector.broadcast %3 : vector<1x128xf32> to vector<8x128xf32>
    %179 = arith.addf %177, %178 : vector<8x128xf32>
    %cst_81 = arith.constant 0.000000e+00 : f32
    %180 = vector.broadcast %cst_81 : f32 to vector<8x128xf32>
    %181 = arith.maximumf %179, %180 : vector<8x128xf32>
    %182 = arith.truncf %181 : vector<8x128xf32> to vector<8x128xbf16>
    %cst_82 = arith.constant dense<0.000000e+00> : vector<8x64xf32>
    %183 = tpu.matmul %182, %2, %cst_82 {dimension_numbers = #tpu.dot_dimension_numbers<[1], [0], [0], [1], [0, 0, 1, 1], [], []>} : vector<8x128xbf16>, vector<128x64xbf16>, vector<8x64xf32> -> vector<8x64xf32>
    %184 = vector.broadcast %4 : vector<1x64xf32> to vector<8x64xf32>
    %185 = arith.addf %183, %184 : vector<8x64xf32>
    %186 = math.tanh %185 : vector<8x64xf32>
    %187 = arith.truncf %186 : vector<8x64xf32> to vector<8x64xbf16>
    %c10 = arith.constant 10 : index
    %c0_83 = arith.constant 0 : index
    %c0_84 = arith.constant 0 : index
    %188 = vector.load %arg6[%c10, %c0_83, %c0_84] : memref<28x64x10xbf16, #tpu.memory_space<vmem>>, vector<1x64x10xbf16>
    %189 = vector.shape_cast %188 : vector<1x64x10xbf16> to vector<64x10xbf16>
    %cst_85 = arith.constant dense<0.000000e+00> : vector<8x10xf32>
    %190 = tpu.matmul %187, %189, %cst_85 {dimension_numbers = #tpu.dot_dimension_numbers<[1], [0], [0], [1], [0, 0, 1, 1], [], []>} : vector<8x64xbf16>, vector<64x10xbf16>, vector<8x10xf32> -> vector<8x10xf32>
    %191 = arith.addf %174, %190 : vector<8x10xf32>
    %c0_86 = arith.constant 0 : index
    %c308 = arith.constant 308 : index
    %192 = vector.load %arg1[%c0_86, %c308] : memref<8x784xf32, #tpu.memory_space<vmem>>, vector<8x28xf32>
    %193 = arith.truncf %192 : vector<8x28xf32> to vector<8x28xbf16>
    %cst_87 = arith.constant dense<0.000000e+00> : vector<8x128xf32>
    %194 = tpu.matmul %193, %1, %cst_87 {dimension_numbers = #tpu.dot_dimension_numbers<[1], [0], [0], [1], [0, 0, 1, 1], [], []>} : vector<8x28xbf16>, vector<28x128xbf16>, vector<8x128xf32> -> vector<8x128xf32>
    %195 = vector.broadcast %3 : vector<1x128xf32> to vector<8x128xf32>
    %196 = arith.addf %194, %195 : vector<8x128xf32>
    %cst_88 = arith.constant 0.000000e+00 : f32
    %197 = vector.broadcast %cst_88 : f32 to vector<8x128xf32>
    %198 = arith.maximumf %196, %197 : vector<8x128xf32>
    %199 = arith.truncf %198 : vector<8x128xf32> to vector<8x128xbf16>
    %cst_89 = arith.constant dense<0.000000e+00> : vector<8x64xf32>
    %200 = tpu.matmul %199, %2, %cst_89 {dimension_numbers = #tpu.dot_dimension_numbers<[1], [0], [0], [1], [0, 0, 1, 1], [], []>} : vector<8x128xbf16>, vector<128x64xbf16>, vector<8x64xf32> -> vector<8x64xf32>
    %201 = vector.broadcast %4 : vector<1x64xf32> to vector<8x64xf32>
    %202 = arith.addf %200, %201 : vector<8x64xf32>
    %203 = math.tanh %202 : vector<8x64xf32>
    %204 = arith.truncf %203 : vector<8x64xf32> to vector<8x64xbf16>
    %c11 = arith.constant 11 : index
    %c0_90 = arith.constant 0 : index
    %c0_91 = arith.constant 0 : index
    %205 = vector.load %arg6[%c11, %c0_90, %c0_91] : memref<28x64x10xbf16, #tpu.memory_space<vmem>>, vector<1x64x10xbf16>
    %206 = vector.shape_cast %205 : vector<1x64x10xbf16> to vector<64x10xbf16>
    %cst_92 = arith.constant dense<0.000000e+00> : vector<8x10xf32>
    %207 = tpu.matmul %204, %206, %cst_92 {dimension_numbers = #tpu.dot_dimension_numbers<[1], [0], [0], [1], [0, 0, 1, 1], [], []>} : vector<8x64xbf16>, vector<64x10xbf16>, vector<8x10xf32> -> vector<8x10xf32>
    %208 = arith.addf %191, %207 : vector<8x10xf32>
    %c0_93 = arith.constant 0 : index
    %c336 = arith.constant 336 : index
    %209 = vector.load %arg1[%c0_93, %c336] : memref<8x784xf32, #tpu.memory_space<vmem>>, vector<8x28xf32>
    %210 = arith.truncf %209 : vector<8x28xf32> to vector<8x28xbf16>
    %cst_94 = arith.constant dense<0.000000e+00> : vector<8x128xf32>
    %211 = tpu.matmul %210, %1, %cst_94 {dimension_numbers = #tpu.dot_dimension_numbers<[1], [0], [0], [1], [0, 0, 1, 1], [], []>} : vector<8x28xbf16>, vector<28x128xbf16>, vector<8x128xf32> -> vector<8x128xf32>
    %212 = vector.broadcast %3 : vector<1x128xf32> to vector<8x128xf32>
    %213 = arith.addf %211, %212 : vector<8x128xf32>
    %cst_95 = arith.constant 0.000000e+00 : f32
    %214 = vector.broadcast %cst_95 : f32 to vector<8x128xf32>
    %215 = arith.maximumf %213, %214 : vector<8x128xf32>
    %216 = arith.truncf %215 : vector<8x128xf32> to vector<8x128xbf16>
    %cst_96 = arith.constant dense<0.000000e+00> : vector<8x64xf32>
    %217 = tpu.matmul %216, %2, %cst_96 {dimension_numbers = #tpu.dot_dimension_numbers<[1], [0], [0], [1], [0, 0, 1, 1], [], []>} : vector<8x128xbf16>, vector<128x64xbf16>, vector<8x64xf32> -> vector<8x64xf32>
    %218 = vector.broadcast %4 : vector<1x64xf32> to vector<8x64xf32>
    %219 = arith.addf %217, %218 : vector<8x64xf32>
    %220 = math.tanh %219 : vector<8x64xf32>
    %221 = arith.truncf %220 : vector<8x64xf32> to vector<8x64xbf16>
    %c12 = arith.constant 12 : index
    %c0_97 = arith.constant 0 : index
    %c0_98 = arith.constant 0 : index
    %222 = vector.load %arg6[%c12, %c0_97, %c0_98] : memref<28x64x10xbf16, #tpu.memory_space<vmem>>, vector<1x64x10xbf16>
    %223 = vector.shape_cast %222 : vector<1x64x10xbf16> to vector<64x10xbf16>
    %cst_99 = arith.constant dense<0.000000e+00> : vector<8x10xf32>
    %224 = tpu.matmul %221, %223, %cst_99 {dimension_numbers = #tpu.dot_dimension_numbers<[1], [0], [0], [1], [0, 0, 1, 1], [], []>} : vector<8x64xbf16>, vector<64x10xbf16>, vector<8x10xf32> -> vector<8x10xf32>
    %225 = arith.addf %208, %224 : vector<8x10xf32>
    %c0_100 = arith.constant 0 : index
    %c364 = arith.constant 364 : index
    %226 = vector.load %arg1[%c0_100, %c364] : memref<8x784xf32, #tpu.memory_space<vmem>>, vector<8x28xf32>
    %227 = arith.truncf %226 : vector<8x28xf32> to vector<8x28xbf16>
    %cst_101 = arith.constant dense<0.000000e+00> : vector<8x128xf32>
    %228 = tpu.matmul %227, %1, %cst_101 {dimension_numbers = #tpu.dot_dimension_numbers<[1], [0], [0], [1], [0, 0, 1, 1], [], []>} : vector<8x28xbf16>, vector<28x128xbf16>, vector<8x128xf32> -> vector<8x128xf32>
    %229 = vector.broadcast %3 : vector<1x128xf32> to vector<8x128xf32>
    %230 = arith.addf %228, %229 : vector<8x128xf32>
    %cst_102 = arith.constant 0.000000e+00 : f32
    %231 = vector.broadcast %cst_102 : f32 to vector<8x128xf32>
    %232 = arith.maximumf %230, %231 : vector<8x128xf32>
    %233 = arith.truncf %232 : vector<8x128xf32> to vector<8x128xbf16>
    %cst_103 = arith.constant dense<0.000000e+00> : vector<8x64xf32>
    %234 = tpu.matmul %233, %2, %cst_103 {dimension_numbers = #tpu.dot_dimension_numbers<[1], [0], [0], [1], [0, 0, 1, 1], [], []>} : vector<8x128xbf16>, vector<128x64xbf16>, vector<8x64xf32> -> vector<8x64xf32>
    %235 = vector.broadcast %4 : vector<1x64xf32> to vector<8x64xf32>
    %236 = arith.addf %234, %235 : vector<8x64xf32>
    %237 = math.tanh %236 : vector<8x64xf32>
    %238 = arith.truncf %237 : vector<8x64xf32> to vector<8x64xbf16>
    %c13 = arith.constant 13 : index
    %c0_104 = arith.constant 0 : index
    %c0_105 = arith.constant 0 : index
    %239 = vector.load %arg6[%c13, %c0_104, %c0_105] : memref<28x64x10xbf16, #tpu.memory_space<vmem>>, vector<1x64x10xbf16>
    %240 = vector.shape_cast %239 : vector<1x64x10xbf16> to vector<64x10xbf16>
    %cst_106 = arith.constant dense<0.000000e+00> : vector<8x10xf32>
    %241 = tpu.matmul %238, %240, %cst_106 {dimension_numbers = #tpu.dot_dimension_numbers<[1], [0], [0], [1], [0, 0, 1, 1], [], []>} : vector<8x64xbf16>, vector<64x10xbf16>, vector<8x10xf32> -> vector<8x10xf32>
    %242 = arith.addf %225, %241 : vector<8x10xf32>
    %c0_107 = arith.constant 0 : index
    %c392 = arith.constant 392 : index
    %243 = vector.load %arg1[%c0_107, %c392] : memref<8x784xf32, #tpu.memory_space<vmem>>, vector<8x28xf32>
    %244 = arith.truncf %243 : vector<8x28xf32> to vector<8x28xbf16>
    %cst_108 = arith.constant dense<0.000000e+00> : vector<8x128xf32>
    %245 = tpu.matmul %244, %1, %cst_108 {dimension_numbers = #tpu.dot_dimension_numbers<[1], [0], [0], [1], [0, 0, 1, 1], [], []>} : vector<8x28xbf16>, vector<28x128xbf16>, vector<8x128xf32> -> vector<8x128xf32>
    %246 = vector.broadcast %3 : vector<1x128xf32> to vector<8x128xf32>
    %247 = arith.addf %245, %246 : vector<8x128xf32>
    %cst_109 = arith.constant 0.000000e+00 : f32
    %248 = vector.broadcast %cst_109 : f32 to vector<8x128xf32>
    %249 = arith.maximumf %247, %248 : vector<8x128xf32>
    %250 = arith.truncf %249 : vector<8x128xf32> to vector<8x128xbf16>
    %cst_110 = arith.constant dense<0.000000e+00> : vector<8x64xf32>
    %251 = tpu.matmul %250, %2, %cst_110 {dimension_numbers = #tpu.dot_dimension_numbers<[1], [0], [0], [1], [0, 0, 1, 1], [], []>} : vector<8x128xbf16>, vector<128x64xbf16>, vector<8x64xf32> -> vector<8x64xf32>
    %252 = vector.broadcast %4 : vector<1x64xf32> to vector<8x64xf32>
    %253 = arith.addf %251, %252 : vector<8x64xf32>
    %254 = math.tanh %253 : vector<8x64xf32>
    %255 = arith.truncf %254 : vector<8x64xf32> to vector<8x64xbf16>
    %c14 = arith.constant 14 : index
    %c0_111 = arith.constant 0 : index
    %c0_112 = arith.constant 0 : index
    %256 = vector.load %arg6[%c14, %c0_111, %c0_112] : memref<28x64x10xbf16, #tpu.memory_space<vmem>>, vector<1x64x10xbf16>
    %257 = vector.shape_cast %256 : vector<1x64x10xbf16> to vector<64x10xbf16>
    %cst_113 = arith.constant dense<0.000000e+00> : vector<8x10xf32>
    %258 = tpu.matmul %255, %257, %cst_113 {dimension_numbers = #tpu.dot_dimension_numbers<[1], [0], [0], [1], [0, 0, 1, 1], [], []>} : vector<8x64xbf16>, vector<64x10xbf16>, vector<8x10xf32> -> vector<8x10xf32>
    %259 = arith.addf %242, %258 : vector<8x10xf32>
    %c0_114 = arith.constant 0 : index
    %c420 = arith.constant 420 : index
    %260 = vector.load %arg1[%c0_114, %c420] : memref<8x784xf32, #tpu.memory_space<vmem>>, vector<8x28xf32>
    %261 = arith.truncf %260 : vector<8x28xf32> to vector<8x28xbf16>
    %cst_115 = arith.constant dense<0.000000e+00> : vector<8x128xf32>
    %262 = tpu.matmul %261, %1, %cst_115 {dimension_numbers = #tpu.dot_dimension_numbers<[1], [0], [0], [1], [0, 0, 1, 1], [], []>} : vector<8x28xbf16>, vector<28x128xbf16>, vector<8x128xf32> -> vector<8x128xf32>
    %263 = vector.broadcast %3 : vector<1x128xf32> to vector<8x128xf32>
    %264 = arith.addf %262, %263 : vector<8x128xf32>
    %cst_116 = arith.constant 0.000000e+00 : f32
    %265 = vector.broadcast %cst_116 : f32 to vector<8x128xf32>
    %266 = arith.maximumf %264, %265 : vector<8x128xf32>
    %267 = arith.truncf %266 : vector<8x128xf32> to vector<8x128xbf16>
    %cst_117 = arith.constant dense<0.000000e+00> : vector<8x64xf32>
    %268 = tpu.matmul %267, %2, %cst_117 {dimension_numbers = #tpu.dot_dimension_numbers<[1], [0], [0], [1], [0, 0, 1, 1], [], []>} : vector<8x128xbf16>, vector<128x64xbf16>, vector<8x64xf32> -> vector<8x64xf32>
    %269 = vector.broadcast %4 : vector<1x64xf32> to vector<8x64xf32>
    %270 = arith.addf %268, %269 : vector<8x64xf32>
    %271 = math.tanh %270 : vector<8x64xf32>
    %272 = arith.truncf %271 : vector<8x64xf32> to vector<8x64xbf16>
    %c15 = arith.constant 15 : index
    %c0_118 = arith.constant 0 : index
    %c0_119 = arith.constant 0 : index
    %273 = vector.load %arg6[%c15, %c0_118, %c0_119] : memref<28x64x10xbf16, #tpu.memory_space<vmem>>, vector<1x64x10xbf16>
    %274 = vector.shape_cast %273 : vector<1x64x10xbf16> to vector<64x10xbf16>
    %cst_120 = arith.constant dense<0.000000e+00> : vector<8x10xf32>
    %275 = tpu.matmul %272, %274, %cst_120 {dimension_numbers = #tpu.dot_dimension_numbers<[1], [0], [0], [1], [0, 0, 1, 1], [], []>} : vector<8x64xbf16>, vector<64x10xbf16>, vector<8x10xf32> -> vector<8x10xf32>
    %276 = arith.addf %259, %275 : vector<8x10xf32>
    %c0_121 = arith.constant 0 : index
    %c448 = arith.constant 448 : index
    %277 = vector.load %arg1[%c0_121, %c448] : memref<8x784xf32, #tpu.memory_space<vmem>>, vector<8x28xf32>
    %278 = arith.truncf %277 : vector<8x28xf32> to vector<8x28xbf16>
    %cst_122 = arith.constant dense<0.000000e+00> : vector<8x128xf32>
    %279 = tpu.matmul %278, %1, %cst_122 {dimension_numbers = #tpu.dot_dimension_numbers<[1], [0], [0], [1], [0, 0, 1, 1], [], []>} : vector<8x28xbf16>, vector<28x128xbf16>, vector<8x128xf32> -> vector<8x128xf32>
    %280 = vector.broadcast %3 : vector<1x128xf32> to vector<8x128xf32>
    %281 = arith.addf %279, %280 : vector<8x128xf32>
    %cst_123 = arith.constant 0.000000e+00 : f32
    %282 = vector.broadcast %cst_123 : f32 to vector<8x128xf32>
    %283 = arith.maximumf %281, %282 : vector<8x128xf32>
    %284 = arith.truncf %283 : vector<8x128xf32> to vector<8x128xbf16>
    %cst_124 = arith.constant dense<0.000000e+00> : vector<8x64xf32>
    %285 = tpu.matmul %284, %2, %cst_124 {dimension_numbers = #tpu.dot_dimension_numbers<[1], [0], [0], [1], [0, 0, 1, 1], [], []>} : vector<8x128xbf16>, vector<128x64xbf16>, vector<8x64xf32> -> vector<8x64xf32>
    %286 = vector.broadcast %4 : vector<1x64xf32> to vector<8x64xf32>
    %287 = arith.addf %285, %286 : vector<8x64xf32>
    %288 = math.tanh %287 : vector<8x64xf32>
    %289 = arith.truncf %288 : vector<8x64xf32> to vector<8x64xbf16>
    %c16 = arith.constant 16 : index
    %c0_125 = arith.constant 0 : index
    %c0_126 = arith.constant 0 : index
    %290 = vector.load %arg6[%c16, %c0_125, %c0_126] : memref<28x64x10xbf16, #tpu.memory_space<vmem>>, vector<1x64x10xbf16>
    %291 = vector.shape_cast %290 : vector<1x64x10xbf16> to vector<64x10xbf16>
    %cst_127 = arith.constant dense<0.000000e+00> : vector<8x10xf32>
    %292 = tpu.matmul %289, %291, %cst_127 {dimension_numbers = #tpu.dot_dimension_numbers<[1], [0], [0], [1], [0, 0, 1, 1], [], []>} : vector<8x64xbf16>, vector<64x10xbf16>, vector<8x10xf32> -> vector<8x10xf32>
    %293 = arith.addf %276, %292 : vector<8x10xf32>
    %c0_128 = arith.constant 0 : index
    %c476 = arith.constant 476 : index
    %294 = vector.load %arg1[%c0_128, %c476] : memref<8x784xf32, #tpu.memory_space<vmem>>, vector<8x28xf32>
    %295 = arith.truncf %294 : vector<8x28xf32> to vector<8x28xbf16>
    %cst_129 = arith.constant dense<0.000000e+00> : vector<8x128xf32>
    %296 = tpu.matmul %295, %1, %cst_129 {dimension_numbers = #tpu.dot_dimension_numbers<[1], [0], [0], [1], [0, 0, 1, 1], [], []>} : vector<8x28xbf16>, vector<28x128xbf16>, vector<8x128xf32> -> vector<8x128xf32>
    %297 = vector.broadcast %3 : vector<1x128xf32> to vector<8x128xf32>
    %298 = arith.addf %296, %297 : vector<8x128xf32>
    %cst_130 = arith.constant 0.000000e+00 : f32
    %299 = vector.broadcast %cst_130 : f32 to vector<8x128xf32>
    %300 = arith.maximumf %298, %299 : vector<8x128xf32>
    %301 = arith.truncf %300 : vector<8x128xf32> to vector<8x128xbf16>
    %cst_131 = arith.constant dense<0.000000e+00> : vector<8x64xf32>
    %302 = tpu.matmul %301, %2, %cst_131 {dimension_numbers = #tpu.dot_dimension_numbers<[1], [0], [0], [1], [0, 0, 1, 1], [], []>} : vector<8x128xbf16>, vector<128x64xbf16>, vector<8x64xf32> -> vector<8x64xf32>
    %303 = vector.broadcast %4 : vector<1x64xf32> to vector<8x64xf32>
    %304 = arith.addf %302, %303 : vector<8x64xf32>
    %305 = math.tanh %304 : vector<8x64xf32>
    %306 = arith.truncf %305 : vector<8x64xf32> to vector<8x64xbf16>
    %c17 = arith.constant 17 : index
    %c0_132 = arith.constant 0 : index
    %c0_133 = arith.constant 0 : index
    %307 = vector.load %arg6[%c17, %c0_132, %c0_133] : memref<28x64x10xbf16, #tpu.memory_space<vmem>>, vector<1x64x10xbf16>
    %308 = vector.shape_cast %307 : vector<1x64x10xbf16> to vector<64x10xbf16>
    %cst_134 = arith.constant dense<0.000000e+00> : vector<8x10xf32>
    %309 = tpu.matmul %306, %308, %cst_134 {dimension_numbers = #tpu.dot_dimension_numbers<[1], [0], [0], [1], [0, 0, 1, 1], [], []>} : vector<8x64xbf16>, vector<64x10xbf16>, vector<8x10xf32> -> vector<8x10xf32>
    %310 = arith.addf %293, %309 : vector<8x10xf32>
    %c0_135 = arith.constant 0 : index
    %c504 = arith.constant 504 : index
    %311 = vector.load %arg1[%c0_135, %c504] : memref<8x784xf32, #tpu.memory_space<vmem>>, vector<8x28xf32>
    %312 = arith.truncf %311 : vector<8x28xf32> to vector<8x28xbf16>
    %cst_136 = arith.constant dense<0.000000e+00> : vector<8x128xf32>
    %313 = tpu.matmul %312, %1, %cst_136 {dimension_numbers = #tpu.dot_dimension_numbers<[1], [0], [0], [1], [0, 0, 1, 1], [], []>} : vector<8x28xbf16>, vector<28x128xbf16>, vector<8x128xf32> -> vector<8x128xf32>
    %314 = vector.broadcast %3 : vector<1x128xf32> to vector<8x128xf32>
    %315 = arith.addf %313, %314 : vector<8x128xf32>
    %cst_137 = arith.constant 0.000000e+00 : f32
    %316 = vector.broadcast %cst_137 : f32 to vector<8x128xf32>
    %317 = arith.maximumf %315, %316 : vector<8x128xf32>
    %318 = arith.truncf %317 : vector<8x128xf32> to vector<8x128xbf16>
    %cst_138 = arith.constant dense<0.000000e+00> : vector<8x64xf32>
    %319 = tpu.matmul %318, %2, %cst_138 {dimension_numbers = #tpu.dot_dimension_numbers<[1], [0], [0], [1], [0, 0, 1, 1], [], []>} : vector<8x128xbf16>, vector<128x64xbf16>, vector<8x64xf32> -> vector<8x64xf32>
    %320 = vector.broadcast %4 : vector<1x64xf32> to vector<8x64xf32>
    %321 = arith.addf %319, %320 : vector<8x64xf32>
    %322 = math.tanh %321 : vector<8x64xf32>
    %323 = arith.truncf %322 : vector<8x64xf32> to vector<8x64xbf16>
    %c18 = arith.constant 18 : index
    %c0_139 = arith.constant 0 : index
    %c0_140 = arith.constant 0 : index
    %324 = vector.load %arg6[%c18, %c0_139, %c0_140] : memref<28x64x10xbf16, #tpu.memory_space<vmem>>, vector<1x64x10xbf16>
    %325 = vector.shape_cast %324 : vector<1x64x10xbf16> to vector<64x10xbf16>
    %cst_141 = arith.constant dense<0.000000e+00> : vector<8x10xf32>
    %326 = tpu.matmul %323, %325, %cst_141 {dimension_numbers = #tpu.dot_dimension_numbers<[1], [0], [0], [1], [0, 0, 1, 1], [], []>} : vector<8x64xbf16>, vector<64x10xbf16>, vector<8x10xf32> -> vector<8x10xf32>
    %327 = arith.addf %310, %326 : vector<8x10xf32>
    %c0_142 = arith.constant 0 : index
    %c532 = arith.constant 532 : index
    %328 = vector.load %arg1[%c0_142, %c532] : memref<8x784xf32, #tpu.memory_space<vmem>>, vector<8x28xf32>
    %329 = arith.truncf %328 : vector<8x28xf32> to vector<8x28xbf16>
    %cst_143 = arith.constant dense<0.000000e+00> : vector<8x128xf32>
    %330 = tpu.matmul %329, %1, %cst_143 {dimension_numbers = #tpu.dot_dimension_numbers<[1], [0], [0], [1], [0, 0, 1, 1], [], []>} : vector<8x28xbf16>, vector<28x128xbf16>, vector<8x128xf32> -> vector<8x128xf32>
    %331 = vector.broadcast %3 : vector<1x128xf32> to vector<8x128xf32>
    %332 = arith.addf %330, %331 : vector<8x128xf32>
    %cst_144 = arith.constant 0.000000e+00 : f32
    %333 = vector.broadcast %cst_144 : f32 to vector<8x128xf32>
    %334 = arith.maximumf %332, %333 : vector<8x128xf32>
    %335 = arith.truncf %334 : vector<8x128xf32> to vector<8x128xbf16>
    %cst_145 = arith.constant dense<0.000000e+00> : vector<8x64xf32>
    %336 = tpu.matmul %335, %2, %cst_145 {dimension_numbers = #tpu.dot_dimension_numbers<[1], [0], [0], [1], [0, 0, 1, 1], [], []>} : vector<8x128xbf16>, vector<128x64xbf16>, vector<8x64xf32> -> vector<8x64xf32>
    %337 = vector.broadcast %4 : vector<1x64xf32> to vector<8x64xf32>
    %338 = arith.addf %336, %337 : vector<8x64xf32>
    %339 = math.tanh %338 : vector<8x64xf32>
    %340 = arith.truncf %339 : vector<8x64xf32> to vector<8x64xbf16>
    %c19 = arith.constant 19 : index
    %c0_146 = arith.constant 0 : index
    %c0_147 = arith.constant 0 : index
    %341 = vector.load %arg6[%c19, %c0_146, %c0_147] : memref<28x64x10xbf16, #tpu.memory_space<vmem>>, vector<1x64x10xbf16>
    %342 = vector.shape_cast %341 : vector<1x64x10xbf16> to vector<64x10xbf16>
    %cst_148 = arith.constant dense<0.000000e+00> : vector<8x10xf32>
    %343 = tpu.matmul %340, %342, %cst_148 {dimension_numbers = #tpu.dot_dimension_numbers<[1], [0], [0], [1], [0, 0, 1, 1], [], []>} : vector<8x64xbf16>, vector<64x10xbf16>, vector<8x10xf32> -> vector<8x10xf32>
    %344 = arith.addf %327, %343 : vector<8x10xf32>
    %c0_149 = arith.constant 0 : index
    %c560 = arith.constant 560 : index
    %345 = vector.load %arg1[%c0_149, %c560] : memref<8x784xf32, #tpu.memory_space<vmem>>, vector<8x28xf32>
    %346 = arith.truncf %345 : vector<8x28xf32> to vector<8x28xbf16>
    %cst_150 = arith.constant dense<0.000000e+00> : vector<8x128xf32>
    %347 = tpu.matmul %346, %1, %cst_150 {dimension_numbers = #tpu.dot_dimension_numbers<[1], [0], [0], [1], [0, 0, 1, 1], [], []>} : vector<8x28xbf16>, vector<28x128xbf16>, vector<8x128xf32> -> vector<8x128xf32>
    %348 = vector.broadcast %3 : vector<1x128xf32> to vector<8x128xf32>
    %349 = arith.addf %347, %348 : vector<8x128xf32>
    %cst_151 = arith.constant 0.000000e+00 : f32
    %350 = vector.broadcast %cst_151 : f32 to vector<8x128xf32>
    %351 = arith.maximumf %349, %350 : vector<8x128xf32>
    %352 = arith.truncf %351 : vector<8x128xf32> to vector<8x128xbf16>
    %cst_152 = arith.constant dense<0.000000e+00> : vector<8x64xf32>
    %353 = tpu.matmul %352, %2, %cst_152 {dimension_numbers = #tpu.dot_dimension_numbers<[1], [0], [0], [1], [0, 0, 1, 1], [], []>} : vector<8x128xbf16>, vector<128x64xbf16>, vector<8x64xf32> -> vector<8x64xf32>
    %354 = vector.broadcast %4 : vector<1x64xf32> to vector<8x64xf32>
    %355 = arith.addf %353, %354 : vector<8x64xf32>
    %356 = math.tanh %355 : vector<8x64xf32>
    %357 = arith.truncf %356 : vector<8x64xf32> to vector<8x64xbf16>
    %c20 = arith.constant 20 : index
    %c0_153 = arith.constant 0 : index
    %c0_154 = arith.constant 0 : index
    %358 = vector.load %arg6[%c20, %c0_153, %c0_154] : memref<28x64x10xbf16, #tpu.memory_space<vmem>>, vector<1x64x10xbf16>
    %359 = vector.shape_cast %358 : vector<1x64x10xbf16> to vector<64x10xbf16>
    %cst_155 = arith.constant dense<0.000000e+00> : vector<8x10xf32>
    %360 = tpu.matmul %357, %359, %cst_155 {dimension_numbers = #tpu.dot_dimension_numbers<[1], [0], [0], [1], [0, 0, 1, 1], [], []>} : vector<8x64xbf16>, vector<64x10xbf16>, vector<8x10xf32> -> vector<8x10xf32>
    %361 = arith.addf %344, %360 : vector<8x10xf32>
    %c0_156 = arith.constant 0 : index
    %c588 = arith.constant 588 : index
    %362 = vector.load %arg1[%c0_156, %c588] : memref<8x784xf32, #tpu.memory_space<vmem>>, vector<8x28xf32>
    %363 = arith.truncf %362 : vector<8x28xf32> to vector<8x28xbf16>
    %cst_157 = arith.constant dense<0.000000e+00> : vector<8x128xf32>
    %364 = tpu.matmul %363, %1, %cst_157 {dimension_numbers = #tpu.dot_dimension_numbers<[1], [0], [0], [1], [0, 0, 1, 1], [], []>} : vector<8x28xbf16>, vector<28x128xbf16>, vector<8x128xf32> -> vector<8x128xf32>
    %365 = vector.broadcast %3 : vector<1x128xf32> to vector<8x128xf32>
    %366 = arith.addf %364, %365 : vector<8x128xf32>
    %cst_158 = arith.constant 0.000000e+00 : f32
    %367 = vector.broadcast %cst_158 : f32 to vector<8x128xf32>
    %368 = arith.maximumf %366, %367 : vector<8x128xf32>
    %369 = arith.truncf %368 : vector<8x128xf32> to vector<8x128xbf16>
    %cst_159 = arith.constant dense<0.000000e+00> : vector<8x64xf32>
    %370 = tpu.matmul %369, %2, %cst_159 {dimension_numbers = #tpu.dot_dimension_numbers<[1], [0], [0], [1], [0, 0, 1, 1], [], []>} : vector<8x128xbf16>, vector<128x64xbf16>, vector<8x64xf32> -> vector<8x64xf32>
    %371 = vector.broadcast %4 : vector<1x64xf32> to vector<8x64xf32>
    %372 = arith.addf %370, %371 : vector<8x64xf32>
    %373 = math.tanh %372 : vector<8x64xf32>
    %374 = arith.truncf %373 : vector<8x64xf32> to vector<8x64xbf16>
    %c21 = arith.constant 21 : index
    %c0_160 = arith.constant 0 : index
    %c0_161 = arith.constant 0 : index
    %375 = vector.load %arg6[%c21, %c0_160, %c0_161] : memref<28x64x10xbf16, #tpu.memory_space<vmem>>, vector<1x64x10xbf16>
    %376 = vector.shape_cast %375 : vector<1x64x10xbf16> to vector<64x10xbf16>
    %cst_162 = arith.constant dense<0.000000e+00> : vector<8x10xf32>
    %377 = tpu.matmul %374, %376, %cst_162 {dimension_numbers = #tpu.dot_dimension_numbers<[1], [0], [0], [1], [0, 0, 1, 1], [], []>} : vector<8x64xbf16>, vector<64x10xbf16>, vector<8x10xf32> -> vector<8x10xf32>
    %378 = arith.addf %361, %377 : vector<8x10xf32>
    %c0_163 = arith.constant 0 : index
    %c616 = arith.constant 616 : index
    %379 = vector.load %arg1[%c0_163, %c616] : memref<8x784xf32, #tpu.memory_space<vmem>>, vector<8x28xf32>
    %380 = arith.truncf %379 : vector<8x28xf32> to vector<8x28xbf16>
    %cst_164 = arith.constant dense<0.000000e+00> : vector<8x128xf32>
    %381 = tpu.matmul %380, %1, %cst_164 {dimension_numbers = #tpu.dot_dimension_numbers<[1], [0], [0], [1], [0, 0, 1, 1], [], []>} : vector<8x28xbf16>, vector<28x128xbf16>, vector<8x128xf32> -> vector<8x128xf32>
    %382 = vector.broadcast %3 : vector<1x128xf32> to vector<8x128xf32>
    %383 = arith.addf %381, %382 : vector<8x128xf32>
    %cst_165 = arith.constant 0.000000e+00 : f32
    %384 = vector.broadcast %cst_165 : f32 to vector<8x128xf32>
    %385 = arith.maximumf %383, %384 : vector<8x128xf32>
    %386 = arith.truncf %385 : vector<8x128xf32> to vector<8x128xbf16>
    %cst_166 = arith.constant dense<0.000000e+00> : vector<8x64xf32>
    %387 = tpu.matmul %386, %2, %cst_166 {dimension_numbers = #tpu.dot_dimension_numbers<[1], [0], [0], [1], [0, 0, 1, 1], [], []>} : vector<8x128xbf16>, vector<128x64xbf16>, vector<8x64xf32> -> vector<8x64xf32>
    %388 = vector.broadcast %4 : vector<1x64xf32> to vector<8x64xf32>
    %389 = arith.addf %387, %388 : vector<8x64xf32>
    %390 = math.tanh %389 : vector<8x64xf32>
    %391 = arith.truncf %390 : vector<8x64xf32> to vector<8x64xbf16>
    %c22 = arith.constant 22 : index
    %c0_167 = arith.constant 0 : index
    %c0_168 = arith.constant 0 : index
    %392 = vector.load %arg6[%c22, %c0_167, %c0_168] : memref<28x64x10xbf16, #tpu.memory_space<vmem>>, vector<1x64x10xbf16>
    %393 = vector.shape_cast %392 : vector<1x64x10xbf16> to vector<64x10xbf16>
    %cst_169 = arith.constant dense<0.000000e+00> : vector<8x10xf32>
    %394 = tpu.matmul %391, %393, %cst_169 {dimension_numbers = #tpu.dot_dimension_numbers<[1], [0], [0], [1], [0, 0, 1, 1], [], []>} : vector<8x64xbf16>, vector<64x10xbf16>, vector<8x10xf32> -> vector<8x10xf32>
    %395 = arith.addf %378, %394 : vector<8x10xf32>
    %c0_170 = arith.constant 0 : index
    %c644 = arith.constant 644 : index
    %396 = vector.load %arg1[%c0_170, %c644] : memref<8x784xf32, #tpu.memory_space<vmem>>, vector<8x28xf32>
    %397 = arith.truncf %396 : vector<8x28xf32> to vector<8x28xbf16>
    %cst_171 = arith.constant dense<0.000000e+00> : vector<8x128xf32>
    %398 = tpu.matmul %397, %1, %cst_171 {dimension_numbers = #tpu.dot_dimension_numbers<[1], [0], [0], [1], [0, 0, 1, 1], [], []>} : vector<8x28xbf16>, vector<28x128xbf16>, vector<8x128xf32> -> vector<8x128xf32>
    %399 = vector.broadcast %3 : vector<1x128xf32> to vector<8x128xf32>
    %400 = arith.addf %398, %399 : vector<8x128xf32>
    %cst_172 = arith.constant 0.000000e+00 : f32
    %401 = vector.broadcast %cst_172 : f32 to vector<8x128xf32>
    %402 = arith.maximumf %400, %401 : vector<8x128xf32>
    %403 = arith.truncf %402 : vector<8x128xf32> to vector<8x128xbf16>
    %cst_173 = arith.constant dense<0.000000e+00> : vector<8x64xf32>
    %404 = tpu.matmul %403, %2, %cst_173 {dimension_numbers = #tpu.dot_dimension_numbers<[1], [0], [0], [1], [0, 0, 1, 1], [], []>} : vector<8x128xbf16>, vector<128x64xbf16>, vector<8x64xf32> -> vector<8x64xf32>
    %405 = vector.broadcast %4 : vector<1x64xf32> to vector<8x64xf32>
    %406 = arith.addf %404, %405 : vector<8x64xf32>
    %407 = math.tanh %406 : vector<8x64xf32>
    %408 = arith.truncf %407 : vector<8x64xf32> to vector<8x64xbf16>
    %c23 = arith.constant 23 : index
    %c0_174 = arith.constant 0 : index
    %c0_175 = arith.constant 0 : index
    %409 = vector.load %arg6[%c23, %c0_174, %c0_175] : memref<28x64x10xbf16, #tpu.memory_space<vmem>>, vector<1x64x10xbf16>
    %410 = vector.shape_cast %409 : vector<1x64x10xbf16> to vector<64x10xbf16>
    %cst_176 = arith.constant dense<0.000000e+00> : vector<8x10xf32>
    %411 = tpu.matmul %408, %410, %cst_176 {dimension_numbers = #tpu.dot_dimension_numbers<[1], [0], [0], [1], [0, 0, 1, 1], [], []>} : vector<8x64xbf16>, vector<64x10xbf16>, vector<8x10xf32> -> vector<8x10xf32>
    %412 = arith.addf %395, %411 : vector<8x10xf32>
    %c0_177 = arith.constant 0 : index
    %c672 = arith.constant 672 : index
    %413 = vector.load %arg1[%c0_177, %c672] : memref<8x784xf32, #tpu.memory_space<vmem>>, vector<8x28xf32>
    %414 = arith.truncf %413 : vector<8x28xf32> to vector<8x28xbf16>
    %cst_178 = arith.constant dense<0.000000e+00> : vector<8x128xf32>
    %415 = tpu.matmul %414, %1, %cst_178 {dimension_numbers = #tpu.dot_dimension_numbers<[1], [0], [0], [1], [0, 0, 1, 1], [], []>} : vector<8x28xbf16>, vector<28x128xbf16>, vector<8x128xf32> -> vector<8x128xf32>
    %416 = vector.broadcast %3 : vector<1x128xf32> to vector<8x128xf32>
    %417 = arith.addf %415, %416 : vector<8x128xf32>
    %cst_179 = arith.constant 0.000000e+00 : f32
    %418 = vector.broadcast %cst_179 : f32 to vector<8x128xf32>
    %419 = arith.maximumf %417, %418 : vector<8x128xf32>
    %420 = arith.truncf %419 : vector<8x128xf32> to vector<8x128xbf16>
    %cst_180 = arith.constant dense<0.000000e+00> : vector<8x64xf32>
    %421 = tpu.matmul %420, %2, %cst_180 {dimension_numbers = #tpu.dot_dimension_numbers<[1], [0], [0], [1], [0, 0, 1, 1], [], []>} : vector<8x128xbf16>, vector<128x64xbf16>, vector<8x64xf32> -> vector<8x64xf32>
    %422 = vector.broadcast %4 : vector<1x64xf32> to vector<8x64xf32>
    %423 = arith.addf %421, %422 : vector<8x64xf32>
    %424 = math.tanh %423 : vector<8x64xf32>
    %425 = arith.truncf %424 : vector<8x64xf32> to vector<8x64xbf16>
    %c24 = arith.constant 24 : index
    %c0_181 = arith.constant 0 : index
    %c0_182 = arith.constant 0 : index
    %426 = vector.load %arg6[%c24, %c0_181, %c0_182] : memref<28x64x10xbf16, #tpu.memory_space<vmem>>, vector<1x64x10xbf16>
    %427 = vector.shape_cast %426 : vector<1x64x10xbf16> to vector<64x10xbf16>
    %cst_183 = arith.constant dense<0.000000e+00> : vector<8x10xf32>
    %428 = tpu.matmul %425, %427, %cst_183 {dimension_numbers = #tpu.dot_dimension_numbers<[1], [0], [0], [1], [0, 0, 1, 1], [], []>} : vector<8x64xbf16>, vector<64x10xbf16>, vector<8x10xf32> -> vector<8x10xf32>
    %429 = arith.addf %412, %428 : vector<8x10xf32>
    %c0_184 = arith.constant 0 : index
    %c700 = arith.constant 700 : index
    %430 = vector.load %arg1[%c0_184, %c700] : memref<8x784xf32, #tpu.memory_space<vmem>>, vector<8x28xf32>
    %431 = arith.truncf %430 : vector<8x28xf32> to vector<8x28xbf16>
    %cst_185 = arith.constant dense<0.000000e+00> : vector<8x128xf32>
    %432 = tpu.matmul %431, %1, %cst_185 {dimension_numbers = #tpu.dot_dimension_numbers<[1], [0], [0], [1], [0, 0, 1, 1], [], []>} : vector<8x28xbf16>, vector<28x128xbf16>, vector<8x128xf32> -> vector<8x128xf32>
    %433 = vector.broadcast %3 : vector<1x128xf32> to vector<8x128xf32>
    %434 = arith.addf %432, %433 : vector<8x128xf32>
    %cst_186 = arith.constant 0.000000e+00 : f32
    %435 = vector.broadcast %cst_186 : f32 to vector<8x128xf32>
    %436 = arith.maximumf %434, %435 : vector<8x128xf32>
    %437 = arith.truncf %436 : vector<8x128xf32> to vector<8x128xbf16>
    %cst_187 = arith.constant dense<0.000000e+00> : vector<8x64xf32>
    %438 = tpu.matmul %437, %2, %cst_187 {dimension_numbers = #tpu.dot_dimension_numbers<[1], [0], [0], [1], [0, 0, 1, 1], [], []>} : vector<8x128xbf16>, vector<128x64xbf16>, vector<8x64xf32> -> vector<8x64xf32>
    %439 = vector.broadcast %4 : vector<1x64xf32> to vector<8x64xf32>
    %440 = arith.addf %438, %439 : vector<8x64xf32>
    %441 = math.tanh %440 : vector<8x64xf32>
    %442 = arith.truncf %441 : vector<8x64xf32> to vector<8x64xbf16>
    %c25 = arith.constant 25 : index
    %c0_188 = arith.constant 0 : index
    %c0_189 = arith.constant 0 : index
    %443 = vector.load %arg6[%c25, %c0_188, %c0_189] : memref<28x64x10xbf16, #tpu.memory_space<vmem>>, vector<1x64x10xbf16>
    %444 = vector.shape_cast %443 : vector<1x64x10xbf16> to vector<64x10xbf16>
    %cst_190 = arith.constant dense<0.000000e+00> : vector<8x10xf32>
    %445 = tpu.matmul %442, %444, %cst_190 {dimension_numbers = #tpu.dot_dimension_numbers<[1], [0], [0], [1], [0, 0, 1, 1], [], []>} : vector<8x64xbf16>, vector<64x10xbf16>, vector<8x10xf32> -> vector<8x10xf32>
    %446 = arith.addf %429, %445 : vector<8x10xf32>
    %c0_191 = arith.constant 0 : index
    %c728 = arith.constant 728 : index
    %447 = vector.load %arg1[%c0_191, %c728] : memref<8x784xf32, #tpu.memory_space<vmem>>, vector<8x28xf32>
    %448 = arith.truncf %447 : vector<8x28xf32> to vector<8x28xbf16>
    %cst_192 = arith.constant dense<0.000000e+00> : vector<8x128xf32>
    %449 = tpu.matmul %448, %1, %cst_192 {dimension_numbers = #tpu.dot_dimension_numbers<[1], [0], [0], [1], [0, 0, 1, 1], [], []>} : vector<8x28xbf16>, vector<28x128xbf16>, vector<8x128xf32> -> vector<8x128xf32>
    %450 = vector.broadcast %3 : vector<1x128xf32> to vector<8x128xf32>
    %451 = arith.addf %449, %450 : vector<8x128xf32>
    %cst_193 = arith.constant 0.000000e+00 : f32
    %452 = vector.broadcast %cst_193 : f32 to vector<8x128xf32>
    %453 = arith.maximumf %451, %452 : vector<8x128xf32>
    %454 = arith.truncf %453 : vector<8x128xf32> to vector<8x128xbf16>
    %cst_194 = arith.constant dense<0.000000e+00> : vector<8x64xf32>
    %455 = tpu.matmul %454, %2, %cst_194 {dimension_numbers = #tpu.dot_dimension_numbers<[1], [0], [0], [1], [0, 0, 1, 1], [], []>} : vector<8x128xbf16>, vector<128x64xbf16>, vector<8x64xf32> -> vector<8x64xf32>
    %456 = vector.broadcast %4 : vector<1x64xf32> to vector<8x64xf32>
    %457 = arith.addf %455, %456 : vector<8x64xf32>
    %458 = math.tanh %457 : vector<8x64xf32>
    %459 = arith.truncf %458 : vector<8x64xf32> to vector<8x64xbf16>
    %c26 = arith.constant 26 : index
    %c0_195 = arith.constant 0 : index
    %c0_196 = arith.constant 0 : index
    %460 = vector.load %arg6[%c26, %c0_195, %c0_196] : memref<28x64x10xbf16, #tpu.memory_space<vmem>>, vector<1x64x10xbf16>
    %461 = vector.shape_cast %460 : vector<1x64x10xbf16> to vector<64x10xbf16>
    %cst_197 = arith.constant dense<0.000000e+00> : vector<8x10xf32>
    %462 = tpu.matmul %459, %461, %cst_197 {dimension_numbers = #tpu.dot_dimension_numbers<[1], [0], [0], [1], [0, 0, 1, 1], [], []>} : vector<8x64xbf16>, vector<64x10xbf16>, vector<8x10xf32> -> vector<8x10xf32>
    %463 = arith.addf %446, %462 : vector<8x10xf32>
    %c0_198 = arith.constant 0 : index
    %c756 = arith.constant 756 : index
    %464 = vector.load %arg1[%c0_198, %c756] : memref<8x784xf32, #tpu.memory_space<vmem>>, vector<8x28xf32>
    %465 = arith.truncf %464 : vector<8x28xf32> to vector<8x28xbf16>
    %cst_199 = arith.constant dense<0.000000e+00> : vector<8x128xf32>
    %466 = tpu.matmul %465, %1, %cst_199 {dimension_numbers = #tpu.dot_dimension_numbers<[1], [0], [0], [1], [0, 0, 1, 1], [], []>} : vector<8x28xbf16>, vector<28x128xbf16>, vector<8x128xf32> -> vector<8x128xf32>
    %467 = vector.broadcast %3 : vector<1x128xf32> to vector<8x128xf32>
    %468 = arith.addf %466, %467 : vector<8x128xf32>
    %cst_200 = arith.constant 0.000000e+00 : f32
    %469 = vector.broadcast %cst_200 : f32 to vector<8x128xf32>
    %470 = arith.maximumf %468, %469 : vector<8x128xf32>
    %471 = arith.truncf %470 : vector<8x128xf32> to vector<8x128xbf16>
    %cst_201 = arith.constant dense<0.000000e+00> : vector<8x64xf32>
    %472 = tpu.matmul %471, %2, %cst_201 {dimension_numbers = #tpu.dot_dimension_numbers<[1], [0], [0], [1], [0, 0, 1, 1], [], []>} : vector<8x128xbf16>, vector<128x64xbf16>, vector<8x64xf32> -> vector<8x64xf32>
    %473 = vector.broadcast %4 : vector<1x64xf32> to vector<8x64xf32>
    %474 = arith.addf %472, %473 : vector<8x64xf32>
    %475 = math.tanh %474 : vector<8x64xf32>
    %476 = arith.truncf %475 : vector<8x64xf32> to vector<8x64xbf16>
    %c27 = arith.constant 27 : index
    %c0_202 = arith.constant 0 : index
    %c0_203 = arith.constant 0 : index
    %477 = vector.load %arg6[%c27, %c0_202, %c0_203] : memref<28x64x10xbf16, #tpu.memory_space<vmem>>, vector<1x64x10xbf16>
    %478 = vector.shape_cast %477 : vector<1x64x10xbf16> to vector<64x10xbf16>
    %cst_204 = arith.constant dense<0.000000e+00> : vector<8x10xf32>
    %479 = tpu.matmul %476, %478, %cst_204 {dimension_numbers = #tpu.dot_dimension_numbers<[1], [0], [0], [1], [0, 0, 1, 1], [], []>} : vector<8x64xbf16>, vector<64x10xbf16>, vector<8x10xf32> -> vector<8x10xf32>
    %480 = arith.addf %463, %479 : vector<8x10xf32>
    %c0_205 = arith.constant 0 : index
    %c0_206 = arith.constant 0 : index
    %481 = vector.load %arg7[%c0_205, %c0_206] : memref<1x10xf32, #tpu.memory_space<vmem>>, vector<1x10xf32>
    %482 = vector.broadcast %481 : vector<1x10xf32> to vector<8x10xf32>
    %483 = arith.addf %480, %482 : vector<8x10xf32>
    %cst_207 = arith.constant dense<0xFF800000> : vector<8xf32>
    %484 = vector.multi_reduction <maximumf>, %483, %cst_207 [1] : vector<8x10xf32> to vector<8xf32>
    %485 = vector.shape_cast %484 : vector<8xf32> to vector<8x1xf32>
    %486 = vector.broadcast %485 : vector<8x1xf32> to vector<8x10xf32>
    %487 = arith.subf %483, %486 : vector<8x10xf32>
    %488 = math.exp %487 : vector<8x10xf32>
    %cst_208 = arith.constant dense<0.000000e+00> : vector<8xf32>
    %489 = vector.multi_reduction <add>, %488, %cst_208 [1] : vector<8x10xf32> to vector<8xf32>
    %490 = vector.shape_cast %489 : vector<8xf32> to vector<8x1xf32>
    %491 = math.log %490 : vector<8x1xf32>
    %492 = vector.broadcast %491 : vector<8x1xf32> to vector<8x10xf32>
    %493 = arith.subf %487, %492 : vector<8x10xf32>
    %c0_209 = arith.constant 0 : index
    %c0_210 = arith.constant 0 : index
    %494 = vector.load %arg8[%c0_209, %c0_210] : memref<8x10xf32, #tpu.memory_space<vmem>>, vector<8x10xf32>
    tpu.vector_store %arg8[%c0_209, %c0_210], %493 {strides = array<i32>} : memref<8x10xf32, #tpu.memory_space<vmem>>, vector<8x10xf32>,
    return
  }
  func.func @transform_0(%arg0: i32) -> (i32, i32) {
    %c0_i32 = arith.constant 0 : i32
    %c0_i32_0 = arith.constant 0 : i32
    return %arg0, %c0_i32 : i32, i32
  }
  func.func @transform_1(%arg0: i32) -> (i32, i32) {
    %c0_i32 = arith.constant 0 : i32
    %c0_i32_0 = arith.constant 0 : i32
    %c0_i32_1 = arith.constant 0 : i32
    return %c0_i32, %c0_i32_0 : i32, i32
  }
  func.func @transform_2(%arg0: i32) -> (i32, i32) {
    %c0_i32 = arith.constant 0 : i32
    %c0_i32_0 = arith.constant 0 : i32
    %c0_i32_1 = arith.constant 0 : i32
    return %c0_i32, %c0_i32_0 : i32, i32
  }
  func.func @transform_3(%arg0: i32) -> (i32, i32) {
    %c0_i32 = arith.constant 0 : i32
    %c0_i32_0 = arith.constant 0 : i32
    %c0_i32_1 = arith.constant 0 : i32
    return %c0_i32, %c0_i32_0 : i32, i32
  }
  func.func @transform_4(%arg0: i32) -> (i32, i32) {
    %c0_i32 = arith.constant 0 : i32
    %c0_i32_0 = arith.constant 0 : i32
    %c0_i32_1 = arith.constant 0 : i32
    return %c0_i32, %c0_i32_0 : i32, i32
  }
  func.func @transform_5(%arg0: i32) -> (i32, i32, i32) {
    %c0_i32 = arith.constant 0 : i32
    %c0_i32_0 = arith.constant 0 : i32
    %c0_i32_1 = arith.constant 0 : i32
    %c0_i32_2 = arith.constant 0 : i32
    return %c0_i32, %c0_i32_0, %c0_i32_1 : i32, i32, i32
  }
  func.func @transform_6(%arg0: i32) -> (i32, i32) {
    %c0_i32 = arith.constant 0 : i32
    %c0_i32_0 = arith.constant 0 : i32
    %c0_i32_1 = arith.constant 0 : i32
    return %c0_i32, %c0_i32_0 : i32, i32
  }
  func.func @transform_7(%arg0: i32) -> (i32, i32) {
    %c0_i32 = arith.constant 0 : i32
    %c0_i32_0 = arith.constant 0 : i32
    return %arg0, %c0_i32 : i32, i32
  }
}

</mosaic_0001>

<llo_original>
// kernel: tpu_custom_call.1
$region0: #{tpu_custom_call.1}
  #allocation0 [shape = 'u32[]', space=smem, size = 0x4, offset = 0x4, fixed_abs, tag = 'smem constant byte address 0x4 - core index']
  #allocation1 [shape = 'u32[144,128]{1,0:T(1,128)}', space=vmem, size = 0x12000, scoped, tag = 'internal scratch']
  %s0 = inlined_call_operand.vmem [shape: f32[8,784], index: 0, kind: input, shape index: {}]
  %s1 = inlined_call_operand.vmem [shape: bf16[28,128], index: 1, kind: input, shape index: {}]
  %s2 = inlined_call_operand.vmem [shape: f32[1,128], index: 2, kind: input, shape index: {}]
  %s3 = inlined_call_operand.vmem [shape: bf16[128,64], index: 3, kind: input, shape index: {}]
  %s4 = inlined_call_operand.vmem [shape: f32[1,64], index: 4, kind: input, shape index: {}]
  %s5 = inlined_call_operand.vmem [shape: bf16[28,64,10], index: 5, kind: input, shape index: {}]
  %s6 = inlined_call_operand.vmem [shape: f32[1,10], index: 6, kind: input, shape index: {}]
  %s7 = inlined_call_operand.hbm [shape: f32[8,10], index: 7, kind: output, shape index: {}]
  %s8 = sld [smem:[#allocation0]]
  $region38: #{tpu_custom_call.1} parent=0
    _
  %s10 = ssub.s32 1, %s8
  %s11 = scalar_select 0, %s10, %s8
  $region1: #{tpu_custom_call.1} parent=0
    #allocation2 [shape = 'u8[4096]{0}', space=vmem, size = 0x1000, scoped, tag = 'output window, operand 0, single buffered']
    #allocation3 [shape = 's32[1]{0}', space=sflag, size = 0x4, scoped, tag = 'scoped memory for tpu_custom_call.1']
    %12 = vsyncpa [#allocation3], 0
    // Predicated region
    $region2: #{tpu_custom_call.1} parent=1 // pred_check
      _
    $region3: #{tpu_custom_call.1} parent=1 // pred_check_branch
      %14 = sbr.rel (0) target = $region5
    $region4: #{tpu_custom_call.1} parent=1 // pred_region
      _
    $region5: #{tpu_custom_call.1} parent=1 // pred_fallthru
      _
    // Predicated region
    $region6: #{tpu_custom_call.1} parent=1 // pred_check
      _
    $region7: #{tpu_custom_call.1} parent=1 // pred_check_branch
      %16 = sbr.rel (0) target = $region9
    $region8: #{tpu_custom_call.1} parent=1 // pred_region
      _
    $region9: #{tpu_custom_call.1} parent=1 // pred_fallthru
      _
    // Predicated region
    $region10: #{tpu_custom_call.1} parent=1 // pred_check
      _
    $region11: #{tpu_custom_call.1} parent=1 // pred_check_branch
      %18 = sbr.rel (0) target = $region13
    $region12: #{tpu_custom_call.1} parent=1 // pred_region
      _
    $region13: #{tpu_custom_call.1} parent=1 // pred_fallthru
      _
    // Predicated region
    $region14: #{tpu_custom_call.1} parent=1 // pred_check
      _
    $region15: #{tpu_custom_call.1} parent=1 // pred_check_branch
      %20 = sbr.rel (0) target = $region17
    $region16: #{tpu_custom_call.1} parent=1 // pred_region
      _
    $region17: #{tpu_custom_call.1} parent=1 // pred_fallthru
      _
    // Predicated region
    $region18: #{tpu_custom_call.1} parent=1 // pred_check
      _
    $region19: #{tpu_custom_call.1} parent=1 // pred_check_branch
      %22 = sbr.rel (0) target = $region21
    $region20: #{tpu_custom_call.1} parent=1 // pred_region
      _
    $region21: #{tpu_custom_call.1} parent=1 // pred_fallthru
      _
    // Predicated region
    $region22: #{tpu_custom_call.1} parent=1 // pred_check
      _
    $region23: #{tpu_custom_call.1} parent=1 // pred_check_branch
      %24 = sbr.rel (0) target = $region25
    $region24: #{tpu_custom_call.1} parent=1 // pred_region
      _
    $region25: #{tpu_custom_call.1} parent=1 // pred_fallthru
      _
    // Predicated region
    $region26: #{tpu_custom_call.1} parent=1 // pred_check
      _
    $region27: #{tpu_custom_call.1} parent=1 // pred_check_branch
      %26 = sbr.rel (0) target = $region29
    $region28: #{tpu_custom_call.1} parent=1 // pred_region
      _
    $region29: #{tpu_custom_call.1} parent=1 // pred_fallthru
      _
    %v28 = vld [vmem:[%s1] sm:$0xf]
    %v29 = vld [vmem:[%s1 + $0x4] sm:$0xf]
    %v30 = vld [vmem:[%s1 + $0x8] sm:$0xf]
    %v31 = vld [vmem:[%s1 + $0xc] sm:$0x3]
    %v32 = vld [vmem:[%s3] sm:$0xf]
    %v33 = vld [vmem:[%s3 + $0x4] sm:$0xf]
    %v34 = vld [vmem:[%s3 + $0x8] sm:$0xf]
    %v35 = vld [vmem:[%s3 + $0xc] sm:$0xf]
    %v36 = vld [vmem:[%s3 + $0x10] sm:$0xf]
    %v37 = vld [vmem:[%s3 + $0x14] sm:$0xf]
    %v38 = vld [vmem:[%s3 + $0x18] sm:$0xf]
    %v39 = vld [vmem:[%s3 + $0x1c] sm:$0xf]
    %v40 = vld [vmem:[%s3 + $0x20] sm:$0xf]
    %v41 = vld [vmem:[%s3 + $0x24] sm:$0xf]
    %v42 = vld [vmem:[%s3 + $0x28] sm:$0xf]
    %v43 = vld [vmem:[%s3 + $0x2c] sm:$0xf]
    %v44 = vld [vmem:[%s3 + $0x30] sm:$0xf]
    %v45 = vld [vmem:[%s3 + $0x34] sm:$0xf]
    %v46 = vld [vmem:[%s3 + $0x38] sm:$0xf]
    %v47 = vld [vmem:[%s3 + $0x3c] sm:$0xf]
    %v48 = vld [vmem:[%s2] sm:$0x1]
    %v49 = vld [vmem:[%s4] sm:$0x1]
    %v50 = vld [vmem:[%s0] sm:$0xff]
    %v51 = vpack.c.bf16 %v50, %v50
    %v53 = vlaneseq
    %v54 = vshrl.u32 %v53, 7
    %v55 = vsub.s32 0, %v54
    %v56 = vrot.slane %v48, %v55
    %v62 = vunpack.c.l.b16 %v28
    %v63 = vunpack.c.l.b16 %v29
    %v64 = vunpack.c.l.b16 %v30
    %v65 = vunpack.c.l.b16 %v31
    %v66 = vpack.c.b16 %v63, %v62
    %v67 = vpack.c.b16 %v65, %v64
    %vm69 = vcmask 228352
    %v71 = vsel %vm69, %v51, 0
    %vm73 = vcmask 1045504
    %v75 = vsel %vm73, %v67, 0
    %77 = vmatprep.subr.bf16.mxu0 0
    %78 = vmatpush1.bf16.msra.mxu0 %v66
    %79 = vmatprep.subr.bf16.mxu0 0
    %80 = vmatpush1.bf16.msra.mxu0 %v75
    %81 = vmatprep.subr.bf16.mxu0 0
    %82 = vmatpush1.bf16.msra.mxu0 0
    %83 = vmatprep.subr.bf16.mxu0 0
    %84 = vmatpush1.bf16.msra.mxu0 0
    %85 = vmatprep.subr.bf16.mxu0 0
    %86 = vmatpush1.bf16.msra.mxu0 0
    %87 = vmatprep.subr.bf16.mxu0 0
    %88 = vmatpush1.bf16.msra.mxu0 0
    %89 = vmatprep.subr.bf16.mxu0 0
    %90 = vmatpush1.bf16.msra.mxu0 0
    %91 = vmatprep.subr.bf16.mxu0 0
    %92 = vmatpush1.bf16.msra.mxu0 0
    %93 = vmatprep.subr.bf16.mxu0 0
    %94 = vmatpush1.bf16.msra.mxu0 0
    %95 = vmatprep.subr.bf16.mxu0 0
    %96 = vmatpush1.bf16.msra.mxu0 0
    %97 = vmatprep.subr.bf16.mxu0 0
    %98 = vmatpush1.bf16.msra.mxu0 0
    %99 = vmatprep.subr.bf16.mxu0 0
    %100 = vmatpush1.bf16.msra.mxu0 0
    %101 = vmatprep.subr.bf16.mxu0 0
    %102 = vmatpush1.bf16.msra.mxu0 0
    %103 = vmatprep.subr.bf16.mxu0 0
    %104 = vmatpush1.bf16.msra.mxu0 0
    %105 = vmatprep.subr.bf16.mxu0 0
    %106 = vmatpush1.bf16.msra.mxu0 0
    %107 = vmatprep.subr.bf16.mxu0 0
    %108 = vmatpush1.bf16.msra.mxu0 0
    %109 = vmatprep.mubr.bf16.mxu0 0
    %110 = vmatmul.mubr.bf16.gmra.mrb[0].mxu0 %v71
    %v111 = vpop.f32.mrb[0].mxu0
    %v112 = vadd.f32 %v56, %v111
    %v113 = vpop.f32.mrb[0].mxu0
    %v114 = vpop.f32.mrb[0].mxu0
    %v115 = vpop.f32.mrb[0].mxu0
    %116 = vdwg.mxu0
    %v117 = vmax.f32 %v112, 0.0
    %v118 = vpack.c.bf16 %v117, %v117
    %v120 = vlaneseq
    %v121 = vshrl.u32 %v120, 7
    %v122 = vsub.s32 0, %v121
    %v123 = vrot.slane %v49, %v122
    %v141 = vunpack.c.l.b16 %v32
    %v142 = vunpack.c.l.b16 %v33
    %v143 = vunpack.c.l.b16 %v34
    %v144 = vunpack.c.l.b16 %v35
    %v145 = vunpack.c.l.b16 %v36
    %v146 = vunpack.c.l.b16 %v37
    %v147 = vunpack.c.l.b16 %v38
    %v148 = vunpack.c.l.b16 %v39
    %v149 = vunpack.c.l.b16 %v40
    %v150 = vunpack.c.l.b16 %v41
    %v151 = vunpack.c.l.b16 %v42
    %v152 = vunpack.c.l.b16 %v43
    %v153 = vunpack.c.l.b16 %v44
    %v154 = vunpack.c.l.b16 %v45
    %v155 = vunpack.c.l.b16 %v46
    %v156 = vunpack.c.l.b16 %v47
    %v157 = vpack.c.b16 %v142, %v141
    %v158 = vpack.c.b16 %v144, %v143
    %v159 = vpack.c.b16 %v146, %v145
    %v160 = vpack.c.b16 %v148, %v147
    %v161 = vpack.c.b16 %v150, %v149
    %v162 = vpack.c.b16 %v152, %v151
    %v163 = vpack.c.b16 %v154, %v153
    %v164 = vpack.c.b16 %v156, %v155
    %173 = vmatprep.subr.bf16.mxu0 0
    %174 = vmatpush1.bf16.msra.mxu0 %v157
    %175 = vmatprep.subr.bf16.mxu0 0
    %176 = vmatpush1.bf16.msra.mxu0 %v158
    %177 = vmatprep.subr.bf16.mxu0 0
    %178 = vmatpush1.bf16.msra.mxu0 %v159
    %179 = vmatprep.subr.bf16.mxu0 0
    %180 = vmatpush1.bf16.msra.mxu0 %v160
    %181 = vmatprep.subr.bf16.mxu0 0
    %182 = vmatpush1.bf16.msra.mxu0 %v161
    %183 = vmatprep.subr.bf16.mxu0 0
    %184 = vmatpush1.bf16.msra.mxu0 %v162
    %185 = vmatprep.subr.bf16.mxu0 0
    %186 = vmatpush1.bf16.msra.mxu0 %v163
    %187 = vmatprep.subr.bf16.mxu0 0
    %188 = vmatpush1.bf16.msra.mxu0 %v164
    %189 = vmatprep.subr.bf16.mxu0 0
    %190 = vmatpush1.bf16.msra.mxu0 0
    %191 = vmatprep.subr.bf16.mxu0 0
    %192 = vmatpush1.bf16.msra.mxu0 0
    %193 = vmatprep.subr.bf16.mxu0 0
    %194 = vmatpush1.bf16.msra.mxu0 0
    %195 = vmatprep.subr.bf16.mxu0 0
    %196 = vmatpush1.bf16.msra.mxu0 0
    %197 = vmatprep.subr.bf16.mxu0 0
    %198 = vmatpush1.bf16.msra.mxu0 0
    %199 = vmatprep.subr.bf16.mxu0 0
    %200 = vmatpush1.bf16.msra.mxu0 0
    %201 = vmatprep.subr.bf16.mxu0 0
    %202 = vmatpush1.bf16.msra.mxu0 0
    %203 = vmatprep.subr.bf16.mxu0 0
    %204 = vmatpush1.bf16.msra.mxu0 0
    %205 = vmatprep.mubr.bf16.mxu0 0
    %206 = vmatmul.mubr.bf16.gmra.mrb[0].mxu0 %v118
    %v207 = vpop.f32.mrb[0].mxu0
    %v208 = vadd.f32 %v123, %v207
    %v209 = vpop.f32.mrb[0].mxu0
    %v210 = vpop.f32.mrb[0].mxu0
    %v211 = vpop.f32.mrb[0].mxu0
    %212 = vdwg.mxu0
    %v213 = vtanh.pop %v208
    %v214 = vpack.c.bf16 %v213, %v213
    %v215 = vld [vmem:[%s5] sm:$0xf]
    %v216 = vld [vmem:[%s5 + $0x4] sm:$0xf]
    %v217 = vld [vmem:[%s5 + $0x8] sm:$0xf]
    %v218 = vld [vmem:[%s5 + $0xc] sm:$0xf]
    %v219 = vld [vmem:[%s5 + $0x10] sm:$0xf]
    %v220 = vld [vmem:[%s5 + $0x14] sm:$0xf]
    %v221 = vld [vmem:[%s5 + $0x18] sm:$0xf]
    %v222 = vld [vmem:[%s5 + $0x1c] sm:$0xf]
    %224 = vrot.lane.b32.xlu0 %v51, 100
    %v225 = vpop.permute.xlu0 %224
    %v227 = vsel %vm69, %v225, 0
    %229 = vmatprep.subr.bf16.mxu0 0
    %230 = vmatpush1.bf16.msra.mxu0 %v66
    %231 = vmatprep.subr.bf16.mxu0 0
    %232 = vmatpush1.bf16.msra.mxu0 %v75
    %233 = vmatprep.subr.bf16.mxu0 0
    %234 = vmatpush1.bf16.msra.mxu0 0
    %235 = vmatprep.subr.bf16.mxu0 0
    %236 = vmatpush1.bf16.msra.mxu0 0
    %237 = vmatprep.subr.bf16.mxu0 0
    %238 = vmatpush1.bf16.msra.mxu0 0
    %239 = vmatprep.subr.bf16.mxu0 0
    %240 = vmatpush1.bf16.msra.mxu0 0
    %241 = vmatprep.subr.bf16.mxu0 0
    %242 = vmatpush1.bf16.msra.mxu0 0
    %243 = vmatprep.subr.bf16.mxu0 0
    %244 = vmatpush1.bf16.msra.mxu0 0
    %245 = vmatprep.subr.bf16.mxu0 0
    %246 = vmatpush1.bf16.msra.mxu0 0
    %247 = vmatprep.subr.bf16.mxu0 0
    %248 = vmatpush1.bf16.msra.mxu0 0
    %249 = vmatprep.subr.bf16.mxu0 0
    %250 = vmatpush1.bf16.msra.mxu0 0
    %251 = vmatprep.subr.bf16.mxu0 0
    %252 = vmatpush1.bf16.msra.mxu0 0
    %253 = vmatprep.subr.bf16.mxu0 0
    %254 = vmatpush1.bf16.msra.mxu0 0
    %255 = vmatprep.subr.bf16.mxu0 0
    %256 = vmatpush1.bf16.msra.mxu0 0
    %257 = vmatprep.subr.bf16.mxu0 0
    %258 = vmatpush1.bf16.msra.mxu0 0
    %259 = vmatprep.subr.bf16.mxu0 0
    %260 = vmatpush1.bf16.msra.mxu0 0
    %261 = vmatprep.mubr.bf16.mxu0 0
    %262 = vmatmul.mubr.bf16.gmra.mrb[0].mxu0 %v227
    %v263 = vpop.f32.mrb[0].mxu0
    %v264 = vadd.f32 %v56, %v263
    %v265 = vpop.f32.mrb[0].mxu0
    %v266 = vpop.f32.mrb[0].mxu0
    %v267 = vpop.f32.mrb[0].mxu0
    %268 = vdwg.mxu0
    %v269 = vmax.f32 %v264, 0.0
    %v270 = vpack.c.bf16 %v269, %v269
    %271 = vmatprep.subr.bf16.mxu0 0
    %272 = vmatpush1.bf16.msra.mxu0 %v157
    %273 = vmatprep.subr.bf16.mxu0 0
    %274 = vmatpush1.bf16.msra.mxu0 %v158
    %275 = vmatprep.subr.bf16.mxu0 0
    %276 = vmatpush1.bf16.msra.mxu0 %v159
    %277 = vmatprep.subr.bf16.mxu0 0
    %278 = vmatpush1.bf16.msra.mxu0 %v160
    %279 = vmatprep.subr.bf16.mxu0 0
    %280 = vmatpush1.bf16.msra.mxu0 %v161
    %281 = vmatprep.subr.bf16.mxu0 0
    %282 = vmatpush1.bf16.msra.mxu0 %v162
    %283 = vmatprep.subr.bf16.mxu0 0
    %284 = vmatpush1.bf16.msra.mxu0 %v163
    %285 = vmatprep.subr.bf16.mxu0 0
    %286 = vmatpush1.bf16.msra.mxu0 %v164
    %287 = vmatprep.subr.bf16.mxu0 0
    %288 = vmatpush1.bf16.msra.mxu0 0
    %289 = vmatprep.subr.bf16.mxu0 0
    %290 = vmatpush1.bf16.msra.mxu0 0
    %291 = vmatprep.subr.bf16.mxu0 0
    %292 = vmatpush1.bf16.msra.mxu0 0
    %293 = vmatprep.subr.bf16.mxu0 0
    %294 = vmatpush1.bf16.msra.mxu0 0
    %295 = vmatprep.subr.bf16.mxu0 0
    %296 = vmatpush1.bf16.msra.mxu0 0
    %297 = vmatprep.subr.bf16.mxu0 0
    %298 = vmatpush1.bf16.msra.mxu0 0
    %299 = vmatprep.subr.bf16.mxu0 0
    %300 = vmatpush1.bf16.msra.mxu0 0
    %301 = vmatprep.subr.bf16.mxu0 0
    %302 = vmatpush1.bf16.msra.mxu0 0
    %303 = vmatprep.mubr.bf16.mxu0 0
    %304 = vmatmul.mubr.bf16.gmra.mrb[0].mxu0 %v270
    %v305 = vpop.f32.mrb[0].mxu0
    %v306 = vadd.f32 %v123, %v305
    %v307 = vpop.f32.mrb[0].mxu0
    %v308 = vpop.f32.mrb[0].mxu0
    %v309 = vpop.f32.mrb[0].mxu0
    %310 = vdwg.mxu0
    %v311 = vtanh.pop %v306
    %v312 = vpack.c.bf16 %v311, %v311
    %s313 = scalar_lea.vmem %s5, 32
    %v314 = vld [vmem:[%s313] sm:$0xf]
    %v315 = vld [vmem:[%s313 + $0x4] sm:$0xf]
    %v316 = vld [vmem:[%s313 + $0x8] sm:$0xf]
    %v317 = vld [vmem:[%s313 + $0xc] sm:$0xf]
    %v318 = vld [vmem:[%s313 + $0x10] sm:$0xf]
    %v319 = vld [vmem:[%s313 + $0x14] sm:$0xf]
    %v320 = vld [vmem:[%s313 + $0x18] sm:$0xf]
    %v321 = vld [vmem:[%s313 + $0x1c] sm:$0xf]
    %v330 = vunpack.c.l.b16 %v314
    %v331 = vunpack.c.l.b16 %v315
    %v332 = vunpack.c.l.b16 %v316
    %v333 = vunpack.c.l.b16 %v317
    %v334 = vunpack.c.l.b16 %v318
    %v335 = vunpack.c.l.b16 %v319
    %v336 = vunpack.c.l.b16 %v320
    %v337 = vunpack.c.l.b16 %v321
    %v338 = vpack.c.b16 %v331, %v330
    %v339 = vpack.c.b16 %v333, %v332
    %v340 = vpack.c.b16 %v335, %v334
    %v341 = vpack.c.b16 %v337, %v336
    %vm346 = vcmask 523264
    %v348 = vsel %vm346, %v312, 0
    %350 = vmatprep.subr.bf16.mxu0 0
    %351 = vmatpush1.bf16.msra.mxu0 %v338
    %352 = vmatprep.subr.bf16.mxu0 0
    %353 = vmatpush1.bf16.msra.mxu0 %v339
    %354 = vmatprep.subr.bf16.mxu0 0
    %355 = vmatpush1.bf16.msra.mxu0 %v340
    %356 = vmatprep.subr.bf16.mxu0 0
    %357 = vmatpush1.bf16.msra.mxu0 %v341
    %358 = vmatprep.subr.bf16.mxu0 0
    %359 = vmatpush1.bf16.msra.mxu0 0
    %360 = vmatprep.subr.bf16.mxu0 0
    %361 = vmatpush1.bf16.msra.mxu0 0
    %362 = vmatprep.subr.bf16.mxu0 0
    %363 = vmatpush1.bf16.msra.mxu0 0
    %364 = vmatprep.subr.bf16.mxu0 0
    %365 = vmatpush1.bf16.msra.mxu0 0
    %366 = vmatprep.subr.bf16.mxu0 0
    %367 = vmatpush1.bf16.msra.mxu0 0
    %368 = vmatprep.subr.bf16.mxu0 0
    %369 = vmatpush1.bf16.msra.mxu0 0
    %370 = vmatprep.subr.bf16.mxu0 0
    %371 = vmatpush1.bf16.msra.mxu0 0
    %372 = vmatprep.subr.bf16.mxu0 0
    %373 = vmatpush1.bf16.msra.mxu0 0
    %374 = vmatprep.subr.bf16.mxu0 0
    %375 = vmatpush1.bf16.msra.mxu0 0
    %376 = vmatprep.subr.bf16.mxu0 0
    %377 = vmatpush1.bf16.msra.mxu0 0
    %378 = vmatprep.subr.bf16.mxu0 0
    %379 = vmatpush1.bf16.msra.mxu0 0
    %380 = vmatprep.subr.bf16.mxu0 0
    %381 = vmatpush1.bf16.msra.mxu0 0
    %382 = vmatprep.mubr.bf16.mxu0 0
    %383 = vmatmul.mubr.bf16.gmra.mrb[0].mxu0 %v348
    %v384 = vpop.f32.mrb[0].mxu0
    %v385 = vadd.f32 0.0, %v384
    %v386 = vpop.f32.mrb[0].mxu0
    %v387 = vpop.f32.mrb[0].mxu0
    %v388 = vpop.f32.mrb[0].mxu0
    %389 = vdwg.mxu0
    %v398 = vunpack.c.l.b16 %v215
    %v399 = vunpack.c.l.b16 %v216
    %v400 = vunpack.c.l.b16 %v217
    %v401 = vunpack.c.l.b16 %v218
    %v402 = vunpack.c.l.b16 %v219
    %v403 = vunpack.c.l.b16 %v220
    %v404 = vunpack.c.l.b16 %v221
    %v405 = vunpack.c.l.b16 %v222
    %v406 = vpack.c.b16 %v399, %v398
    %v407 = vpack.c.b16 %v401, %v400
    %v408 = vpack.c.b16 %v403, %v402
    %v409 = vpack.c.b16 %v405, %v404
    %v415 = vsel %vm346, %v214, 0
    %417 = vmatprep.subr.bf16.mxu0 0
    %418 = vmatpush1.bf16.msra.mxu0 %v406
    %419 = vmatprep.subr.bf16.mxu0 0
    %420 = vmatpush1.bf16.msra.mxu0 %v407
    %421 = vmatprep.subr.bf16.mxu0 0
    %422 = vmatpush1.bf16.msra.mxu0 %v408
    %423 = vmatprep.subr.bf16.mxu0 0
    %424 = vmatpush1.bf16.msra.mxu0 %v409
    %425 = vmatprep.subr.bf16.mxu0 0
    %426 = vmatpush1.bf16.msra.mxu0 0
    %427 = vmatprep.subr.bf16.mxu0 0
    %428 = vmatpush1.bf16.msra.mxu0 0
    %429 = vmatprep.subr.bf16.mxu0 0
    %430 = vmatpush1.bf16.msra.mxu0 0
    %431 = vmatprep.subr.bf16.mxu0 0
    %432 = vmatpush1.bf16.msra.mxu0 0
    %433 = vmatprep.subr.bf16.mxu0 0
    %434 = vmatpush1.bf16.msra.mxu0 0
    %435 = vmatprep.subr.bf16.mxu0 0
    %436 = vmatpush1.bf16.msra.mxu0 0
    %437 = vmatprep.subr.bf16.mxu0 0
    %438 = vmatpush1.bf16.msra.mxu0 0
    %439 = vmatprep.subr.bf16.mxu0 0
    %440 = vmatpush1.bf16.msra.mxu0 0
    %441 = vmatprep.subr.bf16.mxu0 0
    %442 = vmatpush1.bf16.msra.mxu0 0
    %443 = vmatprep.subr.bf16.mxu0 0
    %444 = vmatpush1.bf16.msra.mxu0 0
    %445 = vmatprep.subr.bf16.mxu0 0
    %446 = vmatpush1.bf16.msra.mxu0 0
    %447 = vmatprep.subr.bf16.mxu0 0
    %448 = vmatpush1.bf16.msra.mxu0 0
    %449 = vmatprep.mubr.bf16.mxu0 0
    %450 = vmatmul.mubr.bf16.gmra.mrb[0].mxu0 %v415
    %v451 = vpop.f32.mrb[0].mxu0
    %v452 = vadd.f32 %v385, %v451
    %v453 = vpop.f32.mrb[0].mxu0
    %v454 = vpop.f32.mrb[0].mxu0
    %v455 = vpop.f32.mrb[0].mxu0
    %456 = vdwg.mxu0
    %457 = vrot.lane.b32.xlu0 %v51, 72
    %v458 = vpop.permute.xlu0 %457
    %v460 = vsel %vm69, %v458, 0
    %462 = vmatprep.subr.bf16.mxu0 0
    %463 = vmatpush1.bf16.msra.mxu0 %v66
    %464 = vmatprep.subr.bf16.mxu0 0
    %465 = vmatpush1.bf16.msra.mxu0 %v75
    %466 = vmatprep.subr.bf16.mxu0 0
    %467 = vmatpush1.bf16.msra.mxu0 0
    %468 = vmatprep.subr.bf16.mxu0 0
    %469 = vmatpush1.bf16.msra.mxu0 0
    %470 = vmatprep.subr.bf16.mxu0 0
    %471 = vmatpush1.bf16.msra.mxu0 0
    %472 = vmatprep.subr.bf16.mxu0 0
    %473 = vmatpush1.bf16.msra.mxu0 0
    %474 = vmatprep.subr.bf16.mxu0 0
    %475 = vmatpush1.bf16.msra.mxu0 0
    %476 = vmatprep.subr.bf16.mxu0 0
    %477 = vmatpush1.bf16.msra.mxu0 0
    %478 = vmatprep.subr.bf16.mxu0 0
    %479 = vmatpush1.bf16.msra.mxu0 0
    %480 = vmatprep.subr.bf16.mxu0 0
    %481 = vmatpush1.bf16.msra.mxu0 0
    %482 = vmatprep.subr.bf16.mxu0 0
    %483 = vmatpush1.bf16.msra.mxu0 0
    %484 = vmatprep.subr.bf16.mxu0 0
    %485 = vmatpush1.bf16.msra.mxu0 0
    %486 = vmatprep.subr.bf16.mxu0 0
    %487 = vmatpush1.bf16.msra.mxu0 0
    %488 = vmatprep.subr.bf16.mxu0 0
    %489 = vmatpush1.bf16.msra.mxu0 0
    %490 = vmatprep.subr.bf16.mxu0 0
    %491 = vmatpush1.bf16.msra.mxu0 0
    %492 = vmatprep.subr.bf16.mxu0 0
    %493 = vmatpush1.bf16.msra.mxu0 0
    %494 = vmatprep.mubr.bf16.mxu0 0
    %495 = vmatmul.mubr.bf16.gmra.mrb[0].mxu0 %v460
    %v496 = vpop.f32.mrb[0].mxu0
    %v497 = vadd.f32 %v56, %v496
    %v498 = vpop.f32.mrb[0].mxu0
    %v499 = vpop.f32.mrb[0].mxu0
    %v500 = vpop.f32.mrb[0].mxu0
    %501 = vdwg.mxu0
    %v502 = vmax.f32 %v497, 0.0
    %v503 = vpack.c.bf16 %v502, %v502
    %504 = vmatprep.subr.bf16.mxu0 0
    %505 = vmatpush1.bf16.msra.mxu0 %v157
    %506 = vmatprep.subr.bf16.mxu0 0
    %507 = vmatpush1.bf16.msra.mxu0 %v158
    %508 = vmatprep.subr.bf16.mxu0 0
    %509 = vmatpush1.bf16.msra.mxu0 %v159
    %510 = vmatprep.subr.bf16.mxu0 0
    %511 = vmatpush1.bf16.msra.mxu0 %v160
    %512 = vmatprep.subr.bf16.mxu0 0
    %513 = vmatpush1.bf16.msra.mxu0 %v161
    %514 = vmatprep.subr.bf16.mxu0 0
    %515 = vmatpush1.bf16.msra.mxu0 %v162
    %516 = vmatprep.subr.bf16.mxu0 0
    %517 = vmatpush1.bf16.msra.mxu0 %v163
    %518 = vmatprep.subr.bf16.mxu0 0
    %519 = vmatpush1.bf16.msra.mxu0 %v164
    %520 = vmatprep.subr.bf16.mxu0 0
    %521 = vmatpush1.bf16.msra.mxu0 0
    %522 = vmatprep.subr.bf16.mxu0 0
    %523 = vmatpush1.bf16.msra.mxu0 0
    %524 = vmatprep.subr.bf16.mxu0 0
    %525 = vmatpush1.bf16.msra.mxu0 0
    %526 = vmatprep.subr.bf16.mxu0 0
    %527 = vmatpush1.bf16.msra.mxu0 0
    %528 = vmatprep.subr.bf16.mxu0 0
    %529 = vmatpush1.bf16.msra.mxu0 0
    %530 = vmatprep.subr.bf16.mxu0 0
    %531 = vmatpush1.bf16.msra.mxu0 0
    %532 = vmatprep.subr.bf16.mxu0 0
    %533 = vmatpush1.bf16.msra.mxu0 0
    %534 = vmatprep.subr.bf16.mxu0 0
    %535 = vmatpush1.bf16.msra.mxu0 0
    %536 = vmatprep.mubr.bf16.mxu0 0
    %537 = vmatmul.mubr.bf16.gmra.mrb[0].mxu0 %v503
    %v538 = vpop.f32.mrb[0].mxu0
    %v539 = vadd.f32 %v123, %v538
    %v540 = vpop.f32.mrb[0].mxu0
    %v541 = vpop.f32.mrb[0].mxu0
    %v542 = vpop.f32.mrb[0].mxu0
    %543 = vdwg.mxu0
    %v544 = vtanh.pop %v539
    %v545 = vpack.c.bf16 %v544, %v544
    %s546 = scalar_lea.vmem %s5, 64
    %v547 = vld [vmem:[%s546] sm:$0xf]
    %v548 = vld [vmem:[%s546 + $0x4] sm:$0xf]
    %v549 = vld [vmem:[%s546 + $0x8] sm:$0xf]
    %v550 = vld [vmem:[%s546 + $0xc] sm:$0xf]
    %v551 = vld [vmem:[%s546 + $0x10] sm:$0xf]
    %v552 = vld [vmem:[%s546 + $0x14] sm:$0xf]
    %v553 = vld [vmem:[%s546 + $0x18] sm:$0xf]
    %v554 = vld [vmem:[%s546 + $0x1c] sm:$0xf]
    %v563 = vunpack.c.l.b16 %v547
    %v564 = vunpack.c.l.b16 %v548
    %v565 = vunpack.c.l.b16 %v549
    %v566 = vunpack.c.l.b16 %v550
    %v567 = vunpack.c.l.b16 %v551
    %v568 = vunpack.c.l.b16 %v552
    %v569 = vunpack.c.l.b16 %v553
    %v570 = vunpack.c.l.b16 %v554
    %v571 = vpack.c.b16 %v564, %v563
    %v572 = vpack.c.b16 %v566, %v565
    %v573 = vpack.c.b16 %v568, %v567
    %v574 = vpack.c.b16 %v570, %v569
    %v580 = vsel %vm346, %v545, 0
    %582 = vmatprep.subr.bf16.mxu0 0
    %583 = vmatpush1.bf16.msra.mxu0 %v571
    %584 = vmatprep.subr.bf16.mxu0 0
    %585 = vmatpush1.bf16.msra.mxu0 %v572
    %586 = vmatprep.subr.bf16.mxu0 0
    %587 = vmatpush1.bf16.msra.mxu0 %v573
    %588 = vmatprep.subr.bf16.mxu0 0
    %589 = vmatpush1.bf16.msra.mxu0 %v574
    %590 = vmatprep.subr.bf16.mxu0 0
    %591 = vmatpush1.bf16.msra.mxu0 0
    %592 = vmatprep.subr.bf16.mxu0 0
    %593 = vmatpush1.bf16.msra.mxu0 0
    %594 = vmatprep.subr.bf16.mxu0 0
    %595 = vmatpush1.bf16.msra.mxu0 0
    %596 = vmatprep.subr.bf16.mxu0 0
    %597 = vmatpush1.bf16.msra.mxu0 0
    %598 = vmatprep.subr.bf16.mxu0 0
    %599 = vmatpush1.bf16.msra.mxu0 0
    %600 = vmatprep.subr.bf16.mxu0 0
    %601 = vmatpush1.bf16.msra.mxu0 0
    %602 = vmatprep.subr.bf16.mxu0 0
    %603 = vmatpush1.bf16.msra.mxu0 0
    %604 = vmatprep.subr.bf16.mxu0 0
    %605 = vmatpush1.bf16.msra.mxu0 0
    %606 = vmatprep.subr.bf16.mxu0 0
    %607 = vmatpush1.bf16.msra.mxu0 0
    %608 = vmatprep.subr.bf16.mxu0 0
    %609 = vmatpush1.bf16.msra.mxu0 0
    %610 = vmatprep.subr.bf16.mxu0 0
    %611 = vmatpush1.bf16.msra.mxu0 0
    %612 = vmatprep.subr.bf16.mxu0 0
    %613 = vmatpush1.bf16.msra.mxu0 0
    %614 = vmatprep.mubr.bf16.mxu0 0
    %615 = vmatmul.mubr.bf16.gmra.mrb[0].mxu0 %v580
    %v616 = vpop.f32.mrb[0].mxu0
    %v617 = vadd.f32 0.0, %v616
    %v618 = vpop.f32.mrb[0].mxu0
    %v619 = vpop.f32.mrb[0].mxu0
    %v620 = vpop.f32.mrb[0].mxu0
    %621 = vdwg.mxu0
    %v622 = vadd.f32 %v452, %v617
    %623 = vrot.lane.b32.xlu0 %v51, 44
    %v624 = vpop.permute.xlu0 %623
    %v626 = vsel %vm69, %v624, 0
    %628 = vmatprep.subr.bf16.mxu0 0
    %629 = vmatpush1.bf16.msra.mxu0 %v66
    %630 = vmatprep.subr.bf16.mxu0 0
    %631 = vmatpush1.bf16.msra.mxu0 %v75
    %632 = vmatprep.subr.bf16.mxu0 0
    %633 = vmatpush1.bf16.msra.mxu0 0
    %634 = vmatprep.subr.bf16.mxu0 0
    %635 = vmatpush1.bf16.msra.mxu0 0
    %636 = vmatprep.subr.bf16.mxu0 0
    %637 = vmatpush1.bf16.msra.mxu0 0
    %638 = vmatprep.subr.bf16.mxu0 0
    %639 = vmatpush1.bf16.msra.mxu0 0
    %640 = vmatprep.subr.bf16.mxu0 0
    %641 = vmatpush1.bf16.msra.mxu0 0
    %642 = vmatprep.subr.bf16.mxu0 0
    %643 = vmatpush1.bf16.msra.mxu0 0
    %644 = vmatprep.subr.bf16.mxu0 0
    %645 = vmatpush1.bf16.msra.mxu0 0
    %646 = vmatprep.subr.bf16.mxu0 0
    %647 = vmatpush1.bf16.msra.mxu0 0
    %648 = vmatprep.subr.bf16.mxu0 0
    %649 = vmatpush1.bf16.msra.mxu0 0
    %650 = vmatprep.subr.bf16.mxu0 0
    %651 = vmatpush1.bf16.msra.mxu0 0
    %652 = vmatprep.subr.bf16.mxu0 0
    %653 = vmatpush1.bf16.msra.mxu0 0
    %654 = vmatprep.subr.bf16.mxu0 0
    %655 = vmatpush1.bf16.msra.mxu0 0
    %656 = vmatprep.subr.bf16.mxu0 0
    %657 = vmatpush1.bf16.msra.mxu0 0
    %658 = vmatprep.subr.bf16.mxu0 0
    %659 = vmatpush1.bf16.msra.mxu0 0
    %660 = vmatprep.mubr.bf16.mxu0 0
    %661 = vmatmul.mubr.bf16.gmra.mrb[0].mxu0 %v626
    %v662 = vpop.f32.mrb[0].mxu0
    %v663 = vadd.f32 %v56, %v662
    %v664 = vpop.f32.mrb[0].mxu0
    %v665 = vpop.f32.mrb[0].mxu0
    %v666 = vpop.f32.mrb[0].mxu0
    %667 = vdwg.mxu0
    %v668 = vmax.f32 %v663, 0.0
    %v669 = vpack.c.bf16 %v668, %v668
    %670 = vmatprep.subr.bf16.mxu0 0
    %671 = vmatpush1.bf16.msra.mxu0 %v157
    %672 = vmatprep.subr.bf16.mxu0 0
    %673 = vmatpush1.bf16.msra.mxu0 %v158
    %674 = vmatprep.subr.bf16.mxu0 0
    %675 = vmatpush1.bf16.msra.mxu0 %v159
    %676 = vmatprep.subr.bf16.mxu0 0
    %677 = vmatpush1.bf16.msra.mxu0 %v160
    %678 = vmatprep.subr.bf16.mxu0 0
    %679 = vmatpush1.bf16.msra.mxu0 %v161
    %680 = vmatprep.subr.bf16.mxu0 0
    %681 = vmatpush1.bf16.msra.mxu0 %v162
    %682 = vmatprep.subr.bf16.mxu0 0
    %683 = vmatpush1.bf16.msra.mxu0 %v163
    %684 = vmatprep.subr.bf16.mxu0 0
    %685 = vmatpush1.bf16.msra.mxu0 %v164
    %686 = vmatprep.subr.bf16.mxu0 0
    %687 = vmatpush1.bf16.msra.mxu0 0
    %688 = vmatprep.subr.bf16.mxu0 0
    %689 = vmatpush1.bf16.msra.mxu0 0
    %690 = vmatprep.subr.bf16.mxu0 0
    %691 = vmatpush1.bf16.msra.mxu0 0
    %692 = vmatprep.subr.bf16.mxu0 0
    %693 = vmatpush1.bf16.msra.mxu0 0
    %694 = vmatprep.subr.bf16.mxu0 0
    %695 = vmatpush1.bf16.msra.mxu0 0
    %696 = vmatprep.subr.bf16.mxu0 0
    %697 = vmatpush1.bf16.msra.mxu0 0
    %698 = vmatprep.subr.bf16.mxu0 0
    %699 = vmatpush1.bf16.msra.mxu0 0
    %700 = vmatprep.subr.bf16.mxu0 0
    %701 = vmatpush1.bf16.msra.mxu0 0
    %702 = vmatprep.mubr.bf16.mxu0 0
    %703 = vmatmul.mubr.bf16.gmra.mrb[0].mxu0 %v669
    %v704 = vpop.f32.mrb[0].mxu0
    %v705 = vadd.f32 %v123, %v704
    %v706 = vpop.f32.mrb[0].mxu0
    %v707 = vpop.f32.mrb[0].mxu0
    %v708 = vpop.f32.mrb[0].mxu0
    %709 = vdwg.mxu0
    %v710 = vtanh.pop %v705
    %v711 = vpack.c.bf16 %v710, %v710
    %s712 = scalar_lea.vmem %s5, 96
    %v713 = vld [vmem:[%s712] sm:$0xf]
    %v714 = vld [vmem:[%s712 + $0x4] sm:$0xf]
    %v715 = vld [vmem:[%s712 + $0x8] sm:$0xf]
    %v716 = vld [vmem:[%s712 + $0xc] sm:$0xf]
    %v717 = vld [vmem:[%s712 + $0x10] sm:$0xf]
    %v718 = vld [vmem:[%s712 + $0x14] sm:$0xf]
    %v719 = vld [vmem:[%s712 + $0x18] sm:$0xf]
    %v720 = vld [vmem:[%s712 + $0x1c] sm:$0xf]
    %v729 = vunpack.c.l.b16 %v713
    %v730 = vunpack.c.l.b16 %v714
    %v731 = vunpack.c.l.b16 %v715
    %v732 = vunpack.c.l.b16 %v716
    %v733 = vunpack.c.l.b16 %v717
    %v734 = vunpack.c.l.b16 %v718
    %v735 = vunpack.c.l.b16 %v719
    %v736 = vunpack.c.l.b16 %v720
    %v737 = vpack.c.b16 %v730, %v729
    %v738 = vpack.c.b16 %v732, %v731
    %v739 = vpack.c.b16 %v734, %v733
    %v740 = vpack.c.b16 %v736, %v735
    %v746 = vsel %vm346, %v711, 0
    %748 = vmatprep.subr.bf16.mxu0 0
    %749 = vmatpush1.bf16.msra.mxu0 %v737
    %750 = vmatprep.subr.bf16.mxu0 0
    %751 = vmatpush1.bf16.msra.mxu0 %v738
    %752 = vmatprep.subr.bf16.mxu0 0
    %753 = vmatpush1.bf16.msra.mxu0 %v739
    %754 = vmatprep.subr.bf16.mxu0 0
    %755 = vmatpush1.bf16.msra.mxu0 %v740
    %756 = vmatprep.subr.bf16.mxu0 0
    %757 = vmatpush1.bf16.msra.mxu0 0
    %758 = vmatprep.subr.bf16.mxu0 0
    %759 = vmatpush1.bf16.msra.mxu0 0
    %760 = vmatprep.subr.bf16.mxu0 0
    %761 = vmatpush1.bf16.msra.mxu0 0
    %762 = vmatprep.subr.bf16.mxu0 0
    %763 = vmatpush1.bf16.msra.mxu0 0
    %764 = vmatprep.subr.bf16.mxu0 0
    %765 = vmatpush1.bf16.msra.mxu0 0
    %766 = vmatprep.subr.bf16.mxu0 0
    %767 = vmatpush1.bf16.msra.mxu0 0
    %768 = vmatprep.subr.bf16.mxu0 0
    %769 = vmatpush1.bf16.msra.mxu0 0
    %770 = vmatprep.subr.bf16.mxu0 0
    %771 = vmatpush1.bf16.msra.mxu0 0
    %772 = vmatprep.subr.bf16.mxu0 0
    %773 = vmatpush1.bf16.msra.mxu0 0
    %774 = vmatprep.subr.bf16.mxu0 0
    %775 = vmatpush1.bf16.msra.mxu0 0
    %776 = vmatprep.subr.bf16.mxu0 0
    %777 = vmatpush1.bf16.msra.mxu0 0
    %778 = vmatprep.subr.bf16.mxu0 0
    %779 = vmatpush1.bf16.msra.mxu0 0
    %780 = vmatprep.mubr.bf16.mxu0 0
    %781 = vmatmul.mubr.bf16.gmra.mrb[0].mxu0 %v746
    %v782 = vpop.f32.mrb[0].mxu0
    %v783 = vadd.f32 0.0, %v782
    %v784 = vpop.f32.mrb[0].mxu0
    %v785 = vpop.f32.mrb[0].mxu0
    %v786 = vpop.f32.mrb[0].mxu0
    %787 = vdwg.mxu0
    %v788 = vadd.f32 %v622, %v783
    %v789 = vld [vmem:[%s0] sm:$0xff]
    %v790 = vld [vmem:[%s0 + $0x8] sm:$0xff]
    %v791 = vpack.c.bf16 %v789, %v789
    %v792 = vpack.c.bf16 %v790, %v790
    %795 = vrot.lane.b32.xlu0 %v791, 16
    %v796 = vpop.permute.xlu0 %795
    %797 = vrot.lane.b32.xlu0 %v792, 16
    %v798 = vpop.permute.xlu0 %797
    %vm799 = vcmask 130048
    %v800 = vsel %vm799, %v796, %v798
    %v802 = vsel %vm69, %v800, 0
    %804 = vmatprep.subr.bf16.mxu0 0
    %805 = vmatpush1.bf16.msra.mxu0 %v66
    %806 = vmatprep.subr.bf16.mxu0 0
    %807 = vmatpush1.bf16.msra.mxu0 %v75
    %808 = vmatprep.subr.bf16.mxu0 0
    %809 = vmatpush1.bf16.msra.mxu0 0
    %810 = vmatprep.subr.bf16.mxu0 0
    %811 = vmatpush1.bf16.msra.mxu0 0
    %812 = vmatprep.subr.bf16.mxu0 0
    %813 = vmatpush1.bf16.msra.mxu0 0
    %814 = vmatprep.subr.bf16.mxu0 0
    %815 = vmatpush1.bf16.msra.mxu0 0
    %816 = vmatprep.subr.bf16.mxu0 0
    %817 = vmatpush1.bf16.msra.mxu0 0
    %818 = vmatprep.subr.bf16.mxu0 0
    %819 = vmatpush1.bf16.msra.mxu0 0
    %820 = vmatprep.subr.bf16.mxu0 0
    %821 = vmatpush1.bf16.msra.mxu0 0
    %822 = vmatprep.subr.bf16.mxu0 0
    %823 = vmatpush1.bf16.msra.mxu0 0
    %824 = vmatprep.subr.bf16.mxu0 0
    %825 = vmatpush1.bf16.msra.mxu0 0
    %826 = vmatprep.subr.bf16.mxu0 0
    %827 = vmatpush1.bf16.msra.mxu0 0
    %828 = vmatprep.subr.bf16.mxu0 0
    %829 = vmatpush1.bf16.msra.mxu0 0
    %830 = vmatprep.subr.bf16.mxu0 0
    %831 = vmatpush1.bf16.msra.mxu0 0
    %832 = vmatprep.subr.bf16.mxu0 0
    %833 = vmatpush1.bf16.msra.mxu0 0
    %834 = vmatprep.subr.bf16.mxu0 0
    %835 = vmatpush1.bf16.msra.mxu0 0
    %836 = vmatprep.mubr.bf16.mxu0 0
    %837 = vmatmul.mubr.bf16.gmra.mrb[0].mxu0 %v802
    %v838 = vpop.f32.mrb[0].mxu0
    %v839 = vadd.f32 %v56, %v838
    %v840 = vpop.f32.mrb[0].mxu0
    %v841 = vpop.f32.mrb[0].mxu0
    %v842 = vpop.f32.mrb[0].mxu0
    %843 = vdwg.mxu0
    %v844 = vmax.f32 %v839, 0.0
    %v845 = vpack.c.bf16 %v844, %v844
    %846 = vmatprep.subr.bf16.mxu0 0
    %847 = vmatpush1.bf16.msra.mxu0 %v157
    %848 = vmatprep.subr.bf16.mxu0 0
    %849 = vmatpush1.bf16.msra.mxu0 %v158
    %850 = vmatprep.subr.bf16.mxu0 0
    %851 = vmatpush1.bf16.msra.mxu0 %v159
    %852 = vmatprep.subr.bf16.mxu0 0
    %853 = vmatpush1.bf16.msra.mxu0 %v160
    %854 = vmatprep.subr.bf16.mxu0 0
    %855 = vmatpush1.bf16.msra.mxu0 %v161
    %856 = vmatprep.subr.bf16.mxu0 0
    %857 = vmatpush1.bf16.msra.mxu0 %v162
    %858 = vmatprep.subr.bf16.mxu0 0
    %859 = vmatpush1.bf16.msra.mxu0 %v163
    %860 = vmatprep.subr.bf16.mxu0 0
    %861 = vmatpush1.bf16.msra.mxu0 %v164
    %862 = vmatprep.subr.bf16.mxu0 0
    %863 = vmatpush1.bf16.msra.mxu0 0
    %864 = vmatprep.subr.bf16.mxu0 0
    %865 = vmatpush1.bf16.msra.mxu0 0
    %866 = vmatprep.subr.bf16.mxu0 0
    %867 = vmatpush1.bf16.msra.mxu0 0
    %868 = vmatprep.subr.bf16.mxu0 0
    %869 = vmatpush1.bf16.msra.mxu0 0
    %870 = vmatprep.subr.bf16.mxu0 0
    %871 = vmatpush1.bf16.msra.mxu0 0
    %872 = vmatprep.subr.bf16.mxu0 0
    %873 = vmatpush1.bf16.msra.mxu0 0
    %874 = vmatprep.subr.bf16.mxu0 0
    %875 = vmatpush1.bf16.msra.mxu0 0
    %876 = vmatprep.subr.bf16.mxu0 0
    %877 = vmatpush1.bf16.msra.mxu0 0
    %878 = vmatprep.mubr.bf16.mxu0 0
    %879 = vmatmul.mubr.bf16.gmra.mrb[0].mxu0 %v845
    %v880 = vpop.f32.mrb[0].mxu0
    %v881 = vadd.f32 %v123, %v880
    %v882 = vpop.f32.mrb[0].mxu0
    %v883 = vpop.f32.mrb[0].mxu0
    %v884 = vpop.f32.mrb[0].mxu0
    %885 = vdwg.mxu0
    %v886 = vtanh.pop %v881
    %v887 = vpack.c.bf16 %v886, %v886
    %s888 = scalar_lea.vmem %s5, 128
    %v889 = vld [vmem:[%s888] sm:$0xf]
    %v890 = vld [vmem:[%s888 + $0x4] sm:$0xf]
    %v891 = vld [vmem:[%s888 + $0x8] sm:$0xf]
    %v892 = vld [vmem:[%s888 + $0xc] sm:$0xf]
    %v893 = vld [vmem:[%s888 + $0x10] sm:$0xf]
    %v894 = vld [vmem:[%s888 + $0x14] sm:$0xf]
    %v895 = vld [vmem:[%s888 + $0x18] sm:$0xf]
    %v896 = vld [vmem:[%s888 + $0x1c] sm:$0xf]
    %v905 = vunpack.c.l.b16 %v889
    %v906 = vunpack.c.l.b16 %v890
    %v907 = vunpack.c.l.b16 %v891
    %v908 = vunpack.c.l.b16 %v892
    %v909 = vunpack.c.l.b16 %v893
    %v910 = vunpack.c.l.b16 %v894
    %v911 = vunpack.c.l.b16 %v895
    %v912 = vunpack.c.l.b16 %v896
    %v913 = vpack.c.b16 %v906, %v905
    %v914 = vpack.c.b16 %v908, %v907
    %v915 = vpack.c.b16 %v910, %v909
    %v916 = vpack.c.b16 %v912, %v911
    %v922 = vsel %vm346, %v887, 0
    %924 = vmatprep.subr.bf16.mxu0 0
    %925 = vmatpush1.bf16.msra.mxu0 %v913
    %926 = vmatprep.subr.bf16.mxu0 0
    %927 = vmatpush1.bf16.msra.mxu0 %v914
    %928 = vmatprep.subr.bf16.mxu0 0
    %929 = vmatpush1.bf16.msra.mxu0 %v915
    %930 = vmatprep.subr.bf16.mxu0 0
    %931 = vmatpush1.bf16.msra.mxu0 %v916
    %932 = vmatprep.subr.bf16.mxu0 0
    %933 = vmatpush1.bf16.msra.mxu0 0
    %934 = vmatprep.subr.bf16.mxu0 0
    %935 = vmatpush1.bf16.msra.mxu0 0
    %936 = vmatprep.subr.bf16.mxu0 0
    %937 = vmatpush1.bf16.msra.mxu0 0
    %938 = vmatprep.subr.bf16.mxu0 0
    %939 = vmatpush1.bf16.msra.mxu0 0
    %940 = vmatprep.subr.bf16.mxu0 0
    %941 = vmatpush1.bf16.msra.mxu0 0
    %942 = vmatprep.subr.bf16.mxu0 0
    %943 = vmatpush1.bf16.msra.mxu0 0
    %944 = vmatprep.subr.bf16.mxu0 0
    %945 = vmatpush1.bf16.msra.mxu0 0
    %946 = vmatprep.subr.bf16.mxu0 0
    %947 = vmatpush1.bf16.msra.mxu0 0
    %948 = vmatprep.subr.bf16.mxu0 0
    %949 = vmatpush1.bf16.msra.mxu0 0
    %950 = vmatprep.subr.bf16.mxu0 0
    %951 = vmatpush1.bf16.msra.mxu0 0
    %952 = vmatprep.subr.bf16.mxu0 0
    %953 = vmatpush1.bf16.msra.mxu0 0
    %954 = vmatprep.subr.bf16.mxu0 0
    %955 = vmatpush1.bf16.msra.mxu0 0
    %956 = vmatprep.mubr.bf16.mxu0 0
    %957 = vmatmul.mubr.bf16.gmra.mrb[0].mxu0 %v922
    %v958 = vpop.f32.mrb[0].mxu0
    %v959 = vadd.f32 0.0, %v958
    %v960 = vpop.f32.mrb[0].mxu0
    %v961 = vpop.f32.mrb[0].mxu0
    %v962 = vpop.f32.mrb[0].mxu0
    %963 = vdwg.mxu0
    %v964 = vadd.f32 %v788, %v959
    %965 = vrot.lane.b32.xlu0 %v792, 116
    %v966 = vpop.permute.xlu0 %965
    %v968 = vsel %vm69, %v966, 0
    %970 = vmatprep.subr.bf16.mxu0 0
    %971 = vmatpush1.bf16.msra.mxu0 %v66
    %972 = vmatprep.subr.bf16.mxu0 0
    %973 = vmatpush1.bf16.msra.mxu0 %v75
    %974 = vmatprep.subr.bf16.mxu0 0
    %975 = vmatpush1.bf16.msra.mxu0 0
    %976 = vmatprep.subr.bf16.mxu0 0
    %977 = vmatpush1.bf16.msra.mxu0 0
    %978 = vmatprep.subr.bf16.mxu0 0
    %979 = vmatpush1.bf16.msra.mxu0 0
    %980 = vmatprep.subr.bf16.mxu0 0
    %981 = vmatpush1.bf16.msra.mxu0 0
    %982 = vmatprep.subr.bf16.mxu0 0
    %983 = vmatpush1.bf16.msra.mxu0 0
    %984 = vmatprep.subr.bf16.mxu0 0
    %985 = vmatpush1.bf16.msra.mxu0 0
    %986 = vmatprep.subr.bf16.mxu0 0
    %987 = vmatpush1.bf16.msra.mxu0 0
    %988 = vmatprep.subr.bf16.mxu0 0
    %989 = vmatpush1.bf16.msra.mxu0 0
    %990 = vmatprep.subr.bf16.mxu0 0
    %991 = vmatpush1.bf16.msra.mxu0 0
    %992 = vmatprep.subr.bf16.mxu0 0
    %993 = vmatpush1.bf16.msra.mxu0 0
    %994 = vmatprep.subr.bf16.mxu0 0
    %995 = vmatpush1.bf16.msra.mxu0 0
    %996 = vmatprep.subr.bf16.mxu0 0
    %997 = vmatpush1.bf16.msra.mxu0 0
    %998 = vmatprep.subr.bf16.mxu0 0
    %999 = vmatpush1.bf16.msra.mxu0 0
    %1000 = vmatprep.subr.bf16.mxu0 0
    %1001 = vmatpush1.bf16.msra.mxu0 0
    %1002 = vmatprep.mubr.bf16.mxu0 0
    %1003 = vmatmul.mubr.bf16.gmra.mrb[0].mxu0 %v968
    %v1004 = vpop.f32.mrb[0].mxu0
    %v1005 = vadd.f32 %v56, %v1004
    %v1006 = vpop.f32.mrb[0].mxu0
    %v1007 = vpop.f32.mrb[0].mxu0
    %v1008 = vpop.f32.mrb[0].mxu0
    %1009 = vdwg.mxu0
    %v1010 = vmax.f32 %v1005, 0.0
    %v1011 = vpack.c.bf16 %v1010, %v1010
    %1012 = vmatprep.subr.bf16.mxu0 0
    %1013 = vmatpush1.bf16.msra.mxu0 %v157
    %1014 = vmatprep.subr.bf16.mxu0 0
    %1015 = vmatpush1.bf16.msra.mxu0 %v158
    %1016 = vmatprep.subr.bf16.mxu0 0
    %1017 = vmatpush1.bf16.msra.mxu0 %v159
    %1018 = vmatprep.subr.bf16.mxu0 0
    %1019 = vmatpush1.bf16.msra.mxu0 %v160
    %1020 = vmatprep.subr.bf16.mxu0 0
    %1021 = vmatpush1.bf16.msra.mxu0 %v161
    %1022 = vmatprep.subr.bf16.mxu0 0
    %1023 = vmatpush1.bf16.msra.mxu0 %v162
    %1024 = vmatprep.subr.bf16.mxu0 0
    %1025 = vmatpush1.bf16.msra.mxu0 %v163
    %1026 = vmatprep.subr.bf16.mxu0 0
    %1027 = vmatpush1.bf16.msra.mxu0 %v164
    %1028 = vmatprep.subr.bf16.mxu0 0
    %1029 = vmatpush1.bf16.msra.mxu0 0
    %1030 = vmatprep.subr.bf16.mxu0 0
    %1031 = vmatpush1.bf16.msra.mxu0 0
    %1032 = vmatprep.subr.bf16.mxu0 0
    %1033 = vmatpush1.bf16.msra.mxu0 0
    %1034 = vmatprep.subr.bf16.mxu0 0
    %1035 = vmatpush1.bf16.msra.mxu0 0
    %1036 = vmatprep.subr.bf16.mxu0 0
    %1037 = vmatpush1.bf16.msra.mxu0 0
    %1038 = vmatprep.subr.bf16.mxu0 0
    %1039 = vmatpush1.bf16.msra.mxu0 0
    %1040 = vmatprep.subr.bf16.mxu0 0
    %1041 = vmatpush1.bf16.msra.mxu0 0
    %1042 = vmatprep.subr.bf16.mxu0 0
    %1043 = vmatpush1.bf16.msra.mxu0 0
    %1044 = vmatprep.mubr.bf16.mxu0 0
    %1045 = vmatmul.mubr.bf16.gmra.mrb[0].mxu0 %v1011
    %v1046 = vpop.f32.mrb[0].mxu0
    %v1047 = vadd.f32 %v123, %v1046
    %v1048 = vpop.f32.mrb[0].mxu0
    %v1049 = vpop.f32.mrb[0].mxu0
    %v1050 = vpop.f32.mrb[0].mxu0
    %1051 = vdwg.mxu0
    %v1052 = vtanh.pop %v1047
    %v1053 = vpack.c.bf16 %v1052, %v1052
    %s1054 = scalar_lea.vmem %s5, 160
    %v1055 = vld [vmem:[%s1054] sm:$0xf]
    %v1056 = vld [vmem:[%s1054 + $0x4] sm:$0xf]
    %v1057 = vld [vmem:[%s1054 + $0x8] sm:$0xf]
    %v1058 = vld [vmem:[%s1054 + $0xc] sm:$0xf]
    %v1059 = vld [vmem:[%s1054 + $0x10] sm:$0xf]
    %v1060 = vld [vmem:[%s1054 + $0x14] sm:$0xf]
    %v1061 = vld [vmem:[%s1054 + $0x18] sm:$0xf]
    %v1062 = vld [vmem:[%s1054 + $0x1c] sm:$0xf]
    %v1071 = vunpack.c.l.b16 %v1055
    %v1072 = vunpack.c.l.b16 %v1056
    %v1073 = vunpack.c.l.b16 %v1057
    %v1074 = vunpack.c.l.b16 %v1058
    %v1075 = vunpack.c.l.b16 %v1059
    %v1076 = vunpack.c.l.b16 %v1060
    %v1077 = vunpack.c.l.b16 %v1061
    %v1078 = vunpack.c.l.b16 %v1062
    %v1079 = vpack.c.b16 %v1072, %v1071
    %v1080 = vpack.c.b16 %v1074, %v1073
    %v1081 = vpack.c.b16 %v1076, %v1075
    %v1082 = vpack.c.b16 %v1078, %v1077
    %v1088 = vsel %vm346, %v1053, 0
    %1090 = vmatprep.subr.bf16.mxu0 0
    %1091 = vmatpush1.bf16.msra.mxu0 %v1079
    %1092 = vmatprep.subr.bf16.mxu0 0
    %1093 = vmatpush1.bf16.msra.mxu0 %v1080
    %1094 = vmatprep.subr.bf16.mxu0 0
    %1095 = vmatpush1.bf16.msra.mxu0 %v1081
    %1096 = vmatprep.subr.bf16.mxu0 0
    %1097 = vmatpush1.bf16.msra.mxu0 %v1082
    %1098 = vmatprep.subr.bf16.mxu0 0
    %1099 = vmatpush1.bf16.msra.mxu0 0
    %1100 = vmatprep.subr.bf16.mxu0 0
    %1101 = vmatpush1.bf16.msra.mxu0 0
    %1102 = vmatprep.subr.bf16.mxu0 0
    %1103 = vmatpush1.bf16.msra.mxu0 0
    %1104 = vmatprep.subr.bf16.mxu0 0
    %1105 = vmatpush1.bf16.msra.mxu0 0
    %1106 = vmatprep.subr.bf16.mxu0 0
    %1107 = vmatpush1.bf16.msra.mxu0 0
    %1108 = vmatprep.subr.bf16.mxu0 0
    %1109 = vmatpush1.bf16.msra.mxu0 0
    %1110 = vmatprep.subr.bf16.mxu0 0
    %1111 = vmatpush1.bf16.msra.mxu0 0
    %1112 = vmatprep.subr.bf16.mxu0 0
    %1113 = vmatpush1.bf16.msra.mxu0 0
    %1114 = vmatprep.subr.bf16.mxu0 0
    %1115 = vmatpush1.bf16.msra.mxu0 0
    %1116 = vmatprep.subr.bf16.mxu0 0
    %1117 = vmatpush1.bf16.msra.mxu0 0
    %1118 = vmatprep.subr.bf16.mxu0 0
    %1119 = vmatpush1.bf16.msra.mxu0 0
    %1120 = vmatprep.subr.bf16.mxu0 0
    %1121 = vmatpush1.bf16.msra.mxu0 0
    %1122 = vmatprep.mubr.bf16.mxu0 0
    %1123 = vmatmul.mubr.bf16.gmra.mrb[0].mxu0 %v1088
    %v1124 = vpop.f32.mrb[0].mxu0
    %v1125 = vadd.f32 0.0, %v1124
    %v1126 = vpop.f32.mrb[0].mxu0
    %v1127 = vpop.f32.mrb[0].mxu0
    %v1128 = vpop.f32.mrb[0].mxu0
    %1129 = vdwg.mxu0
    %v1130 = vadd.f32 %v964, %v1125
    %1131 = vrot.lane.b32.xlu0 %v792, 88
    %v1132 = vpop.permute.xlu0 %1131
    %v1134 = vsel %vm69, %v1132, 0
    %1136 = vmatprep.subr.bf16.mxu0 0
    %1137 = vmatpush1.bf16.msra.mxu0 %v66
    %1138 = vmatprep.subr.bf16.mxu0 0
    %1139 = vmatpush1.bf16.msra.mxu0 %v75
    %1140 = vmatprep.subr.bf16.mxu0 0
    %1141 = vmatpush1.bf16.msra.mxu0 0
    %1142 = vmatprep.subr.bf16.mxu0 0
    %1143 = vmatpush1.bf16.msra.mxu0 0
    %1144 = vmatprep.subr.bf16.mxu0 0
    %1145 = vmatpush1.bf16.msra.mxu0 0
    %1146 = vmatprep.subr.bf16.mxu0 0
    %1147 = vmatpush1.bf16.msra.mxu0 0
    %1148 = vmatprep.subr.bf16.mxu0 0
    %1149 = vmatpush1.bf16.msra.mxu0 0
    %1150 = vmatprep.subr.bf16.mxu0 0
    %1151 = vmatpush1.bf16.msra.mxu0 0
    %1152 = vmatprep.subr.bf16.mxu0 0
    %1153 = vmatpush1.bf16.msra.mxu0 0
    %1154 = vmatprep.subr.bf16.mxu0 0
    %1155 = vmatpush1.bf16.msra.mxu0 0
    %1156 = vmatprep.subr.bf16.mxu0 0
    %1157 = vmatpush1.bf16.msra.mxu0 0
    %1158 = vmatprep.subr.bf16.mxu0 0
    %1159 = vmatpush1.bf16.msra.mxu0 0
    %1160 = vmatprep.subr.bf16.mxu0 0
    %1161 = vmatpush1.bf16.msra.mxu0 0
    %1162 = vmatprep.subr.bf16.mxu0 0
    %1163 = vmatpush1.bf16.msra.mxu0 0
    %1164 = vmatprep.subr.bf16.mxu0 0
    %1165 = vmatpush1.bf16.msra.mxu0 0
    %1166 = vmatprep.subr.bf16.mxu0 0
    %1167 = vmatpush1.bf16.msra.mxu0 0
    %1168 = vmatprep.mubr.bf16.mxu0 0
    %1169 = vmatmul.mubr.bf16.gmra.mrb[0].mxu0 %v1134
    %v1170 = vpop.f32.mrb[0].mxu0
    %v1171 = vadd.f32 %v56, %v1170
    %v1172 = vpop.f32.mrb[0].mxu0
    %v1173 = vpop.f32.mrb[0].mxu0
    %v1174 = vpop.f32.mrb[0].mxu0
    %1175 = vdwg.mxu0
    %v1176 = vmax.f32 %v1171, 0.0
    %v1177 = vpack.c.bf16 %v1176, %v1176
    %1178 = vmatprep.subr.bf16.mxu0 0
    %1179 = vmatpush1.bf16.msra.mxu0 %v157
    %1180 = vmatprep.subr.bf16.mxu0 0
    %1181 = vmatpush1.bf16.msra.mxu0 %v158
    %1182 = vmatprep.subr.bf16.mxu0 0
    %1183 = vmatpush1.bf16.msra.mxu0 %v159
    %1184 = vmatprep.subr.bf16.mxu0 0
    %1185 = vmatpush1.bf16.msra.mxu0 %v160
    %1186 = vmatprep.subr.bf16.mxu0 0
    %1187 = vmatpush1.bf16.msra.mxu0 %v161
    %1188 = vmatprep.subr.bf16.mxu0 0
    %1189 = vmatpush1.bf16.msra.mxu0 %v162
    %1190 = vmatprep.subr.bf16.mxu0 0
    %1191 = vmatpush1.bf16.msra.mxu0 %v163
    %1192 = vmatprep.subr.bf16.mxu0 0
    %1193 = vmatpush1.bf16.msra.mxu0 %v164
    %1194 = vmatprep.subr.bf16.mxu0 0
    %1195 = vmatpush1.bf16.msra.mxu0 0
    %1196 = vmatprep.subr.bf16.mxu0 0
    %1197 = vmatpush1.bf16.msra.mxu0 0
    %1198 = vmatprep.subr.bf16.mxu0 0
    %1199 = vmatpush1.bf16.msra.mxu0 0
    %1200 = vmatprep.subr.bf16.mxu0 0
    %1201 = vmatpush1.bf16.msra.mxu0 0
    %1202 = vmatprep.subr.bf16.mxu0 0
    %1203 = vmatpush1.bf16.msra.mxu0 0
    %1204 = vmatprep.subr.bf16.mxu0 0
    %1205 = vmatpush1.bf16.msra.mxu0 0
    %1206 = vmatprep.subr.bf16.mxu0 0
    %1207 = vmatpush1.bf16.msra.mxu0 0
    %1208 = vmatprep.subr.bf16.mxu0 0
    %1209 = vmatpush1.bf16.msra.mxu0 0
    %1210 = vmatprep.mubr.bf16.mxu0 0
    %1211 = vmatmul.mubr.bf16.gmra.mrb[0].mxu0 %v1177
    %v1212 = vpop.f32.mrb[0].mxu0
    %v1213 = vadd.f32 %v123, %v1212
    %v1214 = vpop.f32.mrb[0].mxu0
    %v1215 = vpop.f32.mrb[0].mxu0
    %v1216 = vpop.f32.mrb[0].mxu0
    %1217 = vdwg.mxu0
    %v1218 = vtanh.pop %v1213
    %v1219 = vpack.c.bf16 %v1218, %v1218
    %s1220 = scalar_lea.vmem %s5, 192
    %v1221 = vld [vmem:[%s1220] sm:$0xf]
    %v1222 = vld [vmem:[%s1220 + $0x4] sm:$0xf]
    %v1223 = vld [vmem:[%s1220 + $0x8] sm:$0xf]
    %v1224 = vld [vmem:[%s1220 + $0xc] sm:$0xf]
    %v1225 = vld [vmem:[%s1220 + $0x10] sm:$0xf]
    %v1226 = vld [vmem:[%s1220 + $0x14] sm:$0xf]
    %v1227 = vld [vmem:[%s1220 + $0x18] sm:$0xf]
    %v1228 = vld [vmem:[%s1220 + $0x1c] sm:$0xf]
    %v1237 = vunpack.c.l.b16 %v1221
    %v1238 = vunpack.c.l.b16 %v1222
    %v1239 = vunpack.c.l.b16 %v1223
    %v1240 = vunpack.c.l.b16 %v1224
    %v1241 = vunpack.c.l.b16 %v1225
    %v1242 = vunpack.c.l.b16 %v1226
    %v1243 = vunpack.c.l.b16 %v1227
    %v1244 = vunpack.c.l.b16 %v1228
    %v1245 = vpack.c.b16 %v1238, %v1237
    %v1246 = vpack.c.b16 %v1240, %v1239
    %v1247 = vpack.c.b16 %v1242, %v1241
    %v1248 = vpack.c.b16 %v1244, %v1243
    %v1254 = vsel %vm346, %v1219, 0
    %1256 = vmatprep.subr.bf16.mxu0 0
    %1257 = vmatpush1.bf16.msra.mxu0 %v1245
    %1258 = vmatprep.subr.bf16.mxu0 0
    %1259 = vmatpush1.bf16.msra.mxu0 %v1246
    %1260 = vmatprep.subr.bf16.mxu0 0
    %1261 = vmatpush1.bf16.msra.mxu0 %v1247
    %1262 = vmatprep.subr.bf16.mxu0 0
    %1263 = vmatpush1.bf16.msra.mxu0 %v1248
    %1264 = vmatprep.subr.bf16.mxu0 0
    %1265 = vmatpush1.bf16.msra.mxu0 0
    %1266 = vmatprep.subr.bf16.mxu0 0
    %1267 = vmatpush1.bf16.msra.mxu0 0
    %1268 = vmatprep.subr.bf16.mxu0 0
    %1269 = vmatpush1.bf16.msra.mxu0 0
    %1270 = vmatprep.subr.bf16.mxu0 0
    %1271 = vmatpush1.bf16.msra.mxu0 0
    %1272 = vmatprep.subr.bf16.mxu0 0
    %1273 = vmatpush1.bf16.msra.mxu0 0
    %1274 = vmatprep.subr.bf16.mxu0 0
    %1275 = vmatpush1.bf16.msra.mxu0 0
    %1276 = vmatprep.subr.bf16.mxu0 0
    %1277 = vmatpush1.bf16.msra.mxu0 0
    %1278 = vmatprep.subr.bf16.mxu0 0
    %1279 = vmatpush1.bf16.msra.mxu0 0
    %1280 = vmatprep.subr.bf16.mxu0 0
    %1281 = vmatpush1.bf16.msra.mxu0 0
    %1282 = vmatprep.subr.bf16.mxu0 0
    %1283 = vmatpush1.bf16.msra.mxu0 0
    %1284 = vmatprep.subr.bf16.mxu0 0
    %1285 = vmatpush1.bf16.msra.mxu0 0
    %1286 = vmatprep.subr.bf16.mxu0 0
    %1287 = vmatpush1.bf16.msra.mxu0 0
    %1288 = vmatprep.mubr.bf16.mxu0 0
    %1289 = vmatmul.mubr.bf16.gmra.mrb[0].mxu0 %v1254
    %v1290 = vpop.f32.mrb[0].mxu0
    %v1291 = vadd.f32 0.0, %v1290
    %v1292 = vpop.f32.mrb[0].mxu0
    %v1293 = vpop.f32.mrb[0].mxu0
    %v1294 = vpop.f32.mrb[0].mxu0
    %1295 = vdwg.mxu0
    %v1296 = vadd.f32 %v1130, %v1291
    %1297 = vrot.lane.b32.xlu0 %v792, 60
    %v1298 = vpop.permute.xlu0 %1297
    %v1300 = vsel %vm69, %v1298, 0
    %1302 = vmatprep.subr.bf16.mxu0 0
    %1303 = vmatpush1.bf16.msra.mxu0 %v66
    %1304 = vmatprep.subr.bf16.mxu0 0
    %1305 = vmatpush1.bf16.msra.mxu0 %v75
    %1306 = vmatprep.subr.bf16.mxu0 0
    %1307 = vmatpush1.bf16.msra.mxu0 0
    %1308 = vmatprep.subr.bf16.mxu0 0
    %1309 = vmatpush1.bf16.msra.mxu0 0
    %1310 = vmatprep.subr.bf16.mxu0 0
    %1311 = vmatpush1.bf16.msra.mxu0 0
    %1312 = vmatprep.subr.bf16.mxu0 0
    %1313 = vmatpush1.bf16.msra.mxu0 0
    %1314 = vmatprep.subr.bf16.mxu0 0
    %1315 = vmatpush1.bf16.msra.mxu0 0
    %1316 = vmatprep.subr.bf16.mxu0 0
    %1317 = vmatpush1.bf16.msra.mxu0 0
    %1318 = vmatprep.subr.bf16.mxu0 0
    %1319 = vmatpush1.bf16.msra.mxu0 0
    %1320 = vmatprep.subr.bf16.mxu0 0
    %1321 = vmatpush1.bf16.msra.mxu0 0
    %1322 = vmatprep.subr.bf16.mxu0 0
    %1323 = vmatpush1.bf16.msra.mxu0 0
    %1324 = vmatprep.subr.bf16.mxu0 0
    %1325 = vmatpush1.bf16.msra.mxu0 0
    %1326 = vmatprep.subr.bf16.mxu0 0
    %1327 = vmatpush1.bf16.msra.mxu0 0
    %1328 = vmatprep.subr.bf16.mxu0 0
    %1329 = vmatpush1.bf16.msra.mxu0 0
    %1330 = vmatprep.subr.bf16.mxu0 0
    %1331 = vmatpush1.bf16.msra.mxu0 0
    %1332 = vmatprep.subr.bf16.mxu0 0
    %1333 = vmatpush1.bf16.msra.mxu0 0
    %1334 = vmatprep.mubr.bf16.mxu0 0
    %1335 = vmatmul.mubr.bf16.gmra.mrb[0].mxu0 %v1300
    %v1336 = vpop.f32.mrb[0].mxu0
    %v1337 = vadd.f32 %v56, %v1336
    %v1338 = vpop.f32.mrb[0].mxu0
    %v1339 = vpop.f32.mrb[0].mxu0
    %v1340 = vpop.f32.mrb[0].mxu0
    %1341 = vdwg.mxu0
    %v1342 = vmax.f32 %v1337, 0.0
    %v1343 = vpack.c.bf16 %v1342, %v1342
    %1344 = vmatprep.subr.bf16.mxu0 0
    %1345 = vmatpush1.bf16.msra.mxu0 %v157
    %1346 = vmatprep.subr.bf16.mxu0 0
    %1347 = vmatpush1.bf16.msra.mxu0 %v158
    %1348 = vmatprep.subr.bf16.mxu0 0
    %1349 = vmatpush1.bf16.msra.mxu0 %v159
    %1350 = vmatprep.subr.bf16.mxu0 0
    %1351 = vmatpush1.bf16.msra.mxu0 %v160
    %1352 = vmatprep.subr.bf16.mxu0 0
    %1353 = vmatpush1.bf16.msra.mxu0 %v161
    %1354 = vmatprep.subr.bf16.mxu0 0
    %1355 = vmatpush1.bf16.msra.mxu0 %v162
    %1356 = vmatprep.subr.bf16.mxu0 0
    %1357 = vmatpush1.bf16.msra.mxu0 %v163
    %1358 = vmatprep.subr.bf16.mxu0 0
    %1359 = vmatpush1.bf16.msra.mxu0 %v164
    %1360 = vmatprep.subr.bf16.mxu0 0
    %1361 = vmatpush1.bf16.msra.mxu0 0
    %1362 = vmatprep.subr.bf16.mxu0 0
    %1363 = vmatpush1.bf16.msra.mxu0 0
    %1364 = vmatprep.subr.bf16.mxu0 0
    %1365 = vmatpush1.bf16.msra.mxu0 0
    %1366 = vmatprep.subr.bf16.mxu0 0
    %1367 = vmatpush1.bf16.msra.mxu0 0
    %1368 = vmatprep.subr.bf16.mxu0 0
    %1369 = vmatpush1.bf16.msra.mxu0 0
    %1370 = vmatprep.subr.bf16.mxu0 0
    %1371 = vmatpush1.bf16.msra.mxu0 0
    %1372 = vmatprep.subr.bf16.mxu0 0
    %1373 = vmatpush1.bf16.msra.mxu0 0
    %1374 = vmatprep.subr.bf16.mxu0 0
    %1375 = vmatpush1.bf16.msra.mxu0 0
    %1376 = vmatprep.mubr.bf16.mxu0 0
    %1377 = vmatmul.mubr.bf16.gmra.mrb[0].mxu0 %v1343
    %v1378 = vpop.f32.mrb[0].mxu0
    %v1379 = vadd.f32 %v123, %v1378
    %v1380 = vpop.f32.mrb[0].mxu0
    %v1381 = vpop.f32.mrb[0].mxu0
    %v1382 = vpop.f32.mrb[0].mxu0
    %1383 = vdwg.mxu0
    %v1384 = vtanh.pop %v1379
    %v1385 = vpack.c.bf16 %v1384, %v1384
    %s1386 = scalar_lea.vmem %s5, 224
    %v1387 = vld [vmem:[%s1386] sm:$0xf]
    %v1388 = vld [vmem:[%s1386 + $0x4] sm:$0xf]
    %v1389 = vld [vmem:[%s1386 + $0x8] sm:$0xf]
    %v1390 = vld [vmem:[%s1386 + $0xc] sm:$0xf]
    %v1391 = vld [vmem:[%s1386 + $0x10] sm:$0xf]
    %v1392 = vld [vmem:[%s1386 + $0x14] sm:$0xf]
    %v1393 = vld [vmem:[%s1386 + $0x18] sm:$0xf]
    %v1394 = vld [vmem:[%s1386 + $0x1c] sm:$0xf]
    %v1403 = vunpack.c.l.b16 %v1387
    %v1404 = vunpack.c.l.b16 %v1388
    %v1405 = vunpack.c.l.b16 %v1389
    %v1406 = vunpack.c.l.b16 %v1390
    %v1407 = vunpack.c.l.b16 %v1391
    %v1408 = vunpack.c.l.b16 %v1392
    %v1409 = vunpack.c.l.b16 %v1393
    %v1410 = vunpack.c.l.b16 %v1394
    %v1411 = vpack.c.b16 %v1404, %v1403
    %v1412 = vpack.c.b16 %v1406, %v1405
    %v1413 = vpack.c.b16 %v1408, %v1407
    %v1414 = vpack.c.b16 %v1410, %v1409
    %v1420 = vsel %vm346, %v1385, 0
    %1422 = vmatprep.subr.bf16.mxu0 0
    %1423 = vmatpush1.bf16.msra.mxu0 %v1411
    %1424 = vmatprep.subr.bf16.mxu0 0
    %1425 = vmatpush1.bf16.msra.mxu0 %v1412
    %1426 = vmatprep.subr.bf16.mxu0 0
    %1427 = vmatpush1.bf16.msra.mxu0 %v1413
    %1428 = vmatprep.subr.bf16.mxu0 0
    %1429 = vmatpush1.bf16.msra.mxu0 %v1414
    %1430 = vmatprep.subr.bf16.mxu0 0
    %1431 = vmatpush1.bf16.msra.mxu0 0
    %1432 = vmatprep.subr.bf16.mxu0 0
    %1433 = vmatpush1.bf16.msra.mxu0 0
    %1434 = vmatprep.subr.bf16.mxu0 0
    %1435 = vmatpush1.bf16.msra.mxu0 0
    %1436 = vmatprep.subr.bf16.mxu0 0
    %1437 = vmatpush1.bf16.msra.mxu0 0
    %1438 = vmatprep.subr.bf16.mxu0 0
    %1439 = vmatpush1.bf16.msra.mxu0 0
    %1440 = vmatprep.subr.bf16.mxu0 0
    %1441 = vmatpush1.bf16.msra.mxu0 0
    %1442 = vmatprep.subr.bf16.mxu0 0
    %1443 = vmatpush1.bf16.msra.mxu0 0
    %1444 = vmatprep.subr.bf16.mxu0 0
    %1445 = vmatpush1.bf16.msra.mxu0 0
    %1446 = vmatprep.subr.bf16.mxu0 0
    %1447 = vmatpush1.bf16.msra.mxu0 0
    %1448 = vmatprep.subr.bf16.mxu0 0
    %1449 = vmatpush1.bf16.msra.mxu0 0
    %1450 = vmatprep.subr.bf16.mxu0 0
    %1451 = vmatpush1.bf16.msra.mxu0 0
    %1452 = vmatprep.subr.bf16.mxu0 0
    %1453 = vmatpush1.bf16.msra.mxu0 0
    %1454 = vmatprep.mubr.bf16.mxu0 0
    %1455 = vmatmul.mubr.bf16.gmra.mrb[0].mxu0 %v1420
    %v1456 = vpop.f32.mrb[0].mxu0
    %v1457 = vadd.f32 0.0, %v1456
    %v1458 = vpop.f32.mrb[0].mxu0
    %v1459 = vpop.f32.mrb[0].mxu0
    %v1460 = vpop.f32.mrb[0].mxu0
    %1461 = vdwg.mxu0
    %v1462 = vadd.f32 %v1296, %v1457
    %1463 = vrot.lane.b32.xlu0 %v792, 32
    %v1464 = vpop.permute.xlu0 %1463
    %v1466 = vsel %vm69, %v1464, 0
    %1468 = vmatprep.subr.bf16.mxu0 0
    %1469 = vmatpush1.bf16.msra.mxu0 %v66
    %1470 = vmatprep.subr.bf16.mxu0 0
    %1471 = vmatpush1.bf16.msra.mxu0 %v75
    %1472 = vmatprep.subr.bf16.mxu0 0
    %1473 = vmatpush1.bf16.msra.mxu0 0
    %1474 = vmatprep.subr.bf16.mxu0 0
    %1475 = vmatpush1.bf16.msra.mxu0 0
    %1476 = vmatprep.subr.bf16.mxu0 0
    %1477 = vmatpush1.bf16.msra.mxu0 0
    %1478 = vmatprep.subr.bf16.mxu0 0
    %1479 = vmatpush1.bf16.msra.mxu0 0
    %1480 = vmatprep.subr.bf16.mxu0 0
    %1481 = vmatpush1.bf16.msra.mxu0 0
    %1482 = vmatprep.subr.bf16.mxu0 0
    %1483 = vmatpush1.bf16.msra.mxu0 0
    %1484 = vmatprep.subr.bf16.mxu0 0
    %1485 = vmatpush1.bf16.msra.mxu0 0
    %1486 = vmatprep.subr.bf16.mxu0 0
    %1487 = vmatpush1.bf16.msra.mxu0 0
    %1488 = vmatprep.subr.bf16.mxu0 0
    %1489 = vmatpush1.bf16.msra.mxu0 0
    %1490 = vmatprep.subr.bf16.mxu0 0
    %1491 = vmatpush1.bf16.msra.mxu0 0
    %1492 = vmatprep.subr.bf16.mxu0 0
    %1493 = vmatpush1.bf16.msra.mxu0 0
    %1494 = vmatprep.subr.bf16.mxu0 0
    %1495 = vmatpush1.bf16.msra.mxu0 0
    %1496 = vmatprep.subr.bf16.mxu0 0
    %1497 = vmatpush1.bf16.msra.mxu0 0
    %1498 = vmatprep.subr.bf16.mxu0 0
    %1499 = vmatpush1.bf16.msra.mxu0 0
    %1500 = vmatprep.mubr.bf16.mxu0 0
    %1501 = vmatmul.mubr.bf16.gmra.mrb[0].mxu0 %v1466
    %v1502 = vpop.f32.mrb[0].mxu0
    %v1503 = vadd.f32 %v56, %v1502
    %v1504 = vpop.f32.mrb[0].mxu0
    %v1505 = vpop.f32.mrb[0].mxu0
    %v1506 = vpop.f32.mrb[0].mxu0
    %1507 = vdwg.mxu0
    %v1508 = vmax.f32 %v1503, 0.0
    %v1509 = vpack.c.bf16 %v1508, %v1508
    %1510 = vmatprep.subr.bf16.mxu0 0
    %1511 = vmatpush1.bf16.msra.mxu0 %v157
    %1512 = vmatprep.subr.bf16.mxu0 0
    %1513 = vmatpush1.bf16.msra.mxu0 %v158
    %1514 = vmatprep.subr.bf16.mxu0 0
    %1515 = vmatpush1.bf16.msra.mxu0 %v159
    %1516 = vmatprep.subr.bf16.mxu0 0
    %1517 = vmatpush1.bf16.msra.mxu0 %v160
    %1518 = vmatprep.subr.bf16.mxu0 0
    %1519 = vmatpush1.bf16.msra.mxu0 %v161
    %1520 = vmatprep.subr.bf16.mxu0 0
    %1521 = vmatpush1.bf16.msra.mxu0 %v162
    %1522 = vmatprep.subr.bf16.mxu0 0
    %1523 = vmatpush1.bf16.msra.mxu0 %v163
    %1524 = vmatprep.subr.bf16.mxu0 0
    %1525 = vmatpush1.bf16.msra.mxu0 %v164
    %1526 = vmatprep.subr.bf16.mxu0 0
    %1527 = vmatpush1.bf16.msra.mxu0 0
    %1528 = vmatprep.subr.bf16.mxu0 0
    %1529 = vmatpush1.bf16.msra.mxu0 0
    %1530 = vmatprep.subr.bf16.mxu0 0
    %1531 = vmatpush1.bf16.msra.mxu0 0
    %1532 = vmatprep.subr.bf16.mxu0 0
    %1533 = vmatpush1.bf16.msra.mxu0 0
    %1534 = vmatprep.subr.bf16.mxu0 0
    %1535 = vmatpush1.bf16.msra.mxu0 0
    %1536 = vmatprep.subr.bf16.mxu0 0
    %1537 = vmatpush1.bf16.msra.mxu0 0
    %1538 = vmatprep.subr.bf16.mxu0 0
    %1539 = vmatpush1.bf16.msra.mxu0 0
    %1540 = vmatprep.subr.bf16.mxu0 0
    %1541 = vmatpush1.bf16.msra.mxu0 0
    %1542 = vmatprep.mubr.bf16.mxu0 0
    %1543 = vmatmul.mubr.bf16.gmra.mrb[0].mxu0 %v1509
    %v1544 = vpop.f32.mrb[0].mxu0
    %v1545 = vadd.f32 %v123, %v1544
    %v1546 = vpop.f32.mrb[0].mxu0
    %v1547 = vpop.f32.mrb[0].mxu0
    %v1548 = vpop.f32.mrb[0].mxu0
    %1549 = vdwg.mxu0
    %v1550 = vtanh.pop %v1545
    %v1551 = vpack.c.bf16 %v1550, %v1550
    %s1552 = scalar_lea.vmem %s5, 256
    %v1553 = vld [vmem:[%s1552] sm:$0xf]
    %v1554 = vld [vmem:[%s1552 + $0x4] sm:$0xf]
    %v1555 = vld [vmem:[%s1552 + $0x8] sm:$0xf]
    %v1556 = vld [vmem:[%s1552 + $0xc] sm:$0xf]
    %v1557 = vld [vmem:[%s1552 + $0x10] sm:$0xf]
    %v1558 = vld [vmem:[%s1552 + $0x14] sm:$0xf]
    %v1559 = vld [vmem:[%s1552 + $0x18] sm:$0xf]
    %v1560 = vld [vmem:[%s1552 + $0x1c] sm:$0xf]
    %v1569 = vunpack.c.l.b16 %v1553
    %v1570 = vunpack.c.l.b16 %v1554
    %v1571 = vunpack.c.l.b16 %v1555
    %v1572 = vunpack.c.l.b16 %v1556
    %v1573 = vunpack.c.l.b16 %v1557
    %v1574 = vunpack.c.l.b16 %v1558
    %v1575 = vunpack.c.l.b16 %v1559
    %v1576 = vunpack.c.l.b16 %v1560
    %v1577 = vpack.c.b16 %v1570, %v1569
    %v1578 = vpack.c.b16 %v1572, %v1571
    %v1579 = vpack.c.b16 %v1574, %v1573
    %v1580 = vpack.c.b16 %v1576, %v1575
    %v1586 = vsel %vm346, %v1551, 0
    %1588 = vmatprep.subr.bf16.mxu0 0
    %1589 = vmatpush1.bf16.msra.mxu0 %v1577
    %1590 = vmatprep.subr.bf16.mxu0 0
    %1591 = vmatpush1.bf16.msra.mxu0 %v1578
    %1592 = vmatprep.subr.bf16.mxu0 0
    %1593 = vmatpush1.bf16.msra.mxu0 %v1579
    %1594 = vmatprep.subr.bf16.mxu0 0
    %1595 = vmatpush1.bf16.msra.mxu0 %v1580
    %1596 = vmatprep.subr.bf16.mxu0 0
    %1597 = vmatpush1.bf16.msra.mxu0 0
    %1598 = vmatprep.subr.bf16.mxu0 0
    %1599 = vmatpush1.bf16.msra.mxu0 0
    %1600 = vmatprep.subr.bf16.mxu0 0
    %1601 = vmatpush1.bf16.msra.mxu0 0
    %1602 = vmatprep.subr.bf16.mxu0 0
    %1603 = vmatpush1.bf16.msra.mxu0 0
    %1604 = vmatprep.subr.bf16.mxu0 0
    %1605 = vmatpush1.bf16.msra.mxu0 0
    %1606 = vmatprep.subr.bf16.mxu0 0
    %1607 = vmatpush1.bf16.msra.mxu0 0
    %1608 = vmatprep.subr.bf16.mxu0 0
    %1609 = vmatpush1.bf16.msra.mxu0 0
    %1610 = vmatprep.subr.bf16.mxu0 0
    %1611 = vmatpush1.bf16.msra.mxu0 0
    %1612 = vmatprep.subr.bf16.mxu0 0
    %1613 = vmatpush1.bf16.msra.mxu0 0
    %1614 = vmatprep.subr.bf16.mxu0 0
    %1615 = vmatpush1.bf16.msra.mxu0 0
    %1616 = vmatprep.subr.bf16.mxu0 0
    %1617 = vmatpush1.bf16.msra.mxu0 0
    %1618 = vmatprep.subr.bf16.mxu0 0
    %1619 = vmatpush1.bf16.msra.mxu0 0
    %1620 = vmatprep.mubr.bf16.mxu0 0
    %1621 = vmatmul.mubr.bf16.gmra.mrb[0].mxu0 %v1586
    %v1622 = vpop.f32.mrb[0].mxu0
    %v1623 = vadd.f32 0.0, %v1622
    %v1624 = vpop.f32.mrb[0].mxu0
    %v1625 = vpop.f32.mrb[0].mxu0
    %v1626 = vpop.f32.mrb[0].mxu0
    %1627 = vdwg.mxu0
    %v1628 = vadd.f32 %v1462, %v1623
    %v1629 = vld [vmem:[%s0 + $0x8] sm:$0xff]
    %v1630 = vld [vmem:[%s0 + $0x10] sm:$0xff]
    %v1631 = vpack.c.bf16 %v1629, %v1629
    %v1632 = vpack.c.bf16 %v1630, %v1630
    %1635 = vrot.lane.b32.xlu0 %v1631, 4
    %v1636 = vpop.permute.xlu0 %1635
    %1637 = vrot.lane.b32.xlu0 %v1632, 4
    %v1638 = vpop.permute.xlu0 %1637
    %vm1639 = vcmask 31744
    %v1640 = vsel %vm1639, %v1636, %v1638
    %v1642 = vsel %vm69, %v1640, 0
    %1644 = vmatprep.subr.bf16.mxu0 0
    %1645 = vmatpush1.bf16.msra.mxu0 %v66
    %1646 = vmatprep.subr.bf16.mxu0 0
    %1647 = vmatpush1.bf16.msra.mxu0 %v75
    %1648 = vmatprep.subr.bf16.mxu0 0
    %1649 = vmatpush1.bf16.msra.mxu0 0
    %1650 = vmatprep.subr.bf16.mxu0 0
    %1651 = vmatpush1.bf16.msra.mxu0 0
    %1652 = vmatprep.subr.bf16.mxu0 0
    %1653 = vmatpush1.bf16.msra.mxu0 0
    %1654 = vmatprep.subr.bf16.mxu0 0
    %1655 = vmatpush1.bf16.msra.mxu0 0
    %1656 = vmatprep.subr.bf16.mxu0 0
    %1657 = vmatpush1.bf16.msra.mxu0 0
    %1658 = vmatprep.subr.bf16.mxu0 0
    %1659 = vmatpush1.bf16.msra.mxu0 0
    %1660 = vmatprep.subr.bf16.mxu0 0
    %1661 = vmatpush1.bf16.msra.mxu0 0
    %1662 = vmatprep.subr.bf16.mxu0 0
    %1663 = vmatpush1.bf16.msra.mxu0 0
    %1664 = vmatprep.subr.bf16.mxu0 0
    %1665 = vmatpush1.bf16.msra.mxu0 0
    %1666 = vmatprep.subr.bf16.mxu0 0
    %1667 = vmatpush1.bf16.msra.mxu0 0
    %1668 = vmatprep.subr.bf16.mxu0 0
    %1669 = vmatpush1.bf16.msra.mxu0 0
    %1670 = vmatprep.subr.bf16.mxu0 0
    %1671 = vmatpush1.bf16.msra.mxu0 0
    %1672 = vmatprep.subr.bf16.mxu0 0
    %1673 = vmatpush1.bf16.msra.mxu0 0
    %1674 = vmatprep.subr.bf16.mxu0 0
    %1675 = vmatpush1.bf16.msra.mxu0 0
    %1676 = vmatprep.mubr.bf16.mxu0 0
    %1677 = vmatmul.mubr.bf16.gmra.mrb[0].mxu0 %v1642
    %v1678 = vpop.f32.mrb[0].mxu0
    %v1679 = vadd.f32 %v56, %v1678
    %v1680 = vpop.f32.mrb[0].mxu0
    %v1681 = vpop.f32.mrb[0].mxu0
    %v1682 = vpop.f32.mrb[0].mxu0
    %1683 = vdwg.mxu0
    %v1684 = vmax.f32 %v1679, 0.0
    %v1685 = vpack.c.bf16 %v1684, %v1684
    %1686 = vmatprep.subr.bf16.mxu0 0
    %1687 = vmatpush1.bf16.msra.mxu0 %v157
    %1688 = vmatprep.subr.bf16.mxu0 0
    %1689 = vmatpush1.bf16.msra.mxu0 %v158
    %1690 = vmatprep.subr.bf16.mxu0 0
    %1691 = vmatpush1.bf16.msra.mxu0 %v159
    %1692 = vmatprep.subr.bf16.mxu0 0
    %1693 = vmatpush1.bf16.msra.mxu0 %v160
    %1694 = vmatprep.subr.bf16.mxu0 0
    %1695 = vmatpush1.bf16.msra.mxu0 %v161
    %1696 = vmatprep.subr.bf16.mxu0 0
    %1697 = vmatpush1.bf16.msra.mxu0 %v162
    %1698 = vmatprep.subr.bf16.mxu0 0
    %1699 = vmatpush1.bf16.msra.mxu0 %v163
    %1700 = vmatprep.subr.bf16.mxu0 0
    %1701 = vmatpush1.bf16.msra.mxu0 %v164
    %1702 = vmatprep.subr.bf16.mxu0 0
    %1703 = vmatpush1.bf16.msra.mxu0 0
    %1704 = vmatprep.subr.bf16.mxu0 0
    %1705 = vmatpush1.bf16.msra.mxu0 0
    %1706 = vmatprep.subr.bf16.mxu0 0
    %1707 = vmatpush1.bf16.msra.mxu0 0
    %1708 = vmatprep.subr.bf16.mxu0 0
    %1709 = vmatpush1.bf16.msra.mxu0 0
    %1710 = vmatprep.subr.bf16.mxu0 0
    %1711 = vmatpush1.bf16.msra.mxu0 0
    %1712 = vmatprep.subr.bf16.mxu0 0
    %1713 = vmatpush1.bf16.msra.mxu0 0
    %1714 = vmatprep.subr.bf16.mxu0 0
    %1715 = vmatpush1.bf16.msra.mxu0 0
    %1716 = vmatprep.subr.bf16.mxu0 0
    %1717 = vmatpush1.bf16.msra.mxu0 0
    %1718 = vmatprep.mubr.bf16.mxu0 0
    %1719 = vmatmul.mubr.bf16.gmra.mrb[0].mxu0 %v1685
    %v1720 = vpop.f32.mrb[0].mxu0
    %v1721 = vadd.f32 %v123, %v1720
    %v1722 = vpop.f32.mrb[0].mxu0
    %v1723 = vpop.f32.mrb[0].mxu0
    %v1724 = vpop.f32.mrb[0].mxu0
    %1725 = vdwg.mxu0
    %v1726 = vtanh.pop %v1721
    %v1727 = vpack.c.bf16 %v1726, %v1726
    %s1728 = scalar_lea.vmem %s5, 288
    %v1729 = vld [vmem:[%s1728] sm:$0xf]
    %v1730 = vld [vmem:[%s1728 + $0x4] sm:$0xf]
    %v1731 = vld [vmem:[%s1728 + $0x8] sm:$0xf]
    %v1732 = vld [vmem:[%s1728 + $0xc] sm:$0xf]
    %v1733 = vld [vmem:[%s1728 + $0x10] sm:$0xf]
    %v1734 = vld [vmem:[%s1728 + $0x14] sm:$0xf]
    %v1735 = vld [vmem:[%s1728 + $0x18] sm:$0xf]
    %v1736 = vld [vmem:[%s1728 + $0x1c] sm:$0xf]
    %v1745 = vunpack.c.l.b16 %v1729
    %v1746 = vunpack.c.l.b16 %v1730
    %v1747 = vunpack.c.l.b16 %v1731
    %v1748 = vunpack.c.l.b16 %v1732
    %v1749 = vunpack.c.l.b16 %v1733
    %v1750 = vunpack.c.l.b16 %v1734
    %v1751 = vunpack.c.l.b16 %v1735
    %v1752 = vunpack.c.l.b16 %v1736
    %v1753 = vpack.c.b16 %v1746, %v1745
    %v1754 = vpack.c.b16 %v1748, %v1747
    %v1755 = vpack.c.b16 %v1750, %v1749
    %v1756 = vpack.c.b16 %v1752, %v1751
    %v1762 = vsel %vm346, %v1727, 0
    %1764 = vmatprep.subr.bf16.mxu0 0
    %1765 = vmatpush1.bf16.msra.mxu0 %v1753
    %1766 = vmatprep.subr.bf16.mxu0 0
    %1767 = vmatpush1.bf16.msra.mxu0 %v1754
    %1768 = vmatprep.subr.bf16.mxu0 0
    %1769 = vmatpush1.bf16.msra.mxu0 %v1755
    %1770 = vmatprep.subr.bf16.mxu0 0
    %1771 = vmatpush1.bf16.msra.mxu0 %v1756
    %1772 = vmatprep.subr.bf16.mxu0 0
    %1773 = vmatpush1.bf16.msra.mxu0 0
    %1774 = vmatprep.subr.bf16.mxu0 0
    %1775 = vmatpush1.bf16.msra.mxu0 0
    %1776 = vmatprep.subr.bf16.mxu0 0
    %1777 = vmatpush1.bf16.msra.mxu0 0
    %1778 = vmatprep.subr.bf16.mxu0 0
    %1779 = vmatpush1.bf16.msra.mxu0 0
    %1780 = vmatprep.subr.bf16.mxu0 0
    %1781 = vmatpush1.bf16.msra.mxu0 0
    %1782 = vmatprep.subr.bf16.mxu0 0
    %1783 = vmatpush1.bf16.msra.mxu0 0
    %1784 = vmatprep.subr.bf16.mxu0 0
    %1785 = vmatpush1.bf16.msra.mxu0 0
    %1786 = vmatprep.subr.bf16.mxu0 0
    %1787 = vmatpush1.bf16.msra.mxu0 0
    %1788 = vmatprep.subr.bf16.mxu0 0
    %1789 = vmatpush1.bf16.msra.mxu0 0
    %1790 = vmatprep.subr.bf16.mxu0 0
    %1791 = vmatpush1.bf16.msra.mxu0 0
    %1792 = vmatprep.subr.bf16.mxu0 0
    %1793 = vmatpush1.bf16.msra.mxu0 0
    %1794 = vmatprep.subr.bf16.mxu0 0
    %1795 = vmatpush1.bf16.msra.mxu0 0
    %1796 = vmatprep.mubr.bf16.mxu0 0
    %1797 = vmatmul.mubr.bf16.gmra.mrb[0].mxu0 %v1762
    %v1798 = vpop.f32.mrb[0].mxu0
    %v1799 = vadd.f32 0.0, %v1798
    %v1800 = vpop.f32.mrb[0].mxu0
    %v1801 = vpop.f32.mrb[0].mxu0
    %v1802 = vpop.f32.mrb[0].mxu0
    %1803 = vdwg.mxu0
    %v1804 = vadd.f32 %v1628, %v1799
    %1805 = vrot.lane.b32.xlu0 %v1632, 104
    %v1806 = vpop.permute.xlu0 %1805
    %v1808 = vsel %vm69, %v1806, 0
    %1810 = vmatprep.subr.bf16.mxu0 0
    %1811 = vmatpush1.bf16.msra.mxu0 %v66
    %1812 = vmatprep.subr.bf16.mxu0 0
    %1813 = vmatpush1.bf16.msra.mxu0 %v75
    %1814 = vmatprep.subr.bf16.mxu0 0
    %1815 = vmatpush1.bf16.msra.mxu0 0
    %1816 = vmatprep.subr.bf16.mxu0 0
    %1817 = vmatpush1.bf16.msra.mxu0 0
    %1818 = vmatprep.subr.bf16.mxu0 0
    %1819 = vmatpush1.bf16.msra.mxu0 0
    %1820 = vmatprep.subr.bf16.mxu0 0
    %1821 = vmatpush1.bf16.msra.mxu0 0
    %1822 = vmatprep.subr.bf16.mxu0 0
    %1823 = vmatpush1.bf16.msra.mxu0 0
    %1824 = vmatprep.subr.bf16.mxu0 0
    %1825 = vmatpush1.bf16.msra.mxu0 0
    %1826 = vmatprep.subr.bf16.mxu0 0
    %1827 = vmatpush1.bf16.msra.mxu0 0
    %1828 = vmatprep.subr.bf16.mxu0 0
    %1829 = vmatpush1.bf16.msra.mxu0 0
    %1830 = vmatprep.subr.bf16.mxu0 0
    %1831 = vmatpush1.bf16.msra.mxu0 0
    %1832 = vmatprep.subr.bf16.mxu0 0
    %1833 = vmatpush1.bf16.msra.mxu0 0
    %1834 = vmatprep.subr.bf16.mxu0 0
    %1835 = vmatpush1.bf16.msra.mxu0 0
    %1836 = vmatprep.subr.bf16.mxu0 0
    %1837 = vmatpush1.bf16.msra.mxu0 0
    %1838 = vmatprep.subr.bf16.mxu0 0
    %1839 = vmatpush1.bf16.msra.mxu0 0
    %1840 = vmatprep.subr.bf16.mxu0 0
    %1841 = vmatpush1.bf16.msra.mxu0 0
    %1842 = vmatprep.mubr.bf16.mxu0 0
    %1843 = vmatmul.mubr.bf16.gmra.mrb[0].mxu0 %v1808
    %v1844 = vpop.f32.mrb[0].mxu0
    %v1845 = vadd.f32 %v56, %v1844
    %v1846 = vpop.f32.mrb[0].mxu0
    %v1847 = vpop.f32.mrb[0].mxu0
    %v1848 = vpop.f32.mrb[0].mxu0
    %1849 = vdwg.mxu0
    %v1850 = vmax.f32 %v1845, 0.0
    %v1851 = vpack.c.bf16 %v1850, %v1850
    %1852 = vmatprep.subr.bf16.mxu0 0
    %1853 = vmatpush1.bf16.msra.mxu0 %v157
    %1854 = vmatprep.subr.bf16.mxu0 0
    %1855 = vmatpush1.bf16.msra.mxu0 %v158
    %1856 = vmatprep.subr.bf16.mxu0 0
    %1857 = vmatpush1.bf16.msra.mxu0 %v159
    %1858 = vmatprep.subr.bf16.mxu0 0
    %1859 = vmatpush1.bf16.msra.mxu0 %v160
    %1860 = vmatprep.subr.bf16.mxu0 0
    %1861 = vmatpush1.bf16.msra.mxu0 %v161
    %1862 = vmatprep.subr.bf16.mxu0 0
    %1863 = vmatpush1.bf16.msra.mxu0 %v162
    %1864 = vmatprep.subr.bf16.mxu0 0
    %1865 = vmatpush1.bf16.msra.mxu0 %v163
    %1866 = vmatprep.subr.bf16.mxu0 0
    %1867 = vmatpush1.bf16.msra.mxu0 %v164
    %1868 = vmatprep.subr.bf16.mxu0 0
    %1869 = vmatpush1.bf16.msra.mxu0 0
    %1870 = vmatprep.subr.bf16.mxu0 0
    %1871 = vmatpush1.bf16.msra.mxu0 0
    %1872 = vmatprep.subr.bf16.mxu0 0
    %1873 = vmatpush1.bf16.msra.mxu0 0
    %1874 = vmatprep.subr.bf16.mxu0 0
    %1875 = vmatpush1.bf16.msra.mxu0 0
    %1876 = vmatprep.subr.bf16.mxu0 0
    %1877 = vmatpush1.bf16.msra.mxu0 0
    %1878 = vmatprep.subr.bf16.mxu0 0
    %1879 = vmatpush1.bf16.msra.mxu0 0
    %1880 = vmatprep.subr.bf16.mxu0 0
    %1881 = vmatpush1.bf16.msra.mxu0 0
    %1882 = vmatprep.subr.bf16.mxu0 0
    %1883 = vmatpush1.bf16.msra.mxu0 0
    %1884 = vmatprep.mubr.bf16.mxu0 0
    %1885 = vmatmul.mubr.bf16.gmra.mrb[0].mxu0 %v1851
    %v1886 = vpop.f32.mrb[0].mxu0
    %v1887 = vadd.f32 %v123, %v1886
    %v1888 = vpop.f32.mrb[0].mxu0
    %v1889 = vpop.f32.mrb[0].mxu0
    %v1890 = vpop.f32.mrb[0].mxu0
    %1891 = vdwg.mxu0
    %v1892 = vtanh.pop %v1887
    %v1893 = vpack.c.bf16 %v1892, %v1892
    %s1894 = scalar_lea.vmem %s5, 320
    %v1895 = vld [vmem:[%s1894] sm:$0xf]
    %v1896 = vld [vmem:[%s1894 + $0x4] sm:$0xf]
    %v1897 = vld [vmem:[%s1894 + $0x8] sm:$0xf]
    %v1898 = vld [vmem:[%s1894 + $0xc] sm:$0xf]
    %v1899 = vld [vmem:[%s1894 + $0x10] sm:$0xf]
    %v1900 = vld [vmem:[%s1894 + $0x14] sm:$0xf]
    %v1901 = vld [vmem:[%s1894 + $0x18] sm:$0xf]
    %v1902 = vld [vmem:[%s1894 + $0x1c] sm:$0xf]
    %v1911 = vunpack.c.l.b16 %v1895
    %v1912 = vunpack.c.l.b16 %v1896
    %v1913 = vunpack.c.l.b16 %v1897
    %v1914 = vunpack.c.l.b16 %v1898
    %v1915 = vunpack.c.l.b16 %v1899
    %v1916 = vunpack.c.l.b16 %v1900
    %v1917 = vunpack.c.l.b16 %v1901
    %v1918 = vunpack.c.l.b16 %v1902
    %v1919 = vpack.c.b16 %v1912, %v1911
    %v1920 = vpack.c.b16 %v1914, %v1913
    %v1921 = vpack.c.b16 %v1916, %v1915
    %v1922 = vpack.c.b16 %v1918, %v1917
    %v1928 = vsel %vm346, %v1893, 0
    %1930 = vmatprep.subr.bf16.mxu0 0
    %1931 = vmatpush1.bf16.msra.mxu0 %v1919
    %1932 = vmatprep.subr.bf16.mxu0 0
    %1933 = vmatpush1.bf16.msra.mxu0 %v1920
    %1934 = vmatprep.subr.bf16.mxu0 0
    %1935 = vmatpush1.bf16.msra.mxu0 %v1921
    %1936 = vmatprep.subr.bf16.mxu0 0
    %1937 = vmatpush1.bf16.msra.mxu0 %v1922
    %1938 = vmatprep.subr.bf16.mxu0 0
    %1939 = vmatpush1.bf16.msra.mxu0 0
    %1940 = vmatprep.subr.bf16.mxu0 0
    %1941 = vmatpush1.bf16.msra.mxu0 0
    %1942 = vmatprep.subr.bf16.mxu0 0
    %1943 = vmatpush1.bf16.msra.mxu0 0
    %1944 = vmatprep.subr.bf16.mxu0 0
    %1945 = vmatpush1.bf16.msra.mxu0 0
    %1946 = vmatprep.subr.bf16.mxu0 0
    %1947 = vmatpush1.bf16.msra.mxu0 0
    %1948 = vmatprep.subr.bf16.mxu0 0
    %1949 = vmatpush1.bf16.msra.mxu0 0
    %1950 = vmatprep.subr.bf16.mxu0 0
    %1951 = vmatpush1.bf16.msra.mxu0 0
    %1952 = vmatprep.subr.bf16.mxu0 0
    %1953 = vmatpush1.bf16.msra.mxu0 0
    %1954 = vmatprep.subr.bf16.mxu0 0
    %1955 = vmatpush1.bf16.msra.mxu0 0
    %1956 = vmatprep.subr.bf16.mxu0 0
    %1957 = vmatpush1.bf16.msra.mxu0 0
    %1958 = vmatprep.subr.bf16.mxu0 0
    %1959 = vmatpush1.bf16.msra.mxu0 0
    %1960 = vmatprep.subr.bf16.mxu0 0
    %1961 = vmatpush1.bf16.msra.mxu0 0
    %1962 = vmatprep.mubr.bf16.mxu0 0
    %1963 = vmatmul.mubr.bf16.gmra.mrb[0].mxu0 %v1928
    %v1964 = vpop.f32.mrb[0].mxu0
    %v1965 = vadd.f32 0.0, %v1964
    %v1966 = vpop.f32.mrb[0].mxu0
    %v1967 = vpop.f32.mrb[0].mxu0
    %v1968 = vpop.f32.mrb[0].mxu0
    %1969 = vdwg.mxu0
    %v1970 = vadd.f32 %v1804, %v1965
    %1971 = vrot.lane.b32.xlu0 %v1632, 76
    %v1972 = vpop.permute.xlu0 %1971
    %v1974 = vsel %vm69, %v1972, 0
    %1976 = vmatprep.subr.bf16.mxu0 0
    %1977 = vmatpush1.bf16.msra.mxu0 %v66
    %1978 = vmatprep.subr.bf16.mxu0 0
    %1979 = vmatpush1.bf16.msra.mxu0 %v75
    %1980 = vmatprep.subr.bf16.mxu0 0
    %1981 = vmatpush1.bf16.msra.mxu0 0
    %1982 = vmatprep.subr.bf16.mxu0 0
    %1983 = vmatpush1.bf16.msra.mxu0 0
    %1984 = vmatprep.subr.bf16.mxu0 0
    %1985 = vmatpush1.bf16.msra.mxu0 0
    %1986 = vmatprep.subr.bf16.mxu0 0
    %1987 = vmatpush1.bf16.msra.mxu0 0
    %1988 = vmatprep.subr.bf16.mxu0 0
    %1989 = vmatpush1.bf16.msra.mxu0 0
    %1990 = vmatprep.subr.bf16.mxu0 0
    %1991 = vmatpush1.bf16.msra.mxu0 0
    %1992 = vmatprep.subr.bf16.mxu0 0
    %1993 = vmatpush1.bf16.msra.mxu0 0
    %1994 = vmatprep.subr.bf16.mxu0 0
    %1995 = vmatpush1.bf16.msra.mxu0 0
    %1996 = vmatprep.subr.bf16.mxu0 0
    %1997 = vmatpush1.bf16.msra.mxu0 0
    %1998 = vmatprep.subr.bf16.mxu0 0
    %1999 = vmatpush1.bf16.msra.mxu0 0
    %2000 = vmatprep.subr.bf16.mxu0 0
    %2001 = vmatpush1.bf16.msra.mxu0 0
    %2002 = vmatprep.subr.bf16.mxu0 0
    %2003 = vmatpush1.bf16.msra.mxu0 0
    %2004 = vmatprep.subr.bf16.mxu0 0
    %2005 = vmatpush1.bf16.msra.mxu0 0
    %2006 = vmatprep.subr.bf16.mxu0 0
    %2007 = vmatpush1.bf16.msra.mxu0 0
    %2008 = vmatprep.mubr.bf16.mxu0 0
    %2009 = vmatmul.mubr.bf16.gmra.mrb[0].mxu0 %v1974
    %v2010 = vpop.f32.mrb[0].mxu0
    %v2011 = vadd.f32 %v56, %v2010
    %v2012 = vpop.f32.mrb[0].mxu0
    %v2013 = vpop.f32.mrb[0].mxu0
    %v2014 = vpop.f32.mrb[0].mxu0
    %2015 = vdwg.mxu0
    %v2016 = vmax.f32 %v2011, 0.0
    %v2017 = vpack.c.bf16 %v2016, %v2016
    %2018 = vmatprep.subr.bf16.mxu0 0
    %2019 = vmatpush1.bf16.msra.mxu0 %v157
    %2020 = vmatprep.subr.bf16.mxu0 0
    %2021 = vmatpush1.bf16.msra.mxu0 %v158
    %2022 = vmatprep.subr.bf16.mxu0 0
    %2023 = vmatpush1.bf16.msra.mxu0 %v159
    %2024 = vmatprep.subr.bf16.mxu0 0
    %2025 = vmatpush1.bf16.msra.mxu0 %v160
    %2026 = vmatprep.subr.bf16.mxu0 0
    %2027 = vmatpush1.bf16.msra.mxu0 %v161
    %2028 = vmatprep.subr.bf16.mxu0 0
    %2029 = vmatpush1.bf16.msra.mxu0 %v162
    %2030 = vmatprep.subr.bf16.mxu0 0
    %2031 = vmatpush1.bf16.msra.mxu0 %v163
    %2032 = vmatprep.subr.bf16.mxu0 0
    %2033 = vmatpush1.bf16.msra.mxu0 %v164
    %2034 = vmatprep.subr.bf16.mxu0 0
    %2035 = vmatpush1.bf16.msra.mxu0 0
    %2036 = vmatprep.subr.bf16.mxu0 0
    %2037 = vmatpush1.bf16.msra.mxu0 0
    %2038 = vmatprep.subr.bf16.mxu0 0
    %2039 = vmatpush1.bf16.msra.mxu0 0
    %2040 = vmatprep.subr.bf16.mxu0 0
    %2041 = vmatpush1.bf16.msra.mxu0 0
    %2042 = vmatprep.subr.bf16.mxu0 0
    %2043 = vmatpush1.bf16.msra.mxu0 0
    %2044 = vmatprep.subr.bf16.mxu0 0
    %2045 = vmatpush1.bf16.msra.mxu0 0
    %2046 = vmatprep.subr.bf16.mxu0 0
    %2047 = vmatpush1.bf16.msra.mxu0 0
    %2048 = vmatprep.subr.bf16.mxu0 0
    %2049 = vmatpush1.bf16.msra.mxu0 0
    %2050 = vmatprep.mubr.bf16.mxu0 0
    %2051 = vmatmul.mubr.bf16.gmra.mrb[0].mxu0 %v2017
    %v2052 = vpop.f32.mrb[0].mxu0
    %v2053 = vadd.f32 %v123, %v2052
    %v2054 = vpop.f32.mrb[0].mxu0
    %v2055 = vpop.f32.mrb[0].mxu0
    %v2056 = vpop.f32.mrb[0].mxu0
    %2057 = vdwg.mxu0
    %v2058 = vtanh.pop %v2053
    %v2059 = vpack.c.bf16 %v2058, %v2058
    %s2060 = scalar_lea.vmem %s5, 352
    %v2061 = vld [vmem:[%s2060] sm:$0xf]
    %v2062 = vld [vmem:[%s2060 + $0x4] sm:$0xf]
    %v2063 = vld [vmem:[%s2060 + $0x8] sm:$0xf]
    %v2064 = vld [vmem:[%s2060 + $0xc] sm:$0xf]
    %v2065 = vld [vmem:[%s2060 + $0x10] sm:$0xf]
    %v2066 = vld [vmem:[%s2060 + $0x14] sm:$0xf]
    %v2067 = vld [vmem:[%s2060 + $0x18] sm:$0xf]
    %v2068 = vld [vmem:[%s2060 + $0x1c] sm:$0xf]
    %v2077 = vunpack.c.l.b16 %v2061
    %v2078 = vunpack.c.l.b16 %v2062
    %v2079 = vunpack.c.l.b16 %v2063
    %v2080 = vunpack.c.l.b16 %v2064
    %v2081 = vunpack.c.l.b16 %v2065
    %v2082 = vunpack.c.l.b16 %v2066
    %v2083 = vunpack.c.l.b16 %v2067
    %v2084 = vunpack.c.l.b16 %v2068
    %v2085 = vpack.c.b16 %v2078, %v2077
    %v2086 = vpack.c.b16 %v2080, %v2079
    %v2087 = vpack.c.b16 %v2082, %v2081
    %v2088 = vpack.c.b16 %v2084, %v2083
    %v2094 = vsel %vm346, %v2059, 0
    %2096 = vmatprep.subr.bf16.mxu0 0
    %2097 = vmatpush1.bf16.msra.mxu0 %v2085
    %2098 = vmatprep.subr.bf16.mxu0 0
    %2099 = vmatpush1.bf16.msra.mxu0 %v2086
    %2100 = vmatprep.subr.bf16.mxu0 0
    %2101 = vmatpush1.bf16.msra.mxu0 %v2087
    %2102 = vmatprep.subr.bf16.mxu0 0
    %2103 = vmatpush1.bf16.msra.mxu0 %v2088
    %2104 = vmatprep.subr.bf16.mxu0 0
    %2105 = vmatpush1.bf16.msra.mxu0 0
    %2106 = vmatprep.subr.bf16.mxu0 0
    %2107 = vmatpush1.bf16.msra.mxu0 0
    %2108 = vmatprep.subr.bf16.mxu0 0
    %2109 = vmatpush1.bf16.msra.mxu0 0
    %2110 = vmatprep.subr.bf16.mxu0 0
    %2111 = vmatpush1.bf16.msra.mxu0 0
    %2112 = vmatprep.subr.bf16.mxu0 0
    %2113 = vmatpush1.bf16.msra.mxu0 0
    %2114 = vmatprep.subr.bf16.mxu0 0
    %2115 = vmatpush1.bf16.msra.mxu0 0
    %2116 = vmatprep.subr.bf16.mxu0 0
    %2117 = vmatpush1.bf16.msra.mxu0 0
    %2118 = vmatprep.subr.bf16.mxu0 0
    %2119 = vmatpush1.bf16.msra.mxu0 0
    %2120 = vmatprep.subr.bf16.mxu0 0
    %2121 = vmatpush1.bf16.msra.mxu0 0
    %2122 = vmatprep.subr.bf16.mxu0 0
    %2123 = vmatpush1.bf16.msra.mxu0 0
    %2124 = vmatprep.subr.bf16.mxu0 0
    %2125 = vmatpush1.bf16.msra.mxu0 0
    %2126 = vmatprep.subr.bf16.mxu0 0
    %2127 = vmatpush1.bf16.msra.mxu0 0
    %2128 = vmatprep.mubr.bf16.mxu0 0
    %2129 = vmatmul.mubr.bf16.gmra.mrb[0].mxu0 %v2094
    %v2130 = vpop.f32.mrb[0].mxu0
    %v2131 = vadd.f32 0.0, %v2130
    %v2132 = vpop.f32.mrb[0].mxu0
    %v2133 = vpop.f32.mrb[0].mxu0
    %v2134 = vpop.f32.mrb[0].mxu0
    %2135 = vdwg.mxu0
    %v2136 = vadd.f32 %v1970, %v2131
    %2137 = vrot.lane.b32.xlu0 %v1632, 48
    %v2138 = vpop.permute.xlu0 %2137
    %v2140 = vsel %vm69, %v2138, 0
    %2142 = vmatprep.subr.bf16.mxu0 0
    %2143 = vmatpush1.bf16.msra.mxu0 %v66
    %2144 = vmatprep.subr.bf16.mxu0 0
    %2145 = vmatpush1.bf16.msra.mxu0 %v75
    %2146 = vmatprep.subr.bf16.mxu0 0
    %2147 = vmatpush1.bf16.msra.mxu0 0
    %2148 = vmatprep.subr.bf16.mxu0 0
    %2149 = vmatpush1.bf16.msra.mxu0 0
    %2150 = vmatprep.subr.bf16.mxu0 0
    %2151 = vmatpush1.bf16.msra.mxu0 0
    %2152 = vmatprep.subr.bf16.mxu0 0
    %2153 = vmatpush1.bf16.msra.mxu0 0
    %2154 = vmatprep.subr.bf16.mxu0 0
    %2155 = vmatpush1.bf16.msra.mxu0 0
    %2156 = vmatprep.subr.bf16.mxu0 0
    %2157 = vmatpush1.bf16.msra.mxu0 0
    %2158 = vmatprep.subr.bf16.mxu0 0
    %2159 = vmatpush1.bf16.msra.mxu0 0
    %2160 = vmatprep.subr.bf16.mxu0 0
    %2161 = vmatpush1.bf16.msra.mxu0 0
    %2162 = vmatprep.subr.bf16.mxu0 0
    %2163 = vmatpush1.bf16.msra.mxu0 0
    %2164 = vmatprep.subr.bf16.mxu0 0
    %2165 = vmatpush1.bf16.msra.mxu0 0
    %2166 = vmatprep.subr.bf16.mxu0 0
    %2167 = vmatpush1.bf16.msra.mxu0 0
    %2168 = vmatprep.subr.bf16.mxu0 0
    %2169 = vmatpush1.bf16.msra.mxu0 0
    %2170 = vmatprep.subr.bf16.mxu0 0
    %2171 = vmatpush1.bf16.msra.mxu0 0
    %2172 = vmatprep.subr.bf16.mxu0 0
    %2173 = vmatpush1.bf16.msra.mxu0 0
    %2174 = vmatprep.mubr.bf16.mxu0 0
    %2175 = vmatmul.mubr.bf16.gmra.mrb[0].mxu0 %v2140
    %v2176 = vpop.f32.mrb[0].mxu0
    %v2177 = vadd.f32 %v56, %v2176
    %v2178 = vpop.f32.mrb[0].mxu0
    %v2179 = vpop.f32.mrb[0].mxu0
    %v2180 = vpop.f32.mrb[0].mxu0
    %2181 = vdwg.mxu0
    %v2182 = vmax.f32 %v2177, 0.0
    %v2183 = vpack.c.bf16 %v2182, %v2182
    %2184 = vmatprep.subr.bf16.mxu0 0
    %2185 = vmatpush1.bf16.msra.mxu0 %v157
    %2186 = vmatprep.subr.bf16.mxu0 0
    %2187 = vmatpush1.bf16.msra.mxu0 %v158
    %2188 = vmatprep.subr.bf16.mxu0 0
    %2189 = vmatpush1.bf16.msra.mxu0 %v159
    %2190 = vmatprep.subr.bf16.mxu0 0
    %2191 = vmatpush1.bf16.msra.mxu0 %v160
    %2192 = vmatprep.subr.bf16.mxu0 0
    %2193 = vmatpush1.bf16.msra.mxu0 %v161
    %2194 = vmatprep.subr.bf16.mxu0 0
    %2195 = vmatpush1.bf16.msra.mxu0 %v162
    %2196 = vmatprep.subr.bf16.mxu0 0
    %2197 = vmatpush1.bf16.msra.mxu0 %v163
    %2198 = vmatprep.subr.bf16.mxu0 0
    %2199 = vmatpush1.bf16.msra.mxu0 %v164
    %2200 = vmatprep.subr.bf16.mxu0 0
    %2201 = vmatpush1.bf16.msra.mxu0 0
    %2202 = vmatprep.subr.bf16.mxu0 0
    %2203 = vmatpush1.bf16.msra.mxu0 0
    %2204 = vmatprep.subr.bf16.mxu0 0
    %2205 = vmatpush1.bf16.msra.mxu0 0
    %2206 = vmatprep.subr.bf16.mxu0 0
    %2207 = vmatpush1.bf16.msra.mxu0 0
    %2208 = vmatprep.subr.bf16.mxu0 0
    %2209 = vmatpush1.bf16.msra.mxu0 0
    %2210 = vmatprep.subr.bf16.mxu0 0
    %2211 = vmatpush1.bf16.msra.mxu0 0
    %2212 = vmatprep.subr.bf16.mxu0 0
    %2213 = vmatpush1.bf16.msra.mxu0 0
    %2214 = vmatprep.subr.bf16.mxu0 0
    %2215 = vmatpush1.bf16.msra.mxu0 0
    %2216 = vmatprep.mubr.bf16.mxu0 0
    %2217 = vmatmul.mubr.bf16.gmra.mrb[0].mxu0 %v2183
    %v2218 = vpop.f32.mrb[0].mxu0
    %v2219 = vadd.f32 %v123, %v2218
    %v2220 = vpop.f32.mrb[0].mxu0
    %v2221 = vpop.f32.mrb[0].mxu0
    %v2222 = vpop.f32.mrb[0].mxu0
    %2223 = vdwg.mxu0
    %v2224 = vtanh.pop %v2219
    %v2225 = vpack.c.bf16 %v2224, %v2224
    %s2226 = scalar_lea.vmem %s5, 384
    %v2227 = vld [vmem:[%s2226] sm:$0xf]
    %v2228 = vld [vmem:[%s2226 + $0x4] sm:$0xf]
    %v2229 = vld [vmem:[%s2226 + $0x8] sm:$0xf]
    %v2230 = vld [vmem:[%s2226 + $0xc] sm:$0xf]
    %v2231 = vld [vmem:[%s2226 + $0x10] sm:$0xf]
    %v2232 = vld [vmem:[%s2226 + $0x14] sm:$0xf]
    %v2233 = vld [vmem:[%s2226 + $0x18] sm:$0xf]
    %v2234 = vld [vmem:[%s2226 + $0x1c] sm:$0xf]
    %v2243 = vunpack.c.l.b16 %v2227
    %v2244 = vunpack.c.l.b16 %v2228
    %v2245 = vunpack.c.l.b16 %v2229
    %v2246 = vunpack.c.l.b16 %v2230
    %v2247 = vunpack.c.l.b16 %v2231
    %v2248 = vunpack.c.l.b16 %v2232
    %v2249 = vunpack.c.l.b16 %v2233
    %v2250 = vunpack.c.l.b16 %v2234
    %v2251 = vpack.c.b16 %v2244, %v2243
    %v2252 = vpack.c.b16 %v2246, %v2245
    %v2253 = vpack.c.b16 %v2248, %v2247
    %v2254 = vpack.c.b16 %v2250, %v2249
    %v2260 = vsel %vm346, %v2225, 0
    %2262 = vmatprep.subr.bf16.mxu0 0
    %2263 = vmatpush1.bf16.msra.mxu0 %v2251
    %2264 = vmatprep.subr.bf16.mxu0 0
    %2265 = vmatpush1.bf16.msra.mxu0 %v2252
    %2266 = vmatprep.subr.bf16.mxu0 0
    %2267 = vmatpush1.bf16.msra.mxu0 %v2253
    %2268 = vmatprep.subr.bf16.mxu0 0
    %2269 = vmatpush1.bf16.msra.mxu0 %v2254
    %2270 = vmatprep.subr.bf16.mxu0 0
    %2271 = vmatpush1.bf16.msra.mxu0 0
    %2272 = vmatprep.subr.bf16.mxu0 0
    %2273 = vmatpush1.bf16.msra.mxu0 0
    %2274 = vmatprep.subr.bf16.mxu0 0
    %2275 = vmatpush1.bf16.msra.mxu0 0
    %2276 = vmatprep.subr.bf16.mxu0 0
    %2277 = vmatpush1.bf16.msra.mxu0 0
    %2278 = vmatprep.subr.bf16.mxu0 0
    %2279 = vmatpush1.bf16.msra.mxu0 0
    %2280 = vmatprep.subr.bf16.mxu0 0
    %2281 = vmatpush1.bf16.msra.mxu0 0
    %2282 = vmatprep.subr.bf16.mxu0 0
    %2283 = vmatpush1.bf16.msra.mxu0 0
    %2284 = vmatprep.subr.bf16.mxu0 0
    %2285 = vmatpush1.bf16.msra.mxu0 0
    %2286 = vmatprep.subr.bf16.mxu0 0
    %2287 = vmatpush1.bf16.msra.mxu0 0
    %2288 = vmatprep.subr.bf16.mxu0 0
    %2289 = vmatpush1.bf16.msra.mxu0 0
    %2290 = vmatprep.subr.bf16.mxu0 0
    %2291 = vmatpush1.bf16.msra.mxu0 0
    %2292 = vmatprep.subr.bf16.mxu0 0
    %2293 = vmatpush1.bf16.msra.mxu0 0
    %2294 = vmatprep.mubr.bf16.mxu0 0
    %2295 = vmatmul.mubr.bf16.gmra.mrb[0].mxu0 %v2260
    %v2296 = vpop.f32.mrb[0].mxu0
    %v2297 = vadd.f32 0.0, %v2296
    %v2298 = vpop.f32.mrb[0].mxu0
    %v2299 = vpop.f32.mrb[0].mxu0
    %v2300 = vpop.f32.mrb[0].mxu0
    %2301 = vdwg.mxu0
    %v2302 = vadd.f32 %v2136, %v2297
    %v2303 = vld [vmem:[%s0 + $0x10] sm:$0xff]
    %v2304 = vld [vmem:[%s0 + $0x18] sm:$0xff]
    %v2305 = vpack.c.bf16 %v2303, %v2303
    %v2306 = vpack.c.bf16 %v2304, %v2304
    %2309 = vrot.lane.b32.xlu0 %v2305, 20
    %v2310 = vpop.permute.xlu0 %2309
    %2311 = vrot.lane.b32.xlu0 %v2306, 20
    %v2312 = vpop.permute.xlu0 %2311
    %vm2313 = vcmask 162816
    %v2314 = vsel %vm2313, %v2310, %v2312
    %v2316 = vsel %vm69, %v2314, 0
    %2318 = vmatprep.subr.bf16.mxu0 0
    %2319 = vmatpush1.bf16.msra.mxu0 %v66
    %2320 = vmatprep.subr.bf16.mxu0 0
    %2321 = vmatpush1.bf16.msra.mxu0 %v75
    %2322 = vmatprep.subr.bf16.mxu0 0
    %2323 = vmatpush1.bf16.msra.mxu0 0
    %2324 = vmatprep.subr.bf16.mxu0 0
    %2325 = vmatpush1.bf16.msra.mxu0 0
    %2326 = vmatprep.subr.bf16.mxu0 0
    %2327 = vmatpush1.bf16.msra.mxu0 0
    %2328 = vmatprep.subr.bf16.mxu0 0
    %2329 = vmatpush1.bf16.msra.mxu0 0
    %2330 = vmatprep.subr.bf16.mxu0 0
    %2331 = vmatpush1.bf16.msra.mxu0 0
    %2332 = vmatprep.subr.bf16.mxu0 0
    %2333 = vmatpush1.bf16.msra.mxu0 0
    %2334 = vmatprep.subr.bf16.mxu0 0
    %2335 = vmatpush1.bf16.msra.mxu0 0
    %2336 = vmatprep.subr.bf16.mxu0 0
    %2337 = vmatpush1.bf16.msra.mxu0 0
    %2338 = vmatprep.subr.bf16.mxu0 0
    %2339 = vmatpush1.bf16.msra.mxu0 0
    %2340 = vmatprep.subr.bf16.mxu0 0
    %2341 = vmatpush1.bf16.msra.mxu0 0
    %2342 = vmatprep.subr.bf16.mxu0 0
    %2343 = vmatpush1.bf16.msra.mxu0 0
    %2344 = vmatprep.subr.bf16.mxu0 0
    %2345 = vmatpush1.bf16.msra.mxu0 0
    %2346 = vmatprep.subr.bf16.mxu0 0
    %2347 = vmatpush1.bf16.msra.mxu0 0
    %2348 = vmatprep.subr.bf16.mxu0 0
    %2349 = vmatpush1.bf16.msra.mxu0 0
    %2350 = vmatprep.mubr.bf16.mxu0 0
    %2351 = vmatmul.mubr.bf16.gmra.mrb[0].mxu0 %v2316
    %v2352 = vpop.f32.mrb[0].mxu0
    %v2353 = vadd.f32 %v56, %v2352
    %v2354 = vpop.f32.mrb[0].mxu0
    %v2355 = vpop.f32.mrb[0].mxu0
    %v2356 = vpop.f32.mrb[0].mxu0
    %2357 = vdwg.mxu0
    %v2358 = vmax.f32 %v2353, 0.0
    %v2359 = vpack.c.bf16 %v2358, %v2358
    %2360 = vmatprep.subr.bf16.mxu0 0
    %2361 = vmatpush1.bf16.msra.mxu0 %v157
    %2362 = vmatprep.subr.bf16.mxu0 0
    %2363 = vmatpush1.bf16.msra.mxu0 %v158
    %2364 = vmatprep.subr.bf16.mxu0 0
    %2365 = vmatpush1.bf16.msra.mxu0 %v159
    %2366 = vmatprep.subr.bf16.mxu0 0
    %2367 = vmatpush1.bf16.msra.mxu0 %v160
    %2368 = vmatprep.subr.bf16.mxu0 0
    %2369 = vmatpush1.bf16.msra.mxu0 %v161
    %2370 = vmatprep.subr.bf16.mxu0 0
    %2371 = vmatpush1.bf16.msra.mxu0 %v162
    %2372 = vmatprep.subr.bf16.mxu0 0
    %2373 = vmatpush1.bf16.msra.mxu0 %v163
    %2374 = vmatprep.subr.bf16.mxu0 0
    %2375 = vmatpush1.bf16.msra.mxu0 %v164
    %2376 = vmatprep.subr.bf16.mxu0 0
    %2377 = vmatpush1.bf16.msra.mxu0 0
    %2378 = vmatprep.subr.bf16.mxu0 0
    %2379 = vmatpush1.bf16.msra.mxu0 0
    %2380 = vmatprep.subr.bf16.mxu0 0
    %2381 = vmatpush1.bf16.msra.mxu0 0
    %2382 = vmatprep.subr.bf16.mxu0 0
    %2383 = vmatpush1.bf16.msra.mxu0 0
    %2384 = vmatprep.subr.bf16.mxu0 0
    %2385 = vmatpush1.bf16.msra.mxu0 0
    %2386 = vmatprep.subr.bf16.mxu0 0
    %2387 = vmatpush1.bf16.msra.mxu0 0
    %2388 = vmatprep.subr.bf16.mxu0 0
    %2389 = vmatpush1.bf16.msra.mxu0 0
    %2390 = vmatprep.subr.bf16.mxu0 0
    %2391 = vmatpush1.bf16.msra.mxu0 0
    %2392 = vmatprep.mubr.bf16.mxu0 0
    %2393 = vmatmul.mubr.bf16.gmra.mrb[0].mxu0 %v2359
    %v2394 = vpop.f32.mrb[0].mxu0
    %v2395 = vadd.f32 %v123, %v2394
    %v2396 = vpop.f32.mrb[0].mxu0
    %v2397 = vpop.f32.mrb[0].mxu0
    %v2398 = vpop.f32.mrb[0].mxu0
    %2399 = vdwg.mxu0
    %v2400 = vtanh.pop %v2395
    %v2401 = vpack.c.bf16 %v2400, %v2400
    %s2402 = scalar_lea.vmem %s5, 416
    %v2403 = vld [vmem:[%s2402] sm:$0xf]
    %v2404 = vld [vmem:[%s2402 + $0x4] sm:$0xf]
    %v2405 = vld [vmem:[%s2402 + $0x8] sm:$0xf]
    %v2406 = vld [vmem:[%s2402 + $0xc] sm:$0xf]
    %v2407 = vld [vmem:[%s2402 + $0x10] sm:$0xf]
    %v2408 = vld [vmem:[%s2402 + $0x14] sm:$0xf]
    %v2409 = vld [vmem:[%s2402 + $0x18] sm:$0xf]
    %v2410 = vld [vmem:[%s2402 + $0x1c] sm:$0xf]
    %v2419 = vunpack.c.l.b16 %v2403
    %v2420 = vunpack.c.l.b16 %v2404
    %v2421 = vunpack.c.l.b16 %v2405
    %v2422 = vunpack.c.l.b16 %v2406
    %v2423 = vunpack.c.l.b16 %v2407
    %v2424 = vunpack.c.l.b16 %v2408
    %v2425 = vunpack.c.l.b16 %v2409
    %v2426 = vunpack.c.l.b16 %v2410
    %v2427 = vpack.c.b16 %v2420, %v2419
    %v2428 = vpack.c.b16 %v2422, %v2421
    %v2429 = vpack.c.b16 %v2424, %v2423
    %v2430 = vpack.c.b16 %v2426, %v2425
    %v2436 = vsel %vm346, %v2401, 0
    %2438 = vmatprep.subr.bf16.mxu0 0
    %2439 = vmatpush1.bf16.msra.mxu0 %v2427
    %2440 = vmatprep.subr.bf16.mxu0 0
    %2441 = vmatpush1.bf16.msra.mxu0 %v2428
    %2442 = vmatprep.subr.bf16.mxu0 0
    %2443 = vmatpush1.bf16.msra.mxu0 %v2429
    %2444 = vmatprep.subr.bf16.mxu0 0
    %2445 = vmatpush1.bf16.msra.mxu0 %v2430
    %2446 = vmatprep.subr.bf16.mxu0 0
    %2447 = vmatpush1.bf16.msra.mxu0 0
    %2448 = vmatprep.subr.bf16.mxu0 0
    %2449 = vmatpush1.bf16.msra.mxu0 0
    %2450 = vmatprep.subr.bf16.mxu0 0
    %2451 = vmatpush1.bf16.msra.mxu0 0
    %2452 = vmatprep.subr.bf16.mxu0 0
    %2453 = vmatpush1.bf16.msra.mxu0 0
    %2454 = vmatprep.subr.bf16.mxu0 0
    %2455 = vmatpush1.bf16.msra.mxu0 0
    %2456 = vmatprep.subr.bf16.mxu0 0
    %2457 = vmatpush1.bf16.msra.mxu0 0
    %2458 = vmatprep.subr.bf16.mxu0 0
    %2459 = vmatpush1.bf16.msra.mxu0 0
    %2460 = vmatprep.subr.bf16.mxu0 0
    %2461 = vmatpush1.bf16.msra.mxu0 0
    %2462 = vmatprep.subr.bf16.mxu0 0
    %2463 = vmatpush1.bf16.msra.mxu0 0
    %2464 = vmatprep.subr.bf16.mxu0 0
    %2465 = vmatpush1.bf16.msra.mxu0 0
    %2466 = vmatprep.subr.bf16.mxu0 0
    %2467 = vmatpush1.bf16.msra.mxu0 0
    %2468 = vmatprep.subr.bf16.mxu0 0
    %2469 = vmatpush1.bf16.msra.mxu0 0
    %2470 = vmatprep.mubr.bf16.mxu0 0
    %2471 = vmatmul.mubr.bf16.gmra.mrb[0].mxu0 %v2436
    %v2472 = vpop.f32.mrb[0].mxu0
    %v2473 = vadd.f32 0.0, %v2472
    %v2474 = vpop.f32.mrb[0].mxu0
    %v2475 = vpop.f32.mrb[0].mxu0
    %v2476 = vpop.f32.mrb[0].mxu0
    %2477 = vdwg.mxu0
    %v2478 = vadd.f32 %v2302, %v2473
    %2479 = vrot.lane.b32.xlu0 %v2306, 120
    %v2480 = vpop.permute.xlu0 %2479
    %v2482 = vsel %vm69, %v2480, 0
    %2484 = vmatprep.subr.bf16.mxu0 0
    %2485 = vmatpush1.bf16.msra.mxu0 %v66
    %2486 = vmatprep.subr.bf16.mxu0 0
    %2487 = vmatpush1.bf16.msra.mxu0 %v75
    %2488 = vmatprep.subr.bf16.mxu0 0
    %2489 = vmatpush1.bf16.msra.mxu0 0
    %2490 = vmatprep.subr.bf16.mxu0 0
    %2491 = vmatpush1.bf16.msra.mxu0 0
    %2492 = vmatprep.subr.bf16.mxu0 0
    %2493 = vmatpush1.bf16.msra.mxu0 0
    %2494 = vmatprep.subr.bf16.mxu0 0
    %2495 = vmatpush1.bf16.msra.mxu0 0
    %2496 = vmatprep.subr.bf16.mxu0 0
    %2497 = vmatpush1.bf16.msra.mxu0 0
    %2498 = vmatprep.subr.bf16.mxu0 0
    %2499 = vmatpush1.bf16.msra.mxu0 0
    %2500 = vmatprep.subr.bf16.mxu0 0
    %2501 = vmatpush1.bf16.msra.mxu0 0
    %2502 = vmatprep.subr.bf16.mxu0 0
    %2503 = vmatpush1.bf16.msra.mxu0 0
    %2504 = vmatprep.subr.bf16.mxu0 0
    %2505 = vmatpush1.bf16.msra.mxu0 0
    %2506 = vmatprep.subr.bf16.mxu0 0
    %2507 = vmatpush1.bf16.msra.mxu0 0
    %2508 = vmatprep.subr.bf16.mxu0 0
    %2509 = vmatpush1.bf16.msra.mxu0 0
    %2510 = vmatprep.subr.bf16.mxu0 0
    %2511 = vmatpush1.bf16.msra.mxu0 0
    %2512 = vmatprep.subr.bf16.mxu0 0
    %2513 = vmatpush1.bf16.msra.mxu0 0
    %2514 = vmatprep.subr.bf16.mxu0 0
    %2515 = vmatpush1.bf16.msra.mxu0 0
    %2516 = vmatprep.mubr.bf16.mxu0 0
    %2517 = vmatmul.mubr.bf16.gmra.mrb[0].mxu0 %v2482
    %v2518 = vpop.f32.mrb[0].mxu0
    %v2519 = vadd.f32 %v56, %v2518
    %v2520 = vpop.f32.mrb[0].mxu0
    %v2521 = vpop.f32.mrb[0].mxu0
    %v2522 = vpop.f32.mrb[0].mxu0
    %2523 = vdwg.mxu0
    %v2524 = vmax.f32 %v2519, 0.0
    %v2525 = vpack.c.bf16 %v2524, %v2524
    %2526 = vmatprep.subr.bf16.mxu0 0
    %2527 = vmatpush1.bf16.msra.mxu0 %v157
    %2528 = vmatprep.subr.bf16.mxu0 0
    %2529 = vmatpush1.bf16.msra.mxu0 %v158
    %2530 = vmatprep.subr.bf16.mxu0 0
    %2531 = vmatpush1.bf16.msra.mxu0 %v159
    %2532 = vmatprep.subr.bf16.mxu0 0
    %2533 = vmatpush1.bf16.msra.mxu0 %v160
    %2534 = vmatprep.subr.bf16.mxu0 0
    %2535 = vmatpush1.bf16.msra.mxu0 %v161
    %2536 = vmatprep.subr.bf16.mxu0 0
    %2537 = vmatpush1.bf16.msra.mxu0 %v162
    %2538 = vmatprep.subr.bf16.mxu0 0
    %2539 = vmatpush1.bf16.msra.mxu0 %v163
    %2540 = vmatprep.subr.bf16.mxu0 0
    %2541 = vmatpush1.bf16.msra.mxu0 %v164
    %2542 = vmatprep.subr.bf16.mxu0 0
    %2543 = vmatpush1.bf16.msra.mxu0 0
    %2544 = vmatprep.subr.bf16.mxu0 0
    %2545 = vmatpush1.bf16.msra.mxu0 0
    %2546 = vmatprep.subr.bf16.mxu0 0
    %2547 = vmatpush1.bf16.msra.mxu0 0
    %2548 = vmatprep.subr.bf16.mxu0 0
    %2549 = vmatpush1.bf16.msra.mxu0 0
    %2550 = vmatprep.subr.bf16.mxu0 0
    %2551 = vmatpush1.bf16.msra.mxu0 0
    %2552 = vmatprep.subr.bf16.mxu0 0
    %2553 = vmatpush1.bf16.msra.mxu0 0
    %2554 = vmatprep.subr.bf16.mxu0 0
    %2555 = vmatpush1.bf16.msra.mxu0 0
    %2556 = vmatprep.subr.bf16.mxu0 0
    %2557 = vmatpush1.bf16.msra.mxu0 0
    %2558 = vmatprep.mubr.bf16.mxu0 0
    %2559 = vmatmul.mubr.bf16.gmra.mrb[0].mxu0 %v2525
    %v2560 = vpop.f32.mrb[0].mxu0
    %v2561 = vadd.f32 %v123, %v2560
    %v2562 = vpop.f32.mrb[0].mxu0
    %v2563 = vpop.f32.mrb[0].mxu0
    %v2564 = vpop.f32.mrb[0].mxu0
    %2565 = vdwg.mxu0
    %v2566 = vtanh.pop %v2561
    %v2567 = vpack.c.bf16 %v2566, %v2566
    %s2568 = scalar_lea.vmem %s5, 448
    %v2569 = vld [vmem:[%s2568] sm:$0xf]
    %v2570 = vld [vmem:[%s2568 + $0x4] sm:$0xf]
    %v2571 = vld [vmem:[%s2568 + $0x8] sm:$0xf]
    %v2572 = vld [vmem:[%s2568 + $0xc] sm:$0xf]
    %v2573 = vld [vmem:[%s2568 + $0x10] sm:$0xf]
    %v2574 = vld [vmem:[%s2568 + $0x14] sm:$0xf]
    %v2575 = vld [vmem:[%s2568 + $0x18] sm:$0xf]
    %v2576 = vld [vmem:[%s2568 + $0x1c] sm:$0xf]
    %v2585 = vunpack.c.l.b16 %v2569
    %v2586 = vunpack.c.l.b16 %v2570
    %v2587 = vunpack.c.l.b16 %v2571
    %v2588 = vunpack.c.l.b16 %v2572
    %v2589 = vunpack.c.l.b16 %v2573
    %v2590 = vunpack.c.l.b16 %v2574
    %v2591 = vunpack.c.l.b16 %v2575
    %v2592 = vunpack.c.l.b16 %v2576
    %v2593 = vpack.c.b16 %v2586, %v2585
    %v2594 = vpack.c.b16 %v2588, %v2587
    %v2595 = vpack.c.b16 %v2590, %v2589
    %v2596 = vpack.c.b16 %v2592, %v2591
    %v2602 = vsel %vm346, %v2567, 0
    %2604 = vmatprep.subr.bf16.mxu0 0
    %2605 = vmatpush1.bf16.msra.mxu0 %v2593
    %2606 = vmatprep.subr.bf16.mxu0 0
    %2607 = vmatpush1.bf16.msra.mxu0 %v2594
    %2608 = vmatprep.subr.bf16.mxu0 0
    %2609 = vmatpush1.bf16.msra.mxu0 %v2595
    %2610 = vmatprep.subr.bf16.mxu0 0
    %2611 = vmatpush1.bf16.msra.mxu0 %v2596
    %2612 = vmatprep.subr.bf16.mxu0 0
    %2613 = vmatpush1.bf16.msra.mxu0 0
    %2614 = vmatprep.subr.bf16.mxu0 0
    %2615 = vmatpush1.bf16.msra.mxu0 0
    %2616 = vmatprep.subr.bf16.mxu0 0
    %2617 = vmatpush1.bf16.msra.mxu0 0
    %2618 = vmatprep.subr.bf16.mxu0 0
    %2619 = vmatpush1.bf16.msra.mxu0 0
    %2620 = vmatprep.subr.bf16.mxu0 0
    %2621 = vmatpush1.bf16.msra.mxu0 0
    %2622 = vmatprep.subr.bf16.mxu0 0
    %2623 = vmatpush1.bf16.msra.mxu0 0
    %2624 = vmatprep.subr.bf16.mxu0 0
    %2625 = vmatpush1.bf16.msra.mxu0 0
    %2626 = vmatprep.subr.bf16.mxu0 0
    %2627 = vmatpush1.bf16.msra.mxu0 0
    %2628 = vmatprep.subr.bf16.mxu0 0
    %2629 = vmatpush1.bf16.msra.mxu0 0
    %2630 = vmatprep.subr.bf16.mxu0 0
    %2631 = vmatpush1.bf16.msra.mxu0 0
    %2632 = vmatprep.subr.bf16.mxu0 0
    %2633 = vmatpush1.bf16.msra.mxu0 0
    %2634 = vmatprep.subr.bf16.mxu0 0
    %2635 = vmatpush1.bf16.msra.mxu0 0
    %2636 = vmatprep.mubr.bf16.mxu0 0
    %2637 = vmatmul.mubr.bf16.gmra.mrb[0].mxu0 %v2602
    %v2638 = vpop.f32.mrb[0].mxu0
    %v2639 = vadd.f32 0.0, %v2638
    %v2640 = vpop.f32.mrb[0].mxu0
    %v2641 = vpop.f32.mrb[0].mxu0
    %v2642 = vpop.f32.mrb[0].mxu0
    %2643 = vdwg.mxu0
    %v2644 = vadd.f32 %v2478, %v2639
    %2645 = vrot.lane.b32.xlu0 %v2306, 92
    %v2646 = vpop.permute.xlu0 %2645
    %v2648 = vsel %vm69, %v2646, 0
    %2650 = vmatprep.subr.bf16.mxu0 0
    %2651 = vmatpush1.bf16.msra.mxu0 %v66
    %2652 = vmatprep.subr.bf16.mxu0 0
    %2653 = vmatpush1.bf16.msra.mxu0 %v75
    %2654 = vmatprep.subr.bf16.mxu0 0
    %2655 = vmatpush1.bf16.msra.mxu0 0
    %2656 = vmatprep.subr.bf16.mxu0 0
    %2657 = vmatpush1.bf16.msra.mxu0 0
    %2658 = vmatprep.subr.bf16.mxu0 0
    %2659 = vmatpush1.bf16.msra.mxu0 0
    %2660 = vmatprep.subr.bf16.mxu0 0
    %2661 = vmatpush1.bf16.msra.mxu0 0
    %2662 = vmatprep.subr.bf16.mxu0 0
    %2663 = vmatpush1.bf16.msra.mxu0 0
    %2664 = vmatprep.subr.bf16.mxu0 0
    %2665 = vmatpush1.bf16.msra.mxu0 0
    %2666 = vmatprep.subr.bf16.mxu0 0
    %2667 = vmatpush1.bf16.msra.mxu0 0
    %2668 = vmatprep.subr.bf16.mxu0 0
    %2669 = vmatpush1.bf16.msra.mxu0 0
    %2670 = vmatprep.subr.bf16.mxu0 0
    %2671 = vmatpush1.bf16.msra.mxu0 0
    %2672 = vmatprep.subr.bf16.mxu0 0
    %2673 = vmatpush1.bf16.msra.mxu0 0
    %2674 = vmatprep.subr.bf16.mxu0 0
    %2675 = vmatpush1.bf16.msra.mxu0 0
    %2676 = vmatprep.subr.bf16.mxu0 0
    %2677 = vmatpush1.bf16.msra.mxu0 0
    %2678 = vmatprep.subr.bf16.mxu0 0
    %2679 = vmatpush1.bf16.msra.mxu0 0
    %2680 = vmatprep.subr.bf16.mxu0 0
    %2681 = vmatpush1.bf16.msra.mxu0 0
    %2682 = vmatprep.mubr.bf16.mxu0 0
    %2683 = vmatmul.mubr.bf16.gmra.mrb[0].mxu0 %v2648
    %v2684 = vpop.f32.mrb[0].mxu0
    %v2685 = vadd.f32 %v56, %v2684
    %v2686 = vpop.f32.mrb[0].mxu0
    %v2687 = vpop.f32.mrb[0].mxu0
    %v2688 = vpop.f32.mrb[0].mxu0
    %2689 = vdwg.mxu0
    %v2690 = vmax.f32 %v2685, 0.0
    %v2691 = vpack.c.bf16 %v2690, %v2690
    %2692 = vmatprep.subr.bf16.mxu0 0
    %2693 = vmatpush1.bf16.msra.mxu0 %v157
    %2694 = vmatprep.subr.bf16.mxu0 0
    %2695 = vmatpush1.bf16.msra.mxu0 %v158
    %2696 = vmatprep.subr.bf16.mxu0 0
    %2697 = vmatpush1.bf16.msra.mxu0 %v159
    %2698 = vmatprep.subr.bf16.mxu0 0
    %2699 = vmatpush1.bf16.msra.mxu0 %v160
    %2700 = vmatprep.subr.bf16.mxu0 0
    %2701 = vmatpush1.bf16.msra.mxu0 %v161
    %2702 = vmatprep.subr.bf16.mxu0 0
    %2703 = vmatpush1.bf16.msra.mxu0 %v162
    %2704 = vmatprep.subr.bf16.mxu0 0
    %2705 = vmatpush1.bf16.msra.mxu0 %v163
    %2706 = vmatprep.subr.bf16.mxu0 0
    %2707 = vmatpush1.bf16.msra.mxu0 %v164
    %2708 = vmatprep.subr.bf16.mxu0 0
    %2709 = vmatpush1.bf16.msra.mxu0 0
    %2710 = vmatprep.subr.bf16.mxu0 0
    %2711 = vmatpush1.bf16.msra.mxu0 0
    %2712 = vmatprep.subr.bf16.mxu0 0
    %2713 = vmatpush1.bf16.msra.mxu0 0
    %2714 = vmatprep.subr.bf16.mxu0 0
    %2715 = vmatpush1.bf16.msra.mxu0 0
    %2716 = vmatprep.subr.bf16.mxu0 0
    %2717 = vmatpush1.bf16.msra.mxu0 0
    %2718 = vmatprep.subr.bf16.mxu0 0
    %2719 = vmatpush1.bf16.msra.mxu0 0
    %2720 = vmatprep.subr.bf16.mxu0 0
    %2721 = vmatpush1.bf16.msra.mxu0 0
    %2722 = vmatprep.subr.bf16.mxu0 0
    %2723 = vmatpush1.bf16.msra.mxu0 0
    %2724 = vmatprep.mubr.bf16.mxu0 0
    %2725 = vmatmul.mubr.bf16.gmra.mrb[0].mxu0 %v2691
    %v2726 = vpop.f32.mrb[0].mxu0
    %v2727 = vadd.f32 %v123, %v2726
    %v2728 = vpop.f32.mrb[0].mxu0
    %v2729 = vpop.f32.mrb[0].mxu0
    %v2730 = vpop.f32.mrb[0].mxu0
    %2731 = vdwg.mxu0
    %v2732 = vtanh.pop %v2727
    %v2733 = vpack.c.bf16 %v2732, %v2732
    %s2734 = scalar_lea.vmem %s5, 480
    %v2735 = vld [vmem:[%s2734] sm:$0xf]
    %v2736 = vld [vmem:[%s2734 + $0x4] sm:$0xf]
    %v2737 = vld [vmem:[%s2734 + $0x8] sm:$0xf]
    %v2738 = vld [vmem:[%s2734 + $0xc] sm:$0xf]
    %v2739 = vld [vmem:[%s2734 + $0x10] sm:$0xf]
    %v2740 = vld [vmem:[%s2734 + $0x14] sm:$0xf]
    %v2741 = vld [vmem:[%s2734 + $0x18] sm:$0xf]
    %v2742 = vld [vmem:[%s2734 + $0x1c] sm:$0xf]
    %v2751 = vunpack.c.l.b16 %v2735
    %v2752 = vunpack.c.l.b16 %v2736
    %v2753 = vunpack.c.l.b16 %v2737
    %v2754 = vunpack.c.l.b16 %v2738
    %v2755 = vunpack.c.l.b16 %v2739
    %v2756 = vunpack.c.l.b16 %v2740
    %v2757 = vunpack.c.l.b16 %v2741
    %v2758 = vunpack.c.l.b16 %v2742
    %v2759 = vpack.c.b16 %v2752, %v2751
    %v2760 = vpack.c.b16 %v2754, %v2753
    %v2761 = vpack.c.b16 %v2756, %v2755
    %v2762 = vpack.c.b16 %v2758, %v2757
    %v2768 = vsel %vm346, %v2733, 0
    %2770 = vmatprep.subr.bf16.mxu0 0
    %2771 = vmatpush1.bf16.msra.mxu0 %v2759
    %2772 = vmatprep.subr.bf16.mxu0 0
    %2773 = vmatpush1.bf16.msra.mxu0 %v2760
    %2774 = vmatprep.subr.bf16.mxu0 0
    %2775 = vmatpush1.bf16.msra.mxu0 %v2761
    %2776 = vmatprep.subr.bf16.mxu0 0
    %2777 = vmatpush1.bf16.msra.mxu0 %v2762
    %2778 = vmatprep.subr.bf16.mxu0 0
    %2779 = vmatpush1.bf16.msra.mxu0 0
    %2780 = vmatprep.subr.bf16.mxu0 0
    %2781 = vmatpush1.bf16.msra.mxu0 0
    %2782 = vmatprep.subr.bf16.mxu0 0
    %2783 = vmatpush1.bf16.msra.mxu0 0
    %2784 = vmatprep.subr.bf16.mxu0 0
    %2785 = vmatpush1.bf16.msra.mxu0 0
    %2786 = vmatprep.subr.bf16.mxu0 0
    %2787 = vmatpush1.bf16.msra.mxu0 0
    %2788 = vmatprep.subr.bf16.mxu0 0
    %2789 = vmatpush1.bf16.msra.mxu0 0
    %2790 = vmatprep.subr.bf16.mxu0 0
    %2791 = vmatpush1.bf16.msra.mxu0 0
    %2792 = vmatprep.subr.bf16.mxu0 0
    %2793 = vmatpush1.bf16.msra.mxu0 0
    %2794 = vmatprep.subr.bf16.mxu0 0
    %2795 = vmatpush1.bf16.msra.mxu0 0
    %2796 = vmatprep.subr.bf16.mxu0 0
    %2797 = vmatpush1.bf16.msra.mxu0 0
    %2798 = vmatprep.subr.bf16.mxu0 0
    %2799 = vmatpush1.bf16.msra.mxu0 0
    %2800 = vmatprep.subr.bf16.mxu0 0
    %2801 = vmatpush1.bf16.msra.mxu0 0
    %2802 = vmatprep.mubr.bf16.mxu0 0
    %2803 = vmatmul.mubr.bf16.gmra.mrb[0].mxu0 %v2768
    %v2804 = vpop.f32.mrb[0].mxu0
    %v2805 = vadd.f32 0.0, %v2804
    %v2806 = vpop.f32.mrb[0].mxu0
    %v2807 = vpop.f32.mrb[0].mxu0
    %v2808 = vpop.f32.mrb[0].mxu0
    %2809 = vdwg.mxu0
    %v2810 = vadd.f32 %v2644, %v2805
    %2811 = vrot.lane.b32.xlu0 %v2306, 64
    %v2812 = vpop.permute.xlu0 %2811
    %v2814 = vsel %vm69, %v2812, 0
    %2816 = vmatprep.subr.bf16.mxu0 0
    %2817 = vmatpush1.bf16.msra.mxu0 %v66
    %2818 = vmatprep.subr.bf16.mxu0 0
    %2819 = vmatpush1.bf16.msra.mxu0 %v75
    %2820 = vmatprep.subr.bf16.mxu0 0
    %2821 = vmatpush1.bf16.msra.mxu0 0
    %2822 = vmatprep.subr.bf16.mxu0 0
    %2823 = vmatpush1.bf16.msra.mxu0 0
    %2824 = vmatprep.subr.bf16.mxu0 0
    %2825 = vmatpush1.bf16.msra.mxu0 0
    %2826 = vmatprep.subr.bf16.mxu0 0
    %2827 = vmatpush1.bf16.msra.mxu0 0
    %2828 = vmatprep.subr.bf16.mxu0 0
    %2829 = vmatpush1.bf16.msra.mxu0 0
    %2830 = vmatprep.subr.bf16.mxu0 0
    %2831 = vmatpush1.bf16.msra.mxu0 0
    %2832 = vmatprep.subr.bf16.mxu0 0
    %2833 = vmatpush1.bf16.msra.mxu0 0
    %2834 = vmatprep.subr.bf16.mxu0 0
    %2835 = vmatpush1.bf16.msra.mxu0 0
    %2836 = vmatprep.subr.bf16.mxu0 0
    %2837 = vmatpush1.bf16.msra.mxu0 0
    %2838 = vmatprep.subr.bf16.mxu0 0
    %2839 = vmatpush1.bf16.msra.mxu0 0
    %2840 = vmatprep.subr.bf16.mxu0 0
    %2841 = vmatpush1.bf16.msra.mxu0 0
    %2842 = vmatprep.subr.bf16.mxu0 0
    %2843 = vmatpush1.bf16.msra.mxu0 0
    %2844 = vmatprep.subr.bf16.mxu0 0
    %2845 = vmatpush1.bf16.msra.mxu0 0
    %2846 = vmatprep.subr.bf16.mxu0 0
    %2847 = vmatpush1.bf16.msra.mxu0 0
    %2848 = vmatprep.mubr.bf16.mxu0 0
    %2849 = vmatmul.mubr.bf16.gmra.mrb[0].mxu0 %v2814
    %v2850 = vpop.f32.mrb[0].mxu0
    %v2851 = vadd.f32 %v56, %v2850
    %v2852 = vpop.f32.mrb[0].mxu0
    %v2853 = vpop.f32.mrb[0].mxu0
    %v2854 = vpop.f32.mrb[0].mxu0
    %2855 = vdwg.mxu0
    %v2856 = vmax.f32 %v2851, 0.0
    %v2857 = vpack.c.bf16 %v2856, %v2856
    %2858 = vmatprep.subr.bf16.mxu0 0
    %2859 = vmatpush1.bf16.msra.mxu0 %v157
    %2860 = vmatprep.subr.bf16.mxu0 0
    %2861 = vmatpush1.bf16.msra.mxu0 %v158
    %2862 = vmatprep.subr.bf16.mxu0 0
    %2863 = vmatpush1.bf16.msra.mxu0 %v159
    %2864 = vmatprep.subr.bf16.mxu0 0
    %2865 = vmatpush1.bf16.msra.mxu0 %v160
    %2866 = vmatprep.subr.bf16.mxu0 0
    %2867 = vmatpush1.bf16.msra.mxu0 %v161
    %2868 = vmatprep.subr.bf16.mxu0 0
    %2869 = vmatpush1.bf16.msra.mxu0 %v162
    %2870 = vmatprep.subr.bf16.mxu0 0
    %2871 = vmatpush1.bf16.msra.mxu0 %v163
    %2872 = vmatprep.subr.bf16.mxu0 0
    %2873 = vmatpush1.bf16.msra.mxu0 %v164
    %2874 = vmatprep.subr.bf16.mxu0 0
    %2875 = vmatpush1.bf16.msra.mxu0 0
    %2876 = vmatprep.subr.bf16.mxu0 0
    %2877 = vmatpush1.bf16.msra.mxu0 0
    %2878 = vmatprep.subr.bf16.mxu0 0
    %2879 = vmatpush1.bf16.msra.mxu0 0
    %2880 = vmatprep.subr.bf16.mxu0 0
    %2881 = vmatpush1.bf16.msra.mxu0 0
    %2882 = vmatprep.subr.bf16.mxu0 0
    %2883 = vmatpush1.bf16.msra.mxu0 0
    %2884 = vmatprep.subr.bf16.mxu0 0
    %2885 = vmatpush1.bf16.msra.mxu0 0
    %2886 = vmatprep.subr.bf16.mxu0 0
    %2887 = vmatpush1.bf16.msra.mxu0 0
    %2888 = vmatprep.subr.bf16.mxu0 0
    %2889 = vmatpush1.bf16.msra.mxu0 0
    %2890 = vmatprep.mubr.bf16.mxu0 0
    %2891 = vmatmul.mubr.bf16.gmra.mrb[0].mxu0 %v2857
    %v2892 = vpop.f32.mrb[0].mxu0
    %v2893 = vadd.f32 %v123, %v2892
    %v2894 = vpop.f32.mrb[0].mxu0
    %v2895 = vpop.f32.mrb[0].mxu0
    %v2896 = vpop.f32.mrb[0].mxu0
    %2897 = vdwg.mxu0
    %v2898 = vtanh.pop %v2893
    %v2899 = vpack.c.bf16 %v2898, %v2898
    %s2900 = scalar_lea.vmem %s5, 512
    %v2901 = vld [vmem:[%s2900] sm:$0xf]
    %v2902 = vld [vmem:[%s2900 + $0x4] sm:$0xf]
    %v2903 = vld [vmem:[%s2900 + $0x8] sm:$0xf]
    %v2904 = vld [vmem:[%s2900 + $0xc] sm:$0xf]
    %v2905 = vld [vmem:[%s2900 + $0x10] sm:$0xf]
    %v2906 = vld [vmem:[%s2900 + $0x14] sm:$0xf]
    %v2907 = vld [vmem:[%s2900 + $0x18] sm:$0xf]
    %v2908 = vld [vmem:[%s2900 + $0x1c] sm:$0xf]
    %v2917 = vunpack.c.l.b16 %v2901
    %v2918 = vunpack.c.l.b16 %v2902
    %v2919 = vunpack.c.l.b16 %v2903
    %v2920 = vunpack.c.l.b16 %v2904
    %v2921 = vunpack.c.l.b16 %v2905
    %v2922 = vunpack.c.l.b16 %v2906
    %v2923 = vunpack.c.l.b16 %v2907
    %v2924 = vunpack.c.l.b16 %v2908
    %v2925 = vpack.c.b16 %v2918, %v2917
    %v2926 = vpack.c.b16 %v2920, %v2919
    %v2927 = vpack.c.b16 %v2922, %v2921
    %v2928 = vpack.c.b16 %v2924, %v2923
    %v2934 = vsel %vm346, %v2899, 0
    %2936 = vmatprep.subr.bf16.mxu0 0
    %2937 = vmatpush1.bf16.msra.mxu0 %v2925
    %2938 = vmatprep.subr.bf16.mxu0 0
    %2939 = vmatpush1.bf16.msra.mxu0 %v2926
    %2940 = vmatprep.subr.bf16.mxu0 0
    %2941 = vmatpush1.bf16.msra.mxu0 %v2927
    %2942 = vmatprep.subr.bf16.mxu0 0
    %2943 = vmatpush1.bf16.msra.mxu0 %v2928
    %2944 = vmatprep.subr.bf16.mxu0 0
    %2945 = vmatpush1.bf16.msra.mxu0 0
    %2946 = vmatprep.subr.bf16.mxu0 0
    %2947 = vmatpush1.bf16.msra.mxu0 0
    %2948 = vmatprep.subr.bf16.mxu0 0
    %2949 = vmatpush1.bf16.msra.mxu0 0
    %2950 = vmatprep.subr.bf16.mxu0 0
    %2951 = vmatpush1.bf16.msra.mxu0 0
    %2952 = vmatprep.subr.bf16.mxu0 0
    %2953 = vmatpush1.bf16.msra.mxu0 0
    %2954 = vmatprep.subr.bf16.mxu0 0
    %2955 = vmatpush1.bf16.msra.mxu0 0
    %2956 = vmatprep.subr.bf16.mxu0 0
    %2957 = vmatpush1.bf16.msra.mxu0 0
    %2958 = vmatprep.subr.bf16.mxu0 0
    %2959 = vmatpush1.bf16.msra.mxu0 0
    %2960 = vmatprep.subr.bf16.mxu0 0
    %2961 = vmatpush1.bf16.msra.mxu0 0
    %2962 = vmatprep.subr.bf16.mxu0 0
    %2963 = vmatpush1.bf16.msra.mxu0 0
    %2964 = vmatprep.subr.bf16.mxu0 0
    %2965 = vmatpush1.bf16.msra.mxu0 0
    %2966 = vmatprep.subr.bf16.mxu0 0
    %2967 = vmatpush1.bf16.msra.mxu0 0
    %2968 = vmatprep.mubr.bf16.mxu0 0
    %2969 = vmatmul.mubr.bf16.gmra.mrb[0].mxu0 %v2934
    %v2970 = vpop.f32.mrb[0].mxu0
    %v2971 = vadd.f32 0.0, %v2970
    %v2972 = vpop.f32.mrb[0].mxu0
    %v2973 = vpop.f32.mrb[0].mxu0
    %v2974 = vpop.f32.mrb[0].mxu0
    %2975 = vdwg.mxu0
    %v2976 = vadd.f32 %v2810, %v2971
    %2977 = vrot.lane.b32.xlu0 %v2306, 36
    %v2978 = vpop.permute.xlu0 %2977
    %v2980 = vsel %vm69, %v2978, 0
    %2982 = vmatprep.subr.bf16.mxu0 0
    %2983 = vmatpush1.bf16.msra.mxu0 %v66
    %2984 = vmatprep.subr.bf16.mxu0 0
    %2985 = vmatpush1.bf16.msra.mxu0 %v75
    %2986 = vmatprep.subr.bf16.mxu0 0
    %2987 = vmatpush1.bf16.msra.mxu0 0
    %2988 = vmatprep.subr.bf16.mxu0 0
    %2989 = vmatpush1.bf16.msra.mxu0 0
    %2990 = vmatprep.subr.bf16.mxu0 0
    %2991 = vmatpush1.bf16.msra.mxu0 0
    %2992 = vmatprep.subr.bf16.mxu0 0
    %2993 = vmatpush1.bf16.msra.mxu0 0
    %2994 = vmatprep.subr.bf16.mxu0 0
    %2995 = vmatpush1.bf16.msra.mxu0 0
    %2996 = vmatprep.subr.bf16.mxu0 0
    %2997 = vmatpush1.bf16.msra.mxu0 0
    %2998 = vmatprep.subr.bf16.mxu0 0
    %2999 = vmatpush1.bf16.msra.mxu0 0
    %3000 = vmatprep.subr.bf16.mxu0 0
    %3001 = vmatpush1.bf16.msra.mxu0 0
    %3002 = vmatprep.subr.bf16.mxu0 0
    %3003 = vmatpush1.bf16.msra.mxu0 0
    %3004 = vmatprep.subr.bf16.mxu0 0
    %3005 = vmatpush1.bf16.msra.mxu0 0
    %3006 = vmatprep.subr.bf16.mxu0 0
    %3007 = vmatpush1.bf16.msra.mxu0 0
    %3008 = vmatprep.subr.bf16.mxu0 0
    %3009 = vmatpush1.bf16.msra.mxu0 0
    %3010 = vmatprep.subr.bf16.mxu0 0
    %3011 = vmatpush1.bf16.msra.mxu0 0
    %3012 = vmatprep.subr.bf16.mxu0 0
    %3013 = vmatpush1.bf16.msra.mxu0 0
    %3014 = vmatprep.mubr.bf16.mxu0 0
    %3015 = vmatmul.mubr.bf16.gmra.mrb[0].mxu0 %v2980
    %v3016 = vpop.f32.mrb[0].mxu0
    %v3017 = vadd.f32 %v56, %v3016
    %v3018 = vpop.f32.mrb[0].mxu0
    %v3019 = vpop.f32.mrb[0].mxu0
    %v3020 = vpop.f32.mrb[0].mxu0
    %3021 = vdwg.mxu0
    %v3022 = vmax.f32 %v3017, 0.0
    %v3023 = vpack.c.bf16 %v3022, %v3022
    %3024 = vmatprep.subr.bf16.mxu0 0
    %3025 = vmatpush1.bf16.msra.mxu0 %v157
    %3026 = vmatprep.subr.bf16.mxu0 0
    %3027 = vmatpush1.bf16.msra.mxu0 %v158
    %3028 = vmatprep.subr.bf16.mxu0 0
    %3029 = vmatpush1.bf16.msra.mxu0 %v159
    %3030 = vmatprep.subr.bf16.mxu0 0
    %3031 = vmatpush1.bf16.msra.mxu0 %v160
    %3032 = vmatprep.subr.bf16.mxu0 0
    %3033 = vmatpush1.bf16.msra.mxu0 %v161
    %3034 = vmatprep.subr.bf16.mxu0 0
    %3035 = vmatpush1.bf16.msra.mxu0 %v162
    %3036 = vmatprep.subr.bf16.mxu0 0
    %3037 = vmatpush1.bf16.msra.mxu0 %v163
    %3038 = vmatprep.subr.bf16.mxu0 0
    %3039 = vmatpush1.bf16.msra.mxu0 %v164
    %3040 = vmatprep.subr.bf16.mxu0 0
    %3041 = vmatpush1.bf16.msra.mxu0 0
    %3042 = vmatprep.subr.bf16.mxu0 0
    %3043 = vmatpush1.bf16.msra.mxu0 0
    %3044 = vmatprep.subr.bf16.mxu0 0
    %3045 = vmatpush1.bf16.msra.mxu0 0
    %3046 = vmatprep.subr.bf16.mxu0 0
    %3047 = vmatpush1.bf16.msra.mxu0 0
    %3048 = vmatprep.subr.bf16.mxu0 0
    %3049 = vmatpush1.bf16.msra.mxu0 0
    %3050 = vmatprep.subr.bf16.mxu0 0
    %3051 = vmatpush1.bf16.msra.mxu0 0
    %3052 = vmatprep.subr.bf16.mxu0 0
    %3053 = vmatpush1.bf16.msra.mxu0 0
    %3054 = vmatprep.subr.bf16.mxu0 0
    %3055 = vmatpush1.bf16.msra.mxu0 0
    %3056 = vmatprep.mubr.bf16.mxu0 0
    %3057 = vmatmul.mubr.bf16.gmra.mrb[0].mxu0 %v3023
    %v3058 = vpop.f32.mrb[0].mxu0
    %v3059 = vadd.f32 %v123, %v3058
    %v3060 = vpop.f32.mrb[0].mxu0
    %v3061 = vpop.f32.mrb[0].mxu0
    %v3062 = vpop.f32.mrb[0].mxu0
    %3063 = vdwg.mxu0
    %v3064 = vtanh.pop %v3059
    %v3065 = vpack.c.bf16 %v3064, %v3064
    %s3066 = scalar_lea.vmem %s5, 544
    %v3067 = vld [vmem:[%s3066] sm:$0xf]
    %v3068 = vld [vmem:[%s3066 + $0x4] sm:$0xf]
    %v3069 = vld [vmem:[%s3066 + $0x8] sm:$0xf]
    %v3070 = vld [vmem:[%s3066 + $0xc] sm:$0xf]
    %v3071 = vld [vmem:[%s3066 + $0x10] sm:$0xf]
    %v3072 = vld [vmem:[%s3066 + $0x14] sm:$0xf]
    %v3073 = vld [vmem:[%s3066 + $0x18] sm:$0xf]
    %v3074 = vld [vmem:[%s3066 + $0x1c] sm:$0xf]
    %v3083 = vunpack.c.l.b16 %v3067
    %v3084 = vunpack.c.l.b16 %v3068
    %v3085 = vunpack.c.l.b16 %v3069
    %v3086 = vunpack.c.l.b16 %v3070
    %v3087 = vunpack.c.l.b16 %v3071
    %v3088 = vunpack.c.l.b16 %v3072
    %v3089 = vunpack.c.l.b16 %v3073
    %v3090 = vunpack.c.l.b16 %v3074
    %v3091 = vpack.c.b16 %v3084, %v3083
    %v3092 = vpack.c.b16 %v3086, %v3085
    %v3093 = vpack.c.b16 %v3088, %v3087
    %v3094 = vpack.c.b16 %v3090, %v3089
    %v3100 = vsel %vm346, %v3065, 0
    %3102 = vmatprep.subr.bf16.mxu0 0
    %3103 = vmatpush1.bf16.msra.mxu0 %v3091
    %3104 = vmatprep.subr.bf16.mxu0 0
    %3105 = vmatpush1.bf16.msra.mxu0 %v3092
    %3106 = vmatprep.subr.bf16.mxu0 0
    %3107 = vmatpush1.bf16.msra.mxu0 %v3093
    %3108 = vmatprep.subr.bf16.mxu0 0
    %3109 = vmatpush1.bf16.msra.mxu0 %v3094
    %3110 = vmatprep.subr.bf16.mxu0 0
    %3111 = vmatpush1.bf16.msra.mxu0 0
    %3112 = vmatprep.subr.bf16.mxu0 0
    %3113 = vmatpush1.bf16.msra.mxu0 0
    %3114 = vmatprep.subr.bf16.mxu0 0
    %3115 = vmatpush1.bf16.msra.mxu0 0
    %3116 = vmatprep.subr.bf16.mxu0 0
    %3117 = vmatpush1.bf16.msra.mxu0 0
    %3118 = vmatprep.subr.bf16.mxu0 0
    %3119 = vmatpush1.bf16.msra.mxu0 0
    %3120 = vmatprep.subr.bf16.mxu0 0
    %3121 = vmatpush1.bf16.msra.mxu0 0
    %3122 = vmatprep.subr.bf16.mxu0 0
    %3123 = vmatpush1.bf16.msra.mxu0 0
    %3124 = vmatprep.subr.bf16.mxu0 0
    %3125 = vmatpush1.bf16.msra.mxu0 0
    %3126 = vmatprep.subr.bf16.mxu0 0
    %3127 = vmatpush1.bf16.msra.mxu0 0
    %3128 = vmatprep.subr.bf16.mxu0 0
    %3129 = vmatpush1.bf16.msra.mxu0 0
    %3130 = vmatprep.subr.bf16.mxu0 0
    %3131 = vmatpush1.bf16.msra.mxu0 0
    %3132 = vmatprep.subr.bf16.mxu0 0
    %3133 = vmatpush1.bf16.msra.mxu0 0
    %3134 = vmatprep.mubr.bf16.mxu0 0
    %3135 = vmatmul.mubr.bf16.gmra.mrb[0].mxu0 %v3100
    %v3136 = vpop.f32.mrb[0].mxu0
    %v3137 = vadd.f32 0.0, %v3136
    %v3138 = vpop.f32.mrb[0].mxu0
    %v3139 = vpop.f32.mrb[0].mxu0
    %v3140 = vpop.f32.mrb[0].mxu0
    %3141 = vdwg.mxu0
    %v3142 = vadd.f32 %v2976, %v3137
    %v3143 = vld [vmem:[%s0 + $0x18] sm:$0xff]
    %v3144 = vld [vmem:[%s0 + $0x20] sm:$0xff]
    %v3145 = vpack.c.bf16 %v3143, %v3143
    %v3146 = vpack.c.bf16 %v3144, %v3144
    %3149 = vrot.lane.b32.xlu0 %v3145, 8
    %v3150 = vpop.permute.xlu0 %3149
    %3151 = vrot.lane.b32.xlu0 %v3146, 8
    %v3152 = vpop.permute.xlu0 %3151
    %vm3153 = vcmask 64512
    %v3154 = vsel %vm3153, %v3150, %v3152
    %v3156 = vsel %vm69, %v3154, 0
    %3158 = vmatprep.subr.bf16.mxu0 0
    %3159 = vmatpush1.bf16.msra.mxu0 %v66
    %3160 = vmatprep.subr.bf16.mxu0 0
    %3161 = vmatpush1.bf16.msra.mxu0 %v75
    %3162 = vmatprep.subr.bf16.mxu0 0
    %3163 = vmatpush1.bf16.msra.mxu0 0
    %3164 = vmatprep.subr.bf16.mxu0 0
    %3165 = vmatpush1.bf16.msra.mxu0 0
    %3166 = vmatprep.subr.bf16.mxu0 0
    %3167 = vmatpush1.bf16.msra.mxu0 0
    %3168 = vmatprep.subr.bf16.mxu0 0
    %3169 = vmatpush1.bf16.msra.mxu0 0
    %3170 = vmatprep.subr.bf16.mxu0 0
    %3171 = vmatpush1.bf16.msra.mxu0 0
    %3172 = vmatprep.subr.bf16.mxu0 0
    %3173 = vmatpush1.bf16.msra.mxu0 0
    %3174 = vmatprep.subr.bf16.mxu0 0
    %3175 = vmatpush1.bf16.msra.mxu0 0
    %3176 = vmatprep.subr.bf16.mxu0 0
    %3177 = vmatpush1.bf16.msra.mxu0 0
    %3178 = vmatprep.subr.bf16.mxu0 0
    %3179 = vmatpush1.bf16.msra.mxu0 0
    %3180 = vmatprep.subr.bf16.mxu0 0
    %3181 = vmatpush1.bf16.msra.mxu0 0
    %3182 = vmatprep.subr.bf16.mxu0 0
    %3183 = vmatpush1.bf16.msra.mxu0 0
    %3184 = vmatprep.subr.bf16.mxu0 0
    %3185 = vmatpush1.bf16.msra.mxu0 0
    %3186 = vmatprep.subr.bf16.mxu0 0
    %3187 = vmatpush1.bf16.msra.mxu0 0
    %3188 = vmatprep.subr.bf16.mxu0 0
    %3189 = vmatpush1.bf16.msra.mxu0 0
    %3190 = vmatprep.mubr.bf16.mxu0 0
    %3191 = vmatmul.mubr.bf16.gmra.mrb[0].mxu0 %v3156
    %v3192 = vpop.f32.mrb[0].mxu0
    %v3193 = vadd.f32 %v56, %v3192
    %v3194 = vpop.f32.mrb[0].mxu0
    %v3195 = vpop.f32.mrb[0].mxu0
    %v3196 = vpop.f32.mrb[0].mxu0
    %3197 = vdwg.mxu0
    %v3198 = vmax.f32 %v3193, 0.0
    %v3199 = vpack.c.bf16 %v3198, %v3198
    %3200 = vmatprep.subr.bf16.mxu0 0
    %3201 = vmatpush1.bf16.msra.mxu0 %v157
    %3202 = vmatprep.subr.bf16.mxu0 0
    %3203 = vmatpush1.bf16.msra.mxu0 %v158
    %3204 = vmatprep.subr.bf16.mxu0 0
    %3205 = vmatpush1.bf16.msra.mxu0 %v159
    %3206 = vmatprep.subr.bf16.mxu0 0
    %3207 = vmatpush1.bf16.msra.mxu0 %v160
    %3208 = vmatprep.subr.bf16.mxu0 0
    %3209 = vmatpush1.bf16.msra.mxu0 %v161
    %3210 = vmatprep.subr.bf16.mxu0 0
    %3211 = vmatpush1.bf16.msra.mxu0 %v162
    %3212 = vmatprep.subr.bf16.mxu0 0
    %3213 = vmatpush1.bf16.msra.mxu0 %v163
    %3214 = vmatprep.subr.bf16.mxu0 0
    %3215 = vmatpush1.bf16.msra.mxu0 %v164
    %3216 = vmatprep.subr.bf16.mxu0 0
    %3217 = vmatpush1.bf16.msra.mxu0 0
    %3218 = vmatprep.subr.bf16.mxu0 0
    %3219 = vmatpush1.bf16.msra.mxu0 0
    %3220 = vmatprep.subr.bf16.mxu0 0
    %3221 = vmatpush1.bf16.msra.mxu0 0
    %3222 = vmatprep.subr.bf16.mxu0 0
    %3223 = vmatpush1.bf16.msra.mxu0 0
    %3224 = vmatprep.subr.bf16.mxu0 0
    %3225 = vmatpush1.bf16.msra.mxu0 0
    %3226 = vmatprep.subr.bf16.mxu0 0
    %3227 = vmatpush1.bf16.msra.mxu0 0
    %3228 = vmatprep.subr.bf16.mxu0 0
    %3229 = vmatpush1.bf16.msra.mxu0 0
    %3230 = vmatprep.subr.bf16.mxu0 0
    %3231 = vmatpush1.bf16.msra.mxu0 0
    %3232 = vmatprep.mubr.bf16.mxu0 0
    %3233 = vmatmul.mubr.bf16.gmra.mrb[0].mxu0 %v3199
    %v3234 = vpop.f32.mrb[0].mxu0
    %v3235 = vadd.f32 %v123, %v3234
    %v3236 = vpop.f32.mrb[0].mxu0
    %v3237 = vpop.f32.mrb[0].mxu0
    %v3238 = vpop.f32.mrb[0].mxu0
    %3239 = vdwg.mxu0
    %v3240 = vtanh.pop %v3235
    %v3241 = vpack.c.bf16 %v3240, %v3240
    %s3242 = scalar_lea.vmem %s5, 576
    %v3243 = vld [vmem:[%s3242] sm:$0xf]
    %v3244 = vld [vmem:[%s3242 + $0x4] sm:$0xf]
    %v3245 = vld [vmem:[%s3242 + $0x8] sm:$0xf]
    %v3246 = vld [vmem:[%s3242 + $0xc] sm:$0xf]
    %v3247 = vld [vmem:[%s3242 + $0x10] sm:$0xf]
    %v3248 = vld [vmem:[%s3242 + $0x14] sm:$0xf]
    %v3249 = vld [vmem:[%s3242 + $0x18] sm:$0xf]
    %v3250 = vld [vmem:[%s3242 + $0x1c] sm:$0xf]
    %v3259 = vunpack.c.l.b16 %v3243
    %v3260 = vunpack.c.l.b16 %v3244
    %v3261 = vunpack.c.l.b16 %v3245
    %v3262 = vunpack.c.l.b16 %v3246
    %v3263 = vunpack.c.l.b16 %v3247
    %v3264 = vunpack.c.l.b16 %v3248
    %v3265 = vunpack.c.l.b16 %v3249
    %v3266 = vunpack.c.l.b16 %v3250
    %v3267 = vpack.c.b16 %v3260, %v3259
    %v3268 = vpack.c.b16 %v3262, %v3261
    %v3269 = vpack.c.b16 %v3264, %v3263
    %v3270 = vpack.c.b16 %v3266, %v3265
    %v3276 = vsel %vm346, %v3241, 0
    %3278 = vmatprep.subr.bf16.mxu0 0
    %3279 = vmatpush1.bf16.msra.mxu0 %v3267
    %3280 = vmatprep.subr.bf16.mxu0 0
    %3281 = vmatpush1.bf16.msra.mxu0 %v3268
    %3282 = vmatprep.subr.bf16.mxu0 0
    %3283 = vmatpush1.bf16.msra.mxu0 %v3269
    %3284 = vmatprep.subr.bf16.mxu0 0
    %3285 = vmatpush1.bf16.msra.mxu0 %v3270
    %3286 = vmatprep.subr.bf16.mxu0 0
    %3287 = vmatpush1.bf16.msra.mxu0 0
    %3288 = vmatprep.subr.bf16.mxu0 0
    %3289 = vmatpush1.bf16.msra.mxu0 0
    %3290 = vmatprep.subr.bf16.mxu0 0
    %3291 = vmatpush1.bf16.msra.mxu0 0
    %3292 = vmatprep.subr.bf16.mxu0 0
    %3293 = vmatpush1.bf16.msra.mxu0 0
    %3294 = vmatprep.subr.bf16.mxu0 0
    %3295 = vmatpush1.bf16.msra.mxu0 0
    %3296 = vmatprep.subr.bf16.mxu0 0
    %3297 = vmatpush1.bf16.msra.mxu0 0
    %3298 = vmatprep.subr.bf16.mxu0 0
    %3299 = vmatpush1.bf16.msra.mxu0 0
    %3300 = vmatprep.subr.bf16.mxu0 0
    %3301 = vmatpush1.bf16.msra.mxu0 0
    %3302 = vmatprep.subr.bf16.mxu0 0
    %3303 = vmatpush1.bf16.msra.mxu0 0
    %3304 = vmatprep.subr.bf16.mxu0 0
    %3305 = vmatpush1.bf16.msra.mxu0 0
    %3306 = vmatprep.subr.bf16.mxu0 0
    %3307 = vmatpush1.bf16.msra.mxu0 0
    %3308 = vmatprep.subr.bf16.mxu0 0
    %3309 = vmatpush1.bf16.msra.mxu0 0
    %3310 = vmatprep.mubr.bf16.mxu0 0
    %3311 = vmatmul.mubr.bf16.gmra.mrb[0].mxu0 %v3276
    %v3312 = vpop.f32.mrb[0].mxu0
    %v3313 = vadd.f32 0.0, %v3312
    %v3314 = vpop.f32.mrb[0].mxu0
    %v3315 = vpop.f32.mrb[0].mxu0
    %v3316 = vpop.f32.mrb[0].mxu0
    %3317 = vdwg.mxu0
    %v3318 = vadd.f32 %v3142, %v3313
    %3319 = vrot.lane.b32.xlu0 %v3146, 108
    %v3320 = vpop.permute.xlu0 %3319
    %v3322 = vsel %vm69, %v3320, 0
    %3324 = vmatprep.subr.bf16.mxu0 0
    %3325 = vmatpush1.bf16.msra.mxu0 %v66
    %3326 = vmatprep.subr.bf16.mxu0 0
    %3327 = vmatpush1.bf16.msra.mxu0 %v75
    %3328 = vmatprep.subr.bf16.mxu0 0
    %3329 = vmatpush1.bf16.msra.mxu0 0
    %3330 = vmatprep.subr.bf16.mxu0 0
    %3331 = vmatpush1.bf16.msra.mxu0 0
    %3332 = vmatprep.subr.bf16.mxu0 0
    %3333 = vmatpush1.bf16.msra.mxu0 0
    %3334 = vmatprep.subr.bf16.mxu0 0
    %3335 = vmatpush1.bf16.msra.mxu0 0
    %3336 = vmatprep.subr.bf16.mxu0 0
    %3337 = vmatpush1.bf16.msra.mxu0 0
    %3338 = vmatprep.subr.bf16.mxu0 0
    %3339 = vmatpush1.bf16.msra.mxu0 0
    %3340 = vmatprep.subr.bf16.mxu0 0
    %3341 = vmatpush1.bf16.msra.mxu0 0
    %3342 = vmatprep.subr.bf16.mxu0 0
    %3343 = vmatpush1.bf16.msra.mxu0 0
    %3344 = vmatprep.subr.bf16.mxu0 0
    %3345 = vmatpush1.bf16.msra.mxu0 0
    %3346 = vmatprep.subr.bf16.mxu0 0
    %3347 = vmatpush1.bf16.msra.mxu0 0
    %3348 = vmatprep.subr.bf16.mxu0 0
    %3349 = vmatpush1.bf16.msra.mxu0 0
    %3350 = vmatprep.subr.bf16.mxu0 0
    %3351 = vmatpush1.bf16.msra.mxu0 0
    %3352 = vmatprep.subr.bf16.mxu0 0
    %3353 = vmatpush1.bf16.msra.mxu0 0
    %3354 = vmatprep.subr.bf16.mxu0 0
    %3355 = vmatpush1.bf16.msra.mxu0 0
    %3356 = vmatprep.mubr.bf16.mxu0 0
    %3357 = vmatmul.mubr.bf16.gmra.mrb[0].mxu0 %v3322
    %v3358 = vpop.f32.mrb[0].mxu0
    %v3359 = vadd.f32 %v56, %v3358
    %v3360 = vpop.f32.mrb[0].mxu0
    %v3361 = vpop.f32.mrb[0].mxu0
    %v3362 = vpop.f32.mrb[0].mxu0
    %3363 = vdwg.mxu0
    %v3364 = vmax.f32 %v3359, 0.0
    %v3365 = vpack.c.bf16 %v3364, %v3364
    %3366 = vmatprep.subr.bf16.mxu0 0
    %3367 = vmatpush1.bf16.msra.mxu0 %v157
    %3368 = vmatprep.subr.bf16.mxu0 0
    %3369 = vmatpush1.bf16.msra.mxu0 %v158
    %3370 = vmatprep.subr.bf16.mxu0 0
    %3371 = vmatpush1.bf16.msra.mxu0 %v159
    %3372 = vmatprep.subr.bf16.mxu0 0
    %3373 = vmatpush1.bf16.msra.mxu0 %v160
    %3374 = vmatprep.subr.bf16.mxu0 0
    %3375 = vmatpush1.bf16.msra.mxu0 %v161
    %3376 = vmatprep.subr.bf16.mxu0 0
    %3377 = vmatpush1.bf16.msra.mxu0 %v162
    %3378 = vmatprep.subr.bf16.mxu0 0
    %3379 = vmatpush1.bf16.msra.mxu0 %v163
    %3380 = vmatprep.subr.bf16.mxu0 0
    %3381 = vmatpush1.bf16.msra.mxu0 %v164
    %3382 = vmatprep.subr.bf16.mxu0 0
    %3383 = vmatpush1.bf16.msra.mxu0 0
    %3384 = vmatprep.subr.bf16.mxu0 0
    %3385 = vmatpush1.bf16.msra.mxu0 0
    %3386 = vmatprep.subr.bf16.mxu0 0
    %3387 = vmatpush1.bf16.msra.mxu0 0
    %3388 = vmatprep.subr.bf16.mxu0 0
    %3389 = vmatpush1.bf16.msra.mxu0 0
    %3390 = vmatprep.subr.bf16.mxu0 0
    %3391 = vmatpush1.bf16.msra.mxu0 0
    %3392 = vmatprep.subr.bf16.mxu0 0
    %3393 = vmatpush1.bf16.msra.mxu0 0
    %3394 = vmatprep.subr.bf16.mxu0 0
    %3395 = vmatpush1.bf16.msra.mxu0 0
    %3396 = vmatprep.subr.bf16.mxu0 0
    %3397 = vmatpush1.bf16.msra.mxu0 0
    %3398 = vmatprep.mubr.bf16.mxu0 0
    %3399 = vmatmul.mubr.bf16.gmra.mrb[0].mxu0 %v3365
    %v3400 = vpop.f32.mrb[0].mxu0
    %v3401 = vadd.f32 %v123, %v3400
    %v3402 = vpop.f32.mrb[0].mxu0
    %v3403 = vpop.f32.mrb[0].mxu0
    %v3404 = vpop.f32.mrb[0].mxu0
    %3405 = vdwg.mxu0
    %v3406 = vtanh.pop %v3401
    %v3407 = vpack.c.bf16 %v3406, %v3406
    %s3408 = scalar_lea.vmem %s5, 608
    %v3409 = vld [vmem:[%s3408] sm:$0xf]
    %v3410 = vld [vmem:[%s3408 + $0x4] sm:$0xf]
    %v3411 = vld [vmem:[%s3408 + $0x8] sm:$0xf]
    %v3412 = vld [vmem:[%s3408 + $0xc] sm:$0xf]
    %v3413 = vld [vmem:[%s3408 + $0x10] sm:$0xf]
    %v3414 = vld [vmem:[%s3408 + $0x14] sm:$0xf]
    %v3415 = vld [vmem:[%s3408 + $0x18] sm:$0xf]
    %v3416 = vld [vmem:[%s3408 + $0x1c] sm:$0xf]
    %v3425 = vunpack.c.l.b16 %v3409
    %v3426 = vunpack.c.l.b16 %v3410
    %v3427 = vunpack.c.l.b16 %v3411
    %v3428 = vunpack.c.l.b16 %v3412
    %v3429 = vunpack.c.l.b16 %v3413
    %v3430 = vunpack.c.l.b16 %v3414
    %v3431 = vunpack.c.l.b16 %v3415
    %v3432 = vunpack.c.l.b16 %v3416
    %v3433 = vpack.c.b16 %v3426, %v3425
    %v3434 = vpack.c.b16 %v3428, %v3427
    %v3435 = vpack.c.b16 %v3430, %v3429
    %v3436 = vpack.c.b16 %v3432, %v3431
    %v3442 = vsel %vm346, %v3407, 0
    %3444 = vmatprep.subr.bf16.mxu0 0
    %3445 = vmatpush1.bf16.msra.mxu0 %v3433
    %3446 = vmatprep.subr.bf16.mxu0 0
    %3447 = vmatpush1.bf16.msra.mxu0 %v3434
    %3448 = vmatprep.subr.bf16.mxu0 0
    %3449 = vmatpush1.bf16.msra.mxu0 %v3435
    %3450 = vmatprep.subr.bf16.mxu0 0
    %3451 = vmatpush1.bf16.msra.mxu0 %v3436
    %3452 = vmatprep.subr.bf16.mxu0 0
    %3453 = vmatpush1.bf16.msra.mxu0 0
    %3454 = vmatprep.subr.bf16.mxu0 0
    %3455 = vmatpush1.bf16.msra.mxu0 0
    %3456 = vmatprep.subr.bf16.mxu0 0
    %3457 = vmatpush1.bf16.msra.mxu0 0
    %3458 = vmatprep.subr.bf16.mxu0 0
    %3459 = vmatpush1.bf16.msra.mxu0 0
    %3460 = vmatprep.subr.bf16.mxu0 0
    %3461 = vmatpush1.bf16.msra.mxu0 0
    %3462 = vmatprep.subr.bf16.mxu0 0
    %3463 = vmatpush1.bf16.msra.mxu0 0
    %3464 = vmatprep.subr.bf16.mxu0 0
    %3465 = vmatpush1.bf16.msra.mxu0 0
    %3466 = vmatprep.subr.bf16.mxu0 0
    %3467 = vmatpush1.bf16.msra.mxu0 0
    %3468 = vmatprep.subr.bf16.mxu0 0
    %3469 = vmatpush1.bf16.msra.mxu0 0
    %3470 = vmatprep.subr.bf16.mxu0 0
    %3471 = vmatpush1.bf16.msra.mxu0 0
    %3472 = vmatprep.subr.bf16.mxu0 0
    %3473 = vmatpush1.bf16.msra.mxu0 0
    %3474 = vmatprep.subr.bf16.mxu0 0
    %3475 = vmatpush1.bf16.msra.mxu0 0
    %3476 = vmatprep.mubr.bf16.mxu0 0
    %3477 = vmatmul.mubr.bf16.gmra.mrb[0].mxu0 %v3442
    %v3478 = vpop.f32.mrb[0].mxu0
    %v3479 = vadd.f32 0.0, %v3478
    %v3480 = vpop.f32.mrb[0].mxu0
    %v3481 = vpop.f32.mrb[0].mxu0
    %v3482 = vpop.f32.mrb[0].mxu0
    %3483 = vdwg.mxu0
    %v3484 = vadd.f32 %v3318, %v3479
    %3485 = vrot.lane.b32.xlu0 %v3146, 80
    %v3486 = vpop.permute.xlu0 %3485
    %v3488 = vsel %vm69, %v3486, 0
    %3490 = vmatprep.subr.bf16.mxu0 0
    %3491 = vmatpush1.bf16.msra.mxu0 %v66
    %3492 = vmatprep.subr.bf16.mxu0 0
    %3493 = vmatpush1.bf16.msra.mxu0 %v75
    %3494 = vmatprep.subr.bf16.mxu0 0
    %3495 = vmatpush1.bf16.msra.mxu0 0
    %3496 = vmatprep.subr.bf16.mxu0 0
    %3497 = vmatpush1.bf16.msra.mxu0 0
    %3498 = vmatprep.subr.bf16.mxu0 0
    %3499 = vmatpush1.bf16.msra.mxu0 0
    %3500 = vmatprep.subr.bf16.mxu0 0
    %3501 = vmatpush1.bf16.msra.mxu0 0
    %3502 = vmatprep.subr.bf16.mxu0 0
    %3503 = vmatpush1.bf16.msra.mxu0 0
    %3504 = vmatprep.subr.bf16.mxu0 0
    %3505 = vmatpush1.bf16.msra.mxu0 0
    %3506 = vmatprep.subr.bf16.mxu0 0
    %3507 = vmatpush1.bf16.msra.mxu0 0
    %3508 = vmatprep.subr.bf16.mxu0 0
    %3509 = vmatpush1.bf16.msra.mxu0 0
    %3510 = vmatprep.subr.bf16.mxu0 0
    %3511 = vmatpush1.bf16.msra.mxu0 0
    %3512 = vmatprep.subr.bf16.mxu0 0
    %3513 = vmatpush1.bf16.msra.mxu0 0
    %3514 = vmatprep.subr.bf16.mxu0 0
    %3515 = vmatpush1.bf16.msra.mxu0 0
    %3516 = vmatprep.subr.bf16.mxu0 0
    %3517 = vmatpush1.bf16.msra.mxu0 0
    %3518 = vmatprep.subr.bf16.mxu0 0
    %3519 = vmatpush1.bf16.msra.mxu0 0
    %3520 = vmatprep.subr.bf16.mxu0 0
    %3521 = vmatpush1.bf16.msra.mxu0 0
    %3522 = vmatprep.mubr.bf16.mxu0 0
    %3523 = vmatmul.mubr.bf16.gmra.mrb[0].mxu0 %v3488
    %v3524 = vpop.f32.mrb[0].mxu0
    %v3525 = vadd.f32 %v56, %v3524
    %v3526 = vpop.f32.mrb[0].mxu0
    %v3527 = vpop.f32.mrb[0].mxu0
    %v3528 = vpop.f32.mrb[0].mxu0
    %3529 = vdwg.mxu0
    %v3530 = vmax.f32 %v3525, 0.0
    %v3531 = vpack.c.bf16 %v3530, %v3530
    %3532 = vmatprep.subr.bf16.mxu0 0
    %3533 = vmatpush1.bf16.msra.mxu0 %v157
    %3534 = vmatprep.subr.bf16.mxu0 0
    %3535 = vmatpush1.bf16.msra.mxu0 %v158
    %3536 = vmatprep.subr.bf16.mxu0 0
    %3537 = vmatpush1.bf16.msra.mxu0 %v159
    %3538 = vmatprep.subr.bf16.mxu0 0
    %3539 = vmatpush1.bf16.msra.mxu0 %v160
    %3540 = vmatprep.subr.bf16.mxu0 0
    %3541 = vmatpush1.bf16.msra.mxu0 %v161
    %3542 = vmatprep.subr.bf16.mxu0 0
    %3543 = vmatpush1.bf16.msra.mxu0 %v162
    %3544 = vmatprep.subr.bf16.mxu0 0
    %3545 = vmatpush1.bf16.msra.mxu0 %v163
    %3546 = vmatprep.subr.bf16.mxu0 0
    %3547 = vmatpush1.bf16.msra.mxu0 %v164
    %3548 = vmatprep.subr.bf16.mxu0 0
    %3549 = vmatpush1.bf16.msra.mxu0 0
    %3550 = vmatprep.subr.bf16.mxu0 0
    %3551 = vmatpush1.bf16.msra.mxu0 0
    %3552 = vmatprep.subr.bf16.mxu0 0
    %3553 = vmatpush1.bf16.msra.mxu0 0
    %3554 = vmatprep.subr.bf16.mxu0 0
    %3555 = vmatpush1.bf16.msra.mxu0 0
    %3556 = vmatprep.subr.bf16.mxu0 0
    %3557 = vmatpush1.bf16.msra.mxu0 0
    %3558 = vmatprep.subr.bf16.mxu0 0
    %3559 = vmatpush1.bf16.msra.mxu0 0
    %3560 = vmatprep.subr.bf16.mxu0 0
    %3561 = vmatpush1.bf16.msra.mxu0 0
    %3562 = vmatprep.subr.bf16.mxu0 0
    %3563 = vmatpush1.bf16.msra.mxu0 0
    %3564 = vmatprep.mubr.bf16.mxu0 0
    %3565 = vmatmul.mubr.bf16.gmra.mrb[0].mxu0 %v3531
    %v3566 = vpop.f32.mrb[0].mxu0
    %v3567 = vadd.f32 %v123, %v3566
    %v3568 = vpop.f32.mrb[0].mxu0
    %v3569 = vpop.f32.mrb[0].mxu0
    %v3570 = vpop.f32.mrb[0].mxu0
    %3571 = vdwg.mxu0
    %v3572 = vtanh.pop %v3567
    %v3573 = vpack.c.bf16 %v3572, %v3572
    %s3574 = scalar_lea.vmem %s5, 640
    %v3575 = vld [vmem:[%s3574] sm:$0xf]
    %v3576 = vld [vmem:[%s3574 + $0x4] sm:$0xf]
    %v3577 = vld [vmem:[%s3574 + $0x8] sm:$0xf]
    %v3578 = vld [vmem:[%s3574 + $0xc] sm:$0xf]
    %v3579 = vld [vmem:[%s3574 + $0x10] sm:$0xf]
    %v3580 = vld [vmem:[%s3574 + $0x14] sm:$0xf]
    %v3581 = vld [vmem:[%s3574 + $0x18] sm:$0xf]
    %v3582 = vld [vmem:[%s3574 + $0x1c] sm:$0xf]
    %v3591 = vunpack.c.l.b16 %v3575
    %v3592 = vunpack.c.l.b16 %v3576
    %v3593 = vunpack.c.l.b16 %v3577
    %v3594 = vunpack.c.l.b16 %v3578
    %v3595 = vunpack.c.l.b16 %v3579
    %v3596 = vunpack.c.l.b16 %v3580
    %v3597 = vunpack.c.l.b16 %v3581
    %v3598 = vunpack.c.l.b16 %v3582
    %v3599 = vpack.c.b16 %v3592, %v3591
    %v3600 = vpack.c.b16 %v3594, %v3593
    %v3601 = vpack.c.b16 %v3596, %v3595
    %v3602 = vpack.c.b16 %v3598, %v3597
    %v3608 = vsel %vm346, %v3573, 0
    %3610 = vmatprep.subr.bf16.mxu0 0
    %3611 = vmatpush1.bf16.msra.mxu0 %v3599
    %3612 = vmatprep.subr.bf16.mxu0 0
    %3613 = vmatpush1.bf16.msra.mxu0 %v3600
    %3614 = vmatprep.subr.bf16.mxu0 0
    %3615 = vmatpush1.bf16.msra.mxu0 %v3601
    %3616 = vmatprep.subr.bf16.mxu0 0
    %3617 = vmatpush1.bf16.msra.mxu0 %v3602
    %3618 = vmatprep.subr.bf16.mxu0 0
    %3619 = vmatpush1.bf16.msra.mxu0 0
    %3620 = vmatprep.subr.bf16.mxu0 0
    %3621 = vmatpush1.bf16.msra.mxu0 0
    %3622 = vmatprep.subr.bf16.mxu0 0
    %3623 = vmatpush1.bf16.msra.mxu0 0
    %3624 = vmatprep.subr.bf16.mxu0 0
    %3625 = vmatpush1.bf16.msra.mxu0 0
    %3626 = vmatprep.subr.bf16.mxu0 0
    %3627 = vmatpush1.bf16.msra.mxu0 0
    %3628 = vmatprep.subr.bf16.mxu0 0
    %3629 = vmatpush1.bf16.msra.mxu0 0
    %3630 = vmatprep.subr.bf16.mxu0 0
    %3631 = vmatpush1.bf16.msra.mxu0 0
    %3632 = vmatprep.subr.bf16.mxu0 0
    %3633 = vmatpush1.bf16.msra.mxu0 0
    %3634 = vmatprep.subr.bf16.mxu0 0
    %3635 = vmatpush1.bf16.msra.mxu0 0
    %3636 = vmatprep.subr.bf16.mxu0 0
    %3637 = vmatpush1.bf16.msra.mxu0 0
    %3638 = vmatprep.subr.bf16.mxu0 0
    %3639 = vmatpush1.bf16.msra.mxu0 0
    %3640 = vmatprep.subr.bf16.mxu0 0
    %3641 = vmatpush1.bf16.msra.mxu0 0
    %3642 = vmatprep.mubr.bf16.mxu0 0
    %3643 = vmatmul.mubr.bf16.gmra.mrb[0].mxu0 %v3608
    %v3644 = vpop.f32.mrb[0].mxu0
    %v3645 = vadd.f32 0.0, %v3644
    %v3646 = vpop.f32.mrb[0].mxu0
    %v3647 = vpop.f32.mrb[0].mxu0
    %v3648 = vpop.f32.mrb[0].mxu0
    %3649 = vdwg.mxu0
    %v3650 = vadd.f32 %v3484, %v3645
    %3651 = vrot.lane.b32.xlu0 %v3146, 52
    %v3652 = vpop.permute.xlu0 %3651
    %v3654 = vsel %vm69, %v3652, 0
    %3656 = vmatprep.subr.bf16.mxu0 0
    %3657 = vmatpush1.bf16.msra.mxu0 %v66
    %3658 = vmatprep.subr.bf16.mxu0 0
    %3659 = vmatpush1.bf16.msra.mxu0 %v75
    %3660 = vmatprep.subr.bf16.mxu0 0
    %3661 = vmatpush1.bf16.msra.mxu0 0
    %3662 = vmatprep.subr.bf16.mxu0 0
    %3663 = vmatpush1.bf16.msra.mxu0 0
    %3664 = vmatprep.subr.bf16.mxu0 0
    %3665 = vmatpush1.bf16.msra.mxu0 0
    %3666 = vmatprep.subr.bf16.mxu0 0
    %3667 = vmatpush1.bf16.msra.mxu0 0
    %3668 = vmatprep.subr.bf16.mxu0 0
    %3669 = vmatpush1.bf16.msra.mxu0 0
    %3670 = vmatprep.subr.bf16.mxu0 0
    %3671 = vmatpush1.bf16.msra.mxu0 0
    %3672 = vmatprep.subr.bf16.mxu0 0
    %3673 = vmatpush1.bf16.msra.mxu0 0
    %3674 = vmatprep.subr.bf16.mxu0 0
    %3675 = vmatpush1.bf16.msra.mxu0 0
    %3676 = vmatprep.subr.bf16.mxu0 0
    %3677 = vmatpush1.bf16.msra.mxu0 0
    %3678 = vmatprep.subr.bf16.mxu0 0
    %3679 = vmatpush1.bf16.msra.mxu0 0
    %3680 = vmatprep.subr.bf16.mxu0 0
    %3681 = vmatpush1.bf16.msra.mxu0 0
    %3682 = vmatprep.subr.bf16.mxu0 0
    %3683 = vmatpush1.bf16.msra.mxu0 0
    %3684 = vmatprep.subr.bf16.mxu0 0
    %3685 = vmatpush1.bf16.msra.mxu0 0
    %3686 = vmatprep.subr.bf16.mxu0 0
    %3687 = vmatpush1.bf16.msra.mxu0 0
    %3688 = vmatprep.mubr.bf16.mxu0 0
    %3689 = vmatmul.mubr.bf16.gmra.mrb[0].mxu0 %v3654
    %v3690 = vpop.f32.mrb[0].mxu0
    %v3691 = vadd.f32 %v56, %v3690
    %v3692 = vpop.f32.mrb[0].mxu0
    %v3693 = vpop.f32.mrb[0].mxu0
    %v3694 = vpop.f32.mrb[0].mxu0
    %3695 = vdwg.mxu0
    %v3696 = vmax.f32 %v3691, 0.0
    %v3697 = vpack.c.bf16 %v3696, %v3696
    %3698 = vmatprep.subr.bf16.mxu0 0
    %3699 = vmatpush1.bf16.msra.mxu0 %v157
    %3700 = vmatprep.subr.bf16.mxu0 0
    %3701 = vmatpush1.bf16.msra.mxu0 %v158
    %3702 = vmatprep.subr.bf16.mxu0 0
    %3703 = vmatpush1.bf16.msra.mxu0 %v159
    %3704 = vmatprep.subr.bf16.mxu0 0
    %3705 = vmatpush1.bf16.msra.mxu0 %v160
    %3706 = vmatprep.subr.bf16.mxu0 0
    %3707 = vmatpush1.bf16.msra.mxu0 %v161
    %3708 = vmatprep.subr.bf16.mxu0 0
    %3709 = vmatpush1.bf16.msra.mxu0 %v162
    %3710 = vmatprep.subr.bf16.mxu0 0
    %3711 = vmatpush1.bf16.msra.mxu0 %v163
    %3712 = vmatprep.subr.bf16.mxu0 0
    %3713 = vmatpush1.bf16.msra.mxu0 %v164
    %3714 = vmatprep.subr.bf16.mxu0 0
    %3715 = vmatpush1.bf16.msra.mxu0 0
    %3716 = vmatprep.subr.bf16.mxu0 0
    %3717 = vmatpush1.bf16.msra.mxu0 0
    %3718 = vmatprep.subr.bf16.mxu0 0
    %3719 = vmatpush1.bf16.msra.mxu0 0
    %3720 = vmatprep.subr.bf16.mxu0 0
    %3721 = vmatpush1.bf16.msra.mxu0 0
    %3722 = vmatprep.subr.bf16.mxu0 0
    %3723 = vmatpush1.bf16.msra.mxu0 0
    %3724 = vmatprep.subr.bf16.mxu0 0
    %3725 = vmatpush1.bf16.msra.mxu0 0
    %3726 = vmatprep.subr.bf16.mxu0 0
    %3727 = vmatpush1.bf16.msra.mxu0 0
    %3728 = vmatprep.subr.bf16.mxu0 0
    %3729 = vmatpush1.bf16.msra.mxu0 0
    %3730 = vmatprep.mubr.bf16.mxu0 0
    %3731 = vmatmul.mubr.bf16.gmra.mrb[0].mxu0 %v3697
    %v3732 = vpop.f32.mrb[0].mxu0
    %v3733 = vadd.f32 %v123, %v3732
    %v3734 = vpop.f32.mrb[0].mxu0
    %v3735 = vpop.f32.mrb[0].mxu0
    %v3736 = vpop.f32.mrb[0].mxu0
    %3737 = vdwg.mxu0
    %v3738 = vtanh.pop %v3733
    %v3739 = vpack.c.bf16 %v3738, %v3738
    %s3740 = scalar_lea.vmem %s5, 672
    %v3741 = vld [vmem:[%s3740] sm:$0xf]
    %v3742 = vld [vmem:[%s3740 + $0x4] sm:$0xf]
    %v3743 = vld [vmem:[%s3740 + $0x8] sm:$0xf]
    %v3744 = vld [vmem:[%s3740 + $0xc] sm:$0xf]
    %v3745 = vld [vmem:[%s3740 + $0x10] sm:$0xf]
    %v3746 = vld [vmem:[%s3740 + $0x14] sm:$0xf]
    %v3747 = vld [vmem:[%s3740 + $0x18] sm:$0xf]
    %v3748 = vld [vmem:[%s3740 + $0x1c] sm:$0xf]
    %v3757 = vunpack.c.l.b16 %v3741
    %v3758 = vunpack.c.l.b16 %v3742
    %v3759 = vunpack.c.l.b16 %v3743
    %v3760 = vunpack.c.l.b16 %v3744
    %v3761 = vunpack.c.l.b16 %v3745
    %v3762 = vunpack.c.l.b16 %v3746
    %v3763 = vunpack.c.l.b16 %v3747
    %v3764 = vunpack.c.l.b16 %v3748
    %v3765 = vpack.c.b16 %v3758, %v3757
    %v3766 = vpack.c.b16 %v3760, %v3759
    %v3767 = vpack.c.b16 %v3762, %v3761
    %v3768 = vpack.c.b16 %v3764, %v3763
    %v3774 = vsel %vm346, %v3739, 0
    %3776 = vmatprep.subr.bf16.mxu0 0
    %3777 = vmatpush1.bf16.msra.mxu0 %v3765
    %3778 = vmatprep.subr.bf16.mxu0 0
    %3779 = vmatpush1.bf16.msra.mxu0 %v3766
    %3780 = vmatprep.subr.bf16.mxu0 0
    %3781 = vmatpush1.bf16.msra.mxu0 %v3767
    %3782 = vmatprep.subr.bf16.mxu0 0
    %3783 = vmatpush1.bf16.msra.mxu0 %v3768
    %3784 = vmatprep.subr.bf16.mxu0 0
    %3785 = vmatpush1.bf16.msra.mxu0 0
    %3786 = vmatprep.subr.bf16.mxu0 0
    %3787 = vmatpush1.bf16.msra.mxu0 0
    %3788 = vmatprep.subr.bf16.mxu0 0
    %3789 = vmatpush1.bf16.msra.mxu0 0
    %3790 = vmatprep.subr.bf16.mxu0 0
    %3791 = vmatpush1.bf16.msra.mxu0 0
    %3792 = vmatprep.subr.bf16.mxu0 0
    %3793 = vmatpush1.bf16.msra.mxu0 0
    %3794 = vmatprep.subr.bf16.mxu0 0
    %3795 = vmatpush1.bf16.msra.mxu0 0
    %3796 = vmatprep.subr.bf16.mxu0 0
    %3797 = vmatpush1.bf16.msra.mxu0 0
    %3798 = vmatprep.subr.bf16.mxu0 0
    %3799 = vmatpush1.bf16.msra.mxu0 0
    %3800 = vmatprep.subr.bf16.mxu0 0
    %3801 = vmatpush1.bf16.msra.mxu0 0
    %3802 = vmatprep.subr.bf16.mxu0 0
    %3803 = vmatpush1.bf16.msra.mxu0 0
    %3804 = vmatprep.subr.bf16.mxu0 0
    %3805 = vmatpush1.bf16.msra.mxu0 0
    %3806 = vmatprep.subr.bf16.mxu0 0
    %3807 = vmatpush1.bf16.msra.mxu0 0
    %3808 = vmatprep.mubr.bf16.mxu0 0
    %3809 = vmatmul.mubr.bf16.gmra.mrb[0].mxu0 %v3774
    %v3810 = vpop.f32.mrb[0].mxu0
    %v3811 = vadd.f32 0.0, %v3810
    %v3812 = vpop.f32.mrb[0].mxu0
    %v3813 = vpop.f32.mrb[0].mxu0
    %v3814 = vpop.f32.mrb[0].mxu0
    %3815 = vdwg.mxu0
    %v3816 = vadd.f32 %v3650, %v3811
    %v3817 = vld [vmem:[%s0 + $0x20] sm:$0xff]
    %v3818 = vld [vmem:[%s0 + $0x28] sm:$0xff]
    %v3819 = vpack.c.bf16 %v3817, %v3817
    %v3820 = vpack.c.bf16 %v3818, %v3818
    %3823 = vrot.lane.b32.xlu0 %v3819, 24
    %v3824 = vpop.permute.xlu0 %3823
    %3825 = vrot.lane.b32.xlu0 %v3820, 24
    %v3826 = vpop.permute.xlu0 %3825
    %vm3827 = vcmask 195584
    %v3828 = vsel %vm3827, %v3824, %v3826
    %v3830 = vsel %vm69, %v3828, 0
    %3832 = vmatprep.subr.bf16.mxu0 0
    %3833 = vmatpush1.bf16.msra.mxu0 %v66
    %3834 = vmatprep.subr.bf16.mxu0 0
    %3835 = vmatpush1.bf16.msra.mxu0 %v75
    %3836 = vmatprep.subr.bf16.mxu0 0
    %3837 = vmatpush1.bf16.msra.mxu0 0
    %3838 = vmatprep.subr.bf16.mxu0 0
    %3839 = vmatpush1.bf16.msra.mxu0 0
    %3840 = vmatprep.subr.bf16.mxu0 0
    %3841 = vmatpush1.bf16.msra.mxu0 0
    %3842 = vmatprep.subr.bf16.mxu0 0
    %3843 = vmatpush1.bf16.msra.mxu0 0
    %3844 = vmatprep.subr.bf16.mxu0 0
    %3845 = vmatpush1.bf16.msra.mxu0 0
    %3846 = vmatprep.subr.bf16.mxu0 0
    %3847 = vmatpush1.bf16.msra.mxu0 0
    %3848 = vmatprep.subr.bf16.mxu0 0
    %3849 = vmatpush1.bf16.msra.mxu0 0
    %3850 = vmatprep.subr.bf16.mxu0 0
    %3851 = vmatpush1.bf16.msra.mxu0 0
    %3852 = vmatprep.subr.bf16.mxu0 0
    %3853 = vmatpush1.bf16.msra.mxu0 0
    %3854 = vmatprep.subr.bf16.mxu0 0
    %3855 = vmatpush1.bf16.msra.mxu0 0
    %3856 = vmatprep.subr.bf16.mxu0 0
    %3857 = vmatpush1.bf16.msra.mxu0 0
    %3858 = vmatprep.subr.bf16.mxu0 0
    %3859 = vmatpush1.bf16.msra.mxu0 0
    %3860 = vmatprep.subr.bf16.mxu0 0
    %3861 = vmatpush1.bf16.msra.mxu0 0
    %3862 = vmatprep.subr.bf16.mxu0 0
    %3863 = vmatpush1.bf16.msra.mxu0 0
    %3864 = vmatprep.mubr.bf16.mxu0 0
    %3865 = vmatmul.mubr.bf16.gmra.mrb[0].mxu0 %v3830
    %v3866 = vpop.f32.mrb[0].mxu0
    %v3867 = vadd.f32 %v56, %v3866
    %v3868 = vpop.f32.mrb[0].mxu0
    %v3869 = vpop.f32.mrb[0].mxu0
    %v3870 = vpop.f32.mrb[0].mxu0
    %3871 = vdwg.mxu0
    %v3872 = vmax.f32 %v3867, 0.0
    %v3873 = vpack.c.bf16 %v3872, %v3872
    %3874 = vmatprep.subr.bf16.mxu0 0
    %3875 = vmatpush1.bf16.msra.mxu0 %v157
    %3876 = vmatprep.subr.bf16.mxu0 0
    %3877 = vmatpush1.bf16.msra.mxu0 %v158
    %3878 = vmatprep.subr.bf16.mxu0 0
    %3879 = vmatpush1.bf16.msra.mxu0 %v159
    %3880 = vmatprep.subr.bf16.mxu0 0
    %3881 = vmatpush1.bf16.msra.mxu0 %v160
    %3882 = vmatprep.subr.bf16.mxu0 0
    %3883 = vmatpush1.bf16.msra.mxu0 %v161
    %3884 = vmatprep.subr.bf16.mxu0 0
    %3885 = vmatpush1.bf16.msra.mxu0 %v162
    %3886 = vmatprep.subr.bf16.mxu0 0
    %3887 = vmatpush1.bf16.msra.mxu0 %v163
    %3888 = vmatprep.subr.bf16.mxu0 0
    %3889 = vmatpush1.bf16.msra.mxu0 %v164
    %3890 = vmatprep.subr.bf16.mxu0 0
    %3891 = vmatpush1.bf16.msra.mxu0 0
    %3892 = vmatprep.subr.bf16.mxu0 0
    %3893 = vmatpush1.bf16.msra.mxu0 0
    %3894 = vmatprep.subr.bf16.mxu0 0
    %3895 = vmatpush1.bf16.msra.mxu0 0
    %3896 = vmatprep.subr.bf16.mxu0 0
    %3897 = vmatpush1.bf16.msra.mxu0 0
    %3898 = vmatprep.subr.bf16.mxu0 0
    %3899 = vmatpush1.bf16.msra.mxu0 0
    %3900 = vmatprep.subr.bf16.mxu0 0
    %3901 = vmatpush1.bf16.msra.mxu0 0
    %3902 = vmatprep.subr.bf16.mxu0 0
    %3903 = vmatpush1.bf16.msra.mxu0 0
    %3904 = vmatprep.subr.bf16.mxu0 0
    %3905 = vmatpush1.bf16.msra.mxu0 0
    %3906 = vmatprep.mubr.bf16.mxu0 0
    %3907 = vmatmul.mubr.bf16.gmra.mrb[0].mxu0 %v3873
    %v3908 = vpop.f32.mrb[0].mxu0
    %v3909 = vadd.f32 %v123, %v3908
    %v3910 = vpop.f32.mrb[0].mxu0
    %v3911 = vpop.f32.mrb[0].mxu0
    %v3912 = vpop.f32.mrb[0].mxu0
    %3913 = vdwg.mxu0
    %v3914 = vtanh.pop %v3909
    %v3915 = vpack.c.bf16 %v3914, %v3914
    %s3916 = scalar_lea.vmem %s5, 704
    %v3917 = vld [vmem:[%s3916] sm:$0xf]
    %v3918 = vld [vmem:[%s3916 + $0x4] sm:$0xf]
    %v3919 = vld [vmem:[%s3916 + $0x8] sm:$0xf]
    %v3920 = vld [vmem:[%s3916 + $0xc] sm:$0xf]
    %v3921 = vld [vmem:[%s3916 + $0x10] sm:$0xf]
    %v3922 = vld [vmem:[%s3916 + $0x14] sm:$0xf]
    %v3923 = vld [vmem:[%s3916 + $0x18] sm:$0xf]
    %v3924 = vld [vmem:[%s3916 + $0x1c] sm:$0xf]
    %v3933 = vunpack.c.l.b16 %v3917
    %v3934 = vunpack.c.l.b16 %v3918
    %v3935 = vunpack.c.l.b16 %v3919
    %v3936 = vunpack.c.l.b16 %v3920
    %v3937 = vunpack.c.l.b16 %v3921
    %v3938 = vunpack.c.l.b16 %v3922
    %v3939 = vunpack.c.l.b16 %v3923
    %v3940 = vunpack.c.l.b16 %v3924
    %v3941 = vpack.c.b16 %v3934, %v3933
    %v3942 = vpack.c.b16 %v3936, %v3935
    %v3943 = vpack.c.b16 %v3938, %v3937
    %v3944 = vpack.c.b16 %v3940, %v3939
    %v3950 = vsel %vm346, %v3915, 0
    %3952 = vmatprep.subr.bf16.mxu0 0
    %3953 = vmatpush1.bf16.msra.mxu0 %v3941
    %3954 = vmatprep.subr.bf16.mxu0 0
    %3955 = vmatpush1.bf16.msra.mxu0 %v3942
    %3956 = vmatprep.subr.bf16.mxu0 0
    %3957 = vmatpush1.bf16.msra.mxu0 %v3943
    %3958 = vmatprep.subr.bf16.mxu0 0
    %3959 = vmatpush1.bf16.msra.mxu0 %v3944
    %3960 = vmatprep.subr.bf16.mxu0 0
    %3961 = vmatpush1.bf16.msra.mxu0 0
    %3962 = vmatprep.subr.bf16.mxu0 0
    %3963 = vmatpush1.bf16.msra.mxu0 0
    %3964 = vmatprep.subr.bf16.mxu0 0
    %3965 = vmatpush1.bf16.msra.mxu0 0
    %3966 = vmatprep.subr.bf16.mxu0 0
    %3967 = vmatpush1.bf16.msra.mxu0 0
    %3968 = vmatprep.subr.bf16.mxu0 0
    %3969 = vmatpush1.bf16.msra.mxu0 0
    %3970 = vmatprep.subr.bf16.mxu0 0
    %3971 = vmatpush1.bf16.msra.mxu0 0
    %3972 = vmatprep.subr.bf16.mxu0 0
    %3973 = vmatpush1.bf16.msra.mxu0 0
    %3974 = vmatprep.subr.bf16.mxu0 0
    %3975 = vmatpush1.bf16.msra.mxu0 0
    %3976 = vmatprep.subr.bf16.mxu0 0
    %3977 = vmatpush1.bf16.msra.mxu0 0
    %3978 = vmatprep.subr.bf16.mxu0 0
    %3979 = vmatpush1.bf16.msra.mxu0 0
    %3980 = vmatprep.subr.bf16.mxu0 0
    %3981 = vmatpush1.bf16.msra.mxu0 0
    %3982 = vmatprep.subr.bf16.mxu0 0
    %3983 = vmatpush1.bf16.msra.mxu0 0
    %3984 = vmatprep.mubr.bf16.mxu0 0
    %3985 = vmatmul.mubr.bf16.gmra.mrb[0].mxu0 %v3950
    %v3986 = vpop.f32.mrb[0].mxu0
    %v3987 = vadd.f32 0.0, %v3986
    %v3988 = vpop.f32.mrb[0].mxu0
    %v3989 = vpop.f32.mrb[0].mxu0
    %v3990 = vpop.f32.mrb[0].mxu0
    %3991 = vdwg.mxu0
    %v3992 = vadd.f32 %v3816, %v3987
    %3993 = vrot.lane.b32.xlu0 %v3820, 124
    %v3994 = vpop.permute.xlu0 %3993
    %v3996 = vsel %vm69, %v3994, 0
    %3998 = vmatprep.subr.bf16.mxu0 0
    %3999 = vmatpush1.bf16.msra.mxu0 %v66
    %4000 = vmatprep.subr.bf16.mxu0 0
    %4001 = vmatpush1.bf16.msra.mxu0 %v75
    %4002 = vmatprep.subr.bf16.mxu0 0
    %4003 = vmatpush1.bf16.msra.mxu0 0
    %4004 = vmatprep.subr.bf16.mxu0 0
    %4005 = vmatpush1.bf16.msra.mxu0 0
    %4006 = vmatprep.subr.bf16.mxu0 0
    %4007 = vmatpush1.bf16.msra.mxu0 0
    %4008 = vmatprep.subr.bf16.mxu0 0
    %4009 = vmatpush1.bf16.msra.mxu0 0
    %4010 = vmatprep.subr.bf16.mxu0 0
    %4011 = vmatpush1.bf16.msra.mxu0 0
    %4012 = vmatprep.subr.bf16.mxu0 0
    %4013 = vmatpush1.bf16.msra.mxu0 0
    %4014 = vmatprep.subr.bf16.mxu0 0
    %4015 = vmatpush1.bf16.msra.mxu0 0
    %4016 = vmatprep.subr.bf16.mxu0 0
    %4017 = vmatpush1.bf16.msra.mxu0 0
    %4018 = vmatprep.subr.bf16.mxu0 0
    %4019 = vmatpush1.bf16.msra.mxu0 0
    %4020 = vmatprep.subr.bf16.mxu0 0
    %4021 = vmatpush1.bf16.msra.mxu0 0
    %4022 = vmatprep.subr.bf16.mxu0 0
    %4023 = vmatpush1.bf16.msra.mxu0 0
    %4024 = vmatprep.subr.bf16.mxu0 0
    %4025 = vmatpush1.bf16.msra.mxu0 0
    %4026 = vmatprep.subr.bf16.mxu0 0
    %4027 = vmatpush1.bf16.msra.mxu0 0
    %4028 = vmatprep.subr.bf16.mxu0 0
    %4029 = vmatpush1.bf16.msra.mxu0 0
    %4030 = vmatprep.mubr.bf16.mxu0 0
    %4031 = vmatmul.mubr.bf16.gmra.mrb[0].mxu0 %v3996
    %v4032 = vpop.f32.mrb[0].mxu0
    %v4033 = vadd.f32 %v56, %v4032
    %v4034 = vpop.f32.mrb[0].mxu0
    %v4035 = vpop.f32.mrb[0].mxu0
    %v4036 = vpop.f32.mrb[0].mxu0
    %4037 = vdwg.mxu0
    %v4038 = vmax.f32 %v4033, 0.0
    %v4039 = vpack.c.bf16 %v4038, %v4038
    %4040 = vmatprep.subr.bf16.mxu0 0
    %4041 = vmatpush1.bf16.msra.mxu0 %v157
    %4042 = vmatprep.subr.bf16.mxu0 0
    %4043 = vmatpush1.bf16.msra.mxu0 %v158
    %4044 = vmatprep.subr.bf16.mxu0 0
    %4045 = vmatpush1.bf16.msra.mxu0 %v159
    %4046 = vmatprep.subr.bf16.mxu0 0
    %4047 = vmatpush1.bf16.msra.mxu0 %v160
    %4048 = vmatprep.subr.bf16.mxu0 0
    %4049 = vmatpush1.bf16.msra.mxu0 %v161
    %4050 = vmatprep.subr.bf16.mxu0 0
    %4051 = vmatpush1.bf16.msra.mxu0 %v162
    %4052 = vmatprep.subr.bf16.mxu0 0
    %4053 = vmatpush1.bf16.msra.mxu0 %v163
    %4054 = vmatprep.subr.bf16.mxu0 0
    %4055 = vmatpush1.bf16.msra.mxu0 %v164
    %4056 = vmatprep.subr.bf16.mxu0 0
    %4057 = vmatpush1.bf16.msra.mxu0 0
    %4058 = vmatprep.subr.bf16.mxu0 0
    %4059 = vmatpush1.bf16.msra.mxu0 0
    %4060 = vmatprep.subr.bf16.mxu0 0
    %4061 = vmatpush1.bf16.msra.mxu0 0
    %4062 = vmatprep.subr.bf16.mxu0 0
    %4063 = vmatpush1.bf16.msra.mxu0 0
    %4064 = vmatprep.subr.bf16.mxu0 0
    %4065 = vmatpush1.bf16.msra.mxu0 0
    %4066 = vmatprep.subr.bf16.mxu0 0
    %4067 = vmatpush1.bf16.msra.mxu0 0
    %4068 = vmatprep.subr.bf16.mxu0 0
    %4069 = vmatpush1.bf16.msra.mxu0 0
    %4070 = vmatprep.subr.bf16.mxu0 0
    %4071 = vmatpush1.bf16.msra.mxu0 0
    %4072 = vmatprep.mubr.bf16.mxu0 0
    %4073 = vmatmul.mubr.bf16.gmra.mrb[0].mxu0 %v4039
    %v4074 = vpop.f32.mrb[0].mxu0
    %v4075 = vadd.f32 %v123, %v4074
    %v4076 = vpop.f32.mrb[0].mxu0
    %v4077 = vpop.f32.mrb[0].mxu0
    %v4078 = vpop.f32.mrb[0].mxu0
    %4079 = vdwg.mxu0
    %v4080 = vtanh.pop %v4075
    %v4081 = vpack.c.bf16 %v4080, %v4080
    %s4082 = scalar_lea.vmem %s5, 736
    %v4083 = vld [vmem:[%s4082] sm:$0xf]
    %v4084 = vld [vmem:[%s4082 + $0x4] sm:$0xf]
    %v4085 = vld [vmem:[%s4082 + $0x8] sm:$0xf]
    %v4086 = vld [vmem:[%s4082 + $0xc] sm:$0xf]
    %v4087 = vld [vmem:[%s4082 + $0x10] sm:$0xf]
    %v4088 = vld [vmem:[%s4082 + $0x14] sm:$0xf]
    %v4089 = vld [vmem:[%s4082 + $0x18] sm:$0xf]
    %v4090 = vld [vmem:[%s4082 + $0x1c] sm:$0xf]
    %v4099 = vunpack.c.l.b16 %v4083
    %v4100 = vunpack.c.l.b16 %v4084
    %v4101 = vunpack.c.l.b16 %v4085
    %v4102 = vunpack.c.l.b16 %v4086
    %v4103 = vunpack.c.l.b16 %v4087
    %v4104 = vunpack.c.l.b16 %v4088
    %v4105 = vunpack.c.l.b16 %v4089
    %v4106 = vunpack.c.l.b16 %v4090
    %v4107 = vpack.c.b16 %v4100, %v4099
    %v4108 = vpack.c.b16 %v4102, %v4101
    %v4109 = vpack.c.b16 %v4104, %v4103
    %v4110 = vpack.c.b16 %v4106, %v4105
    %v4116 = vsel %vm346, %v4081, 0
    %4118 = vmatprep.subr.bf16.mxu0 0
    %4119 = vmatpush1.bf16.msra.mxu0 %v4107
    %4120 = vmatprep.subr.bf16.mxu0 0
    %4121 = vmatpush1.bf16.msra.mxu0 %v4108
    %4122 = vmatprep.subr.bf16.mxu0 0
    %4123 = vmatpush1.bf16.msra.mxu0 %v4109
    %4124 = vmatprep.subr.bf16.mxu0 0
    %4125 = vmatpush1.bf16.msra.mxu0 %v4110
    %4126 = vmatprep.subr.bf16.mxu0 0
    %4127 = vmatpush1.bf16.msra.mxu0 0
    %4128 = vmatprep.subr.bf16.mxu0 0
    %4129 = vmatpush1.bf16.msra.mxu0 0
    %4130 = vmatprep.subr.bf16.mxu0 0
    %4131 = vmatpush1.bf16.msra.mxu0 0
    %4132 = vmatprep.subr.bf16.mxu0 0
    %4133 = vmatpush1.bf16.msra.mxu0 0
    %4134 = vmatprep.subr.bf16.mxu0 0
    %4135 = vmatpush1.bf16.msra.mxu0 0
    %4136 = vmatprep.subr.bf16.mxu0 0
    %4137 = vmatpush1.bf16.msra.mxu0 0
    %4138 = vmatprep.subr.bf16.mxu0 0
    %4139 = vmatpush1.bf16.msra.mxu0 0
    %4140 = vmatprep.subr.bf16.mxu0 0
    %4141 = vmatpush1.bf16.msra.mxu0 0
    %4142 = vmatprep.subr.bf16.mxu0 0
    %4143 = vmatpush1.bf16.msra.mxu0 0
    %4144 = vmatprep.subr.bf16.mxu0 0
    %4145 = vmatpush1.bf16.msra.mxu0 0
    %4146 = vmatprep.subr.bf16.mxu0 0
    %4147 = vmatpush1.bf16.msra.mxu0 0
    %4148 = vmatprep.subr.bf16.mxu0 0
    %4149 = vmatpush1.bf16.msra.mxu0 0
    %4150 = vmatprep.mubr.bf16.mxu0 0
    %4151 = vmatmul.mubr.bf16.gmra.mrb[0].mxu0 %v4116
    %v4152 = vpop.f32.mrb[0].mxu0
    %v4153 = vadd.f32 0.0, %v4152
    %v4154 = vpop.f32.mrb[0].mxu0
    %v4155 = vpop.f32.mrb[0].mxu0
    %v4156 = vpop.f32.mrb[0].mxu0
    %4157 = vdwg.mxu0
    %v4158 = vadd.f32 %v3992, %v4153
    %4159 = vrot.lane.b32.xlu0 %v3820, 96
    %v4160 = vpop.permute.xlu0 %4159
    %v4162 = vsel %vm69, %v4160, 0
    %4164 = vmatprep.subr.bf16.mxu0 0
    %4165 = vmatpush1.bf16.msra.mxu0 %v66
    %4166 = vmatprep.subr.bf16.mxu0 0
    %4167 = vmatpush1.bf16.msra.mxu0 %v75
    %4168 = vmatprep.subr.bf16.mxu0 0
    %4169 = vmatpush1.bf16.msra.mxu0 0
    %4170 = vmatprep.subr.bf16.mxu0 0
    %4171 = vmatpush1.bf16.msra.mxu0 0
    %4172 = vmatprep.subr.bf16.mxu0 0
    %4173 = vmatpush1.bf16.msra.mxu0 0
    %4174 = vmatprep.subr.bf16.mxu0 0
    %4175 = vmatpush1.bf16.msra.mxu0 0
    %4176 = vmatprep.subr.bf16.mxu0 0
    %4177 = vmatpush1.bf16.msra.mxu0 0
    %4178 = vmatprep.subr.bf16.mxu0 0
    %4179 = vmatpush1.bf16.msra.mxu0 0
    %4180 = vmatprep.subr.bf16.mxu0 0
    %4181 = vmatpush1.bf16.msra.mxu0 0
    %4182 = vmatprep.subr.bf16.mxu0 0
    %4183 = vmatpush1.bf16.msra.mxu0 0
    %4184 = vmatprep.subr.bf16.mxu0 0
    %4185 = vmatpush1.bf16.msra.mxu0 0
    %4186 = vmatprep.subr.bf16.mxu0 0
    %4187 = vmatpush1.bf16.msra.mxu0 0
    %4188 = vmatprep.subr.bf16.mxu0 0
    %4189 = vmatpush1.bf16.msra.mxu0 0
    %4190 = vmatprep.subr.bf16.mxu0 0
    %4191 = vmatpush1.bf16.msra.mxu0 0
    %4192 = vmatprep.subr.bf16.mxu0 0
    %4193 = vmatpush1.bf16.msra.mxu0 0
    %4194 = vmatprep.subr.bf16.mxu0 0
    %4195 = vmatpush1.bf16.msra.mxu0 0
    %4196 = vmatprep.mubr.bf16.mxu0 0
    %4197 = vmatmul.mubr.bf16.gmra.mrb[0].mxu0 %v4162
    %v4198 = vpop.f32.mrb[0].mxu0
    %v4199 = vadd.f32 %v56, %v4198
    %v4200 = vpop.f32.mrb[0].mxu0
    %v4201 = vpop.f32.mrb[0].mxu0
    %v4202 = vpop.f32.mrb[0].mxu0
    %4203 = vdwg.mxu0
    %v4204 = vmax.f32 %v4199, 0.0
    %v4205 = vpack.c.bf16 %v4204, %v4204
    %4206 = vmatprep.subr.bf16.mxu0 0
    %4207 = vmatpush1.bf16.msra.mxu0 %v157
    %4208 = vmatprep.subr.bf16.mxu0 0
    %4209 = vmatpush1.bf16.msra.mxu0 %v158
    %4210 = vmatprep.subr.bf16.mxu0 0
    %4211 = vmatpush1.bf16.msra.mxu0 %v159
    %4212 = vmatprep.subr.bf16.mxu0 0
    %4213 = vmatpush1.bf16.msra.mxu0 %v160
    %4214 = vmatprep.subr.bf16.mxu0 0
    %4215 = vmatpush1.bf16.msra.mxu0 %v161
    %4216 = vmatprep.subr.bf16.mxu0 0
    %4217 = vmatpush1.bf16.msra.mxu0 %v162
    %4218 = vmatprep.subr.bf16.mxu0 0
    %4219 = vmatpush1.bf16.msra.mxu0 %v163
    %4220 = vmatprep.subr.bf16.mxu0 0
    %4221 = vmatpush1.bf16.msra.mxu0 %v164
    %4222 = vmatprep.subr.bf16.mxu0 0
    %4223 = vmatpush1.bf16.msra.mxu0 0
    %4224 = vmatprep.subr.bf16.mxu0 0
    %4225 = vmatpush1.bf16.msra.mxu0 0
    %4226 = vmatprep.subr.bf16.mxu0 0
    %4227 = vmatpush1.bf16.msra.mxu0 0
    %4228 = vmatprep.subr.bf16.mxu0 0
    %4229 = vmatpush1.bf16.msra.mxu0 0
    %4230 = vmatprep.subr.bf16.mxu0 0
    %4231 = vmatpush1.bf16.msra.mxu0 0
    %4232 = vmatprep.subr.bf16.mxu0 0
    %4233 = vmatpush1.bf16.msra.mxu0 0
    %4234 = vmatprep.subr.bf16.mxu0 0
    %4235 = vmatpush1.bf16.msra.mxu0 0
    %4236 = vmatprep.subr.bf16.mxu0 0
    %4237 = vmatpush1.bf16.msra.mxu0 0
    %4238 = vmatprep.mubr.bf16.mxu0 0
    %4239 = vmatmul.mubr.bf16.gmra.mrb[0].mxu0 %v4205
    %v4240 = vpop.f32.mrb[0].mxu0
    %v4241 = vadd.f32 %v123, %v4240
    %v4242 = vpop.f32.mrb[0].mxu0
    %v4243 = vpop.f32.mrb[0].mxu0
    %v4244 = vpop.f32.mrb[0].mxu0
    %4245 = vdwg.mxu0
    %v4246 = vtanh.pop %v4241
    %v4247 = vpack.c.bf16 %v4246, %v4246
    %s4248 = scalar_lea.vmem %s5, 768
    %v4249 = vld [vmem:[%s4248] sm:$0xf]
    %v4250 = vld [vmem:[%s4248 + $0x4] sm:$0xf]
    %v4251 = vld [vmem:[%s4248 + $0x8] sm:$0xf]
    %v4252 = vld [vmem:[%s4248 + $0xc] sm:$0xf]
    %v4253 = vld [vmem:[%s4248 + $0x10] sm:$0xf]
    %v4254 = vld [vmem:[%s4248 + $0x14] sm:$0xf]
    %v4255 = vld [vmem:[%s4248 + $0x18] sm:$0xf]
    %v4256 = vld [vmem:[%s4248 + $0x1c] sm:$0xf]
    %v4265 = vunpack.c.l.b16 %v4249
    %v4266 = vunpack.c.l.b16 %v4250
    %v4267 = vunpack.c.l.b16 %v4251
    %v4268 = vunpack.c.l.b16 %v4252
    %v4269 = vunpack.c.l.b16 %v4253
    %v4270 = vunpack.c.l.b16 %v4254
    %v4271 = vunpack.c.l.b16 %v4255
    %v4272 = vunpack.c.l.b16 %v4256
    %v4273 = vpack.c.b16 %v4266, %v4265
    %v4274 = vpack.c.b16 %v4268, %v4267
    %v4275 = vpack.c.b16 %v4270, %v4269
    %v4276 = vpack.c.b16 %v4272, %v4271
    %v4282 = vsel %vm346, %v4247, 0
    %4284 = vmatprep.subr.bf16.mxu0 0
    %4285 = vmatpush1.bf16.msra.mxu0 %v4273
    %4286 = vmatprep.subr.bf16.mxu0 0
    %4287 = vmatpush1.bf16.msra.mxu0 %v4274
    %4288 = vmatprep.subr.bf16.mxu0 0
    %4289 = vmatpush1.bf16.msra.mxu0 %v4275
    %4290 = vmatprep.subr.bf16.mxu0 0
    %4291 = vmatpush1.bf16.msra.mxu0 %v4276
    %4292 = vmatprep.subr.bf16.mxu0 0
    %4293 = vmatpush1.bf16.msra.mxu0 0
    %4294 = vmatprep.subr.bf16.mxu0 0
    %4295 = vmatpush1.bf16.msra.mxu0 0
    %4296 = vmatprep.subr.bf16.mxu0 0
    %4297 = vmatpush1.bf16.msra.mxu0 0
    %4298 = vmatprep.subr.bf16.mxu0 0
    %4299 = vmatpush1.bf16.msra.mxu0 0
    %4300 = vmatprep.subr.bf16.mxu0 0
    %4301 = vmatpush1.bf16.msra.mxu0 0
    %4302 = vmatprep.subr.bf16.mxu0 0
    %4303 = vmatpush1.bf16.msra.mxu0 0
    %4304 = vmatprep.subr.bf16.mxu0 0
    %4305 = vmatpush1.bf16.msra.mxu0 0
    %4306 = vmatprep.subr.bf16.mxu0 0
    %4307 = vmatpush1.bf16.msra.mxu0 0
    %4308 = vmatprep.subr.bf16.mxu0 0
    %4309 = vmatpush1.bf16.msra.mxu0 0
    %4310 = vmatprep.subr.bf16.mxu0 0
    %4311 = vmatpush1.bf16.msra.mxu0 0
    %4312 = vmatprep.subr.bf16.mxu0 0
    %4313 = vmatpush1.bf16.msra.mxu0 0
    %4314 = vmatprep.subr.bf16.mxu0 0
    %4315 = vmatpush1.bf16.msra.mxu0 0
    %4316 = vmatprep.mubr.bf16.mxu0 0
    %4317 = vmatmul.mubr.bf16.gmra.mrb[0].mxu0 %v4282
    %v4318 = vpop.f32.mrb[0].mxu0
    %v4319 = vadd.f32 0.0, %v4318
    %v4320 = vpop.f32.mrb[0].mxu0
    %v4321 = vpop.f32.mrb[0].mxu0
    %v4322 = vpop.f32.mrb[0].mxu0
    %4323 = vdwg.mxu0
    %v4324 = vadd.f32 %v4158, %v4319
    %4325 = vrot.lane.b32.xlu0 %v3820, 68
    %v4326 = vpop.permute.xlu0 %4325
    %v4328 = vsel %vm69, %v4326, 0
    %4330 = vmatprep.subr.bf16.mxu0 0
    %4331 = vmatpush1.bf16.msra.mxu0 %v66
    %4332 = vmatprep.subr.bf16.mxu0 0
    %4333 = vmatpush1.bf16.msra.mxu0 %v75
    %4334 = vmatprep.subr.bf16.mxu0 0
    %4335 = vmatpush1.bf16.msra.mxu0 0
    %4336 = vmatprep.subr.bf16.mxu0 0
    %4337 = vmatpush1.bf16.msra.mxu0 0
    %4338 = vmatprep.subr.bf16.mxu0 0
    %4339 = vmatpush1.bf16.msra.mxu0 0
    %4340 = vmatprep.subr.bf16.mxu0 0
    %4341 = vmatpush1.bf16.msra.mxu0 0
    %4342 = vmatprep.subr.bf16.mxu0 0
    %4343 = vmatpush1.bf16.msra.mxu0 0
    %4344 = vmatprep.subr.bf16.mxu0 0
    %4345 = vmatpush1.bf16.msra.mxu0 0
    %4346 = vmatprep.subr.bf16.mxu0 0
    %4347 = vmatpush1.bf16.msra.mxu0 0
    %4348 = vmatprep.subr.bf16.mxu0 0
    %4349 = vmatpush1.bf16.msra.mxu0 0
    %4350 = vmatprep.subr.bf16.mxu0 0
    %4351 = vmatpush1.bf16.msra.mxu0 0
    %4352 = vmatprep.subr.bf16.mxu0 0
    %4353 = vmatpush1.bf16.msra.mxu0 0
    %4354 = vmatprep.subr.bf16.mxu0 0
    %4355 = vmatpush1.bf16.msra.mxu0 0
    %4356 = vmatprep.subr.bf16.mxu0 0
    %4357 = vmatpush1.bf16.msra.mxu0 0
    %4358 = vmatprep.subr.bf16.mxu0 0
    %4359 = vmatpush1.bf16.msra.mxu0 0
    %4360 = vmatprep.subr.bf16.mxu0 0
    %4361 = vmatpush1.bf16.msra.mxu0 0
    %4362 = vmatprep.mubr.bf16.mxu0 0
    %4363 = vmatmul.mubr.bf16.gmra.mrb[0].mxu0 %v4328
    %v4364 = vpop.f32.mrb[0].mxu0
    %v4365 = vadd.f32 %v56, %v4364
    %v4366 = vpop.f32.mrb[0].mxu0
    %v4367 = vpop.f32.mrb[0].mxu0
    %v4368 = vpop.f32.mrb[0].mxu0
    %4369 = vdwg.mxu0
    %v4370 = vmax.f32 %v4365, 0.0
    %v4371 = vpack.c.bf16 %v4370, %v4370
    %4372 = vmatprep.subr.bf16.mxu0 0
    %4373 = vmatpush1.bf16.msra.mxu0 %v157
    %4374 = vmatprep.subr.bf16.mxu0 0
    %4375 = vmatpush1.bf16.msra.mxu0 %v158
    %4376 = vmatprep.subr.bf16.mxu0 0
    %4377 = vmatpush1.bf16.msra.mxu0 %v159
    %4378 = vmatprep.subr.bf16.mxu0 0
    %4379 = vmatpush1.bf16.msra.mxu0 %v160
    %4380 = vmatprep.subr.bf16.mxu0 0
    %4381 = vmatpush1.bf16.msra.mxu0 %v161
    %4382 = vmatprep.subr.bf16.mxu0 0
    %4383 = vmatpush1.bf16.msra.mxu0 %v162
    %4384 = vmatprep.subr.bf16.mxu0 0
    %4385 = vmatpush1.bf16.msra.mxu0 %v163
    %4386 = vmatprep.subr.bf16.mxu0 0
    %4387 = vmatpush1.bf16.msra.mxu0 %v164
    %4388 = vmatprep.subr.bf16.mxu0 0
    %4389 = vmatpush1.bf16.msra.mxu0 0
    %4390 = vmatprep.subr.bf16.mxu0 0
    %4391 = vmatpush1.bf16.msra.mxu0 0
    %4392 = vmatprep.subr.bf16.mxu0 0
    %4393 = vmatpush1.bf16.msra.mxu0 0
    %4394 = vmatprep.subr.bf16.mxu0 0
    %4395 = vmatpush1.bf16.msra.mxu0 0
    %4396 = vmatprep.subr.bf16.mxu0 0
    %4397 = vmatpush1.bf16.msra.mxu0 0
    %4398 = vmatprep.subr.bf16.mxu0 0
    %4399 = vmatpush1.bf16.msra.mxu0 0
    %4400 = vmatprep.subr.bf16.mxu0 0
    %4401 = vmatpush1.bf16.msra.mxu0 0
    %4402 = vmatprep.subr.bf16.mxu0 0
    %4403 = vmatpush1.bf16.msra.mxu0 0
    %4404 = vmatprep.mubr.bf16.mxu0 0
    %4405 = vmatmul.mubr.bf16.gmra.mrb[0].mxu0 %v4371
    %v4406 = vpop.f32.mrb[0].mxu0
    %v4407 = vadd.f32 %v123, %v4406
    %v4408 = vpop.f32.mrb[0].mxu0
    %v4409 = vpop.f32.mrb[0].mxu0
    %v4410 = vpop.f32.mrb[0].mxu0
    %4411 = vdwg.mxu0
    %v4412 = vtanh.pop %v4407
    %v4413 = vpack.c.bf16 %v4412, %v4412
    %s4414 = scalar_lea.vmem %s5, 800
    %v4415 = vld [vmem:[%s4414] sm:$0xf]
    %v4416 = vld [vmem:[%s4414 + $0x4] sm:$0xf]
    %v4417 = vld [vmem:[%s4414 + $0x8] sm:$0xf]
    %v4418 = vld [vmem:[%s4414 + $0xc] sm:$0xf]
    %v4419 = vld [vmem:[%s4414 + $0x10] sm:$0xf]
    %v4420 = vld [vmem:[%s4414 + $0x14] sm:$0xf]
    %v4421 = vld [vmem:[%s4414 + $0x18] sm:$0xf]
    %v4422 = vld [vmem:[%s4414 + $0x1c] sm:$0xf]
    %v4431 = vunpack.c.l.b16 %v4415
    %v4432 = vunpack.c.l.b16 %v4416
    %v4433 = vunpack.c.l.b16 %v4417
    %v4434 = vunpack.c.l.b16 %v4418
    %v4435 = vunpack.c.l.b16 %v4419
    %v4436 = vunpack.c.l.b16 %v4420
    %v4437 = vunpack.c.l.b16 %v4421
    %v4438 = vunpack.c.l.b16 %v4422
    %v4439 = vpack.c.b16 %v4432, %v4431
    %v4440 = vpack.c.b16 %v4434, %v4433
    %v4441 = vpack.c.b16 %v4436, %v4435
    %v4442 = vpack.c.b16 %v4438, %v4437
    %v4448 = vsel %vm346, %v4413, 0
    %4450 = vmatprep.subr.bf16.mxu0 0
    %4451 = vmatpush1.bf16.msra.mxu0 %v4439
    %4452 = vmatprep.subr.bf16.mxu0 0
    %4453 = vmatpush1.bf16.msra.mxu0 %v4440
    %4454 = vmatprep.subr.bf16.mxu0 0
    %4455 = vmatpush1.bf16.msra.mxu0 %v4441
    %4456 = vmatprep.subr.bf16.mxu0 0
    %4457 = vmatpush1.bf16.msra.mxu0 %v4442
    %4458 = vmatprep.subr.bf16.mxu0 0
    %4459 = vmatpush1.bf16.msra.mxu0 0
    %4460 = vmatprep.subr.bf16.mxu0 0
    %4461 = vmatpush1.bf16.msra.mxu0 0
    %4462 = vmatprep.subr.bf16.mxu0 0
    %4463 = vmatpush1.bf16.msra.mxu0 0
    %4464 = vmatprep.subr.bf16.mxu0 0
    %4465 = vmatpush1.bf16.msra.mxu0 0
    %4466 = vmatprep.subr.bf16.mxu0 0
    %4467 = vmatpush1.bf16.msra.mxu0 0
    %4468 = vmatprep.subr.bf16.mxu0 0
    %4469 = vmatpush1.bf16.msra.mxu0 0
    %4470 = vmatprep.subr.bf16.mxu0 0
    %4471 = vmatpush1.bf16.msra.mxu0 0
    %4472 = vmatprep.subr.bf16.mxu0 0
    %4473 = vmatpush1.bf16.msra.mxu0 0
    %4474 = vmatprep.subr.bf16.mxu0 0
    %4475 = vmatpush1.bf16.msra.mxu0 0
    %4476 = vmatprep.subr.bf16.mxu0 0
    %4477 = vmatpush1.bf16.msra.mxu0 0
    %4478 = vmatprep.subr.bf16.mxu0 0
    %4479 = vmatpush1.bf16.msra.mxu0 0
    %4480 = vmatprep.subr.bf16.mxu0 0
    %4481 = vmatpush1.bf16.msra.mxu0 0
    %4482 = vmatprep.mubr.bf16.mxu0 0
    %4483 = vmatmul.mubr.bf16.gmra.mrb[0].mxu0 %v4448
    %v4484 = vpop.f32.mrb[0].mxu0
    %v4485 = vadd.f32 0.0, %v4484
    %v4486 = vpop.f32.mrb[0].mxu0
    %v4487 = vpop.f32.mrb[0].mxu0
    %v4488 = vpop.f32.mrb[0].mxu0
    %4489 = vdwg.mxu0
    %v4490 = vadd.f32 %v4324, %v4485
    %4491 = vrot.lane.b32.xlu0 %v3820, 40
    %v4492 = vpop.permute.xlu0 %4491
    %v4494 = vsel %vm69, %v4492, 0
    %4496 = vmatprep.subr.bf16.mxu0 0
    %4497 = vmatpush1.bf16.msra.mxu0 %v66
    %4498 = vmatprep.subr.bf16.mxu0 0
    %4499 = vmatpush1.bf16.msra.mxu0 %v75
    %4500 = vmatprep.subr.bf16.mxu0 0
    %4501 = vmatpush1.bf16.msra.mxu0 0
    %4502 = vmatprep.subr.bf16.mxu0 0
    %4503 = vmatpush1.bf16.msra.mxu0 0
    %4504 = vmatprep.subr.bf16.mxu0 0
    %4505 = vmatpush1.bf16.msra.mxu0 0
    %4506 = vmatprep.subr.bf16.mxu0 0
    %4507 = vmatpush1.bf16.msra.mxu0 0
    %4508 = vmatprep.subr.bf16.mxu0 0
    %4509 = vmatpush1.bf16.msra.mxu0 0
    %4510 = vmatprep.subr.bf16.mxu0 0
    %4511 = vmatpush1.bf16.msra.mxu0 0
    %4512 = vmatprep.subr.bf16.mxu0 0
    %4513 = vmatpush1.bf16.msra.mxu0 0
    %4514 = vmatprep.subr.bf16.mxu0 0
    %4515 = vmatpush1.bf16.msra.mxu0 0
    %4516 = vmatprep.subr.bf16.mxu0 0
    %4517 = vmatpush1.bf16.msra.mxu0 0
    %4518 = vmatprep.subr.bf16.mxu0 0
    %4519 = vmatpush1.bf16.msra.mxu0 0
    %4520 = vmatprep.subr.bf16.mxu0 0
    %4521 = vmatpush1.bf16.msra.mxu0 0
    %4522 = vmatprep.subr.bf16.mxu0 0
    %4523 = vmatpush1.bf16.msra.mxu0 0
    %4524 = vmatprep.subr.bf16.mxu0 0
    %4525 = vmatpush1.bf16.msra.mxu0 0
    %4526 = vmatprep.subr.bf16.mxu0 0
    %4527 = vmatpush1.bf16.msra.mxu0 0
    %4528 = vmatprep.mubr.bf16.mxu0 0
    %4529 = vmatmul.mubr.bf16.gmra.mrb[0].mxu0 %v4494
    %v4530 = vpop.f32.mrb[0].mxu0
    %v4531 = vadd.f32 %v56, %v4530
    %v4532 = vpop.f32.mrb[0].mxu0
    %v4533 = vpop.f32.mrb[0].mxu0
    %v4534 = vpop.f32.mrb[0].mxu0
    %4535 = vdwg.mxu0
    %v4536 = vmax.f32 %v4531, 0.0
    %v4537 = vpack.c.bf16 %v4536, %v4536
    %4538 = vmatprep.subr.bf16.mxu0 0
    %4539 = vmatpush1.bf16.msra.mxu0 %v157
    %4540 = vmatprep.subr.bf16.mxu0 0
    %4541 = vmatpush1.bf16.msra.mxu0 %v158
    %4542 = vmatprep.subr.bf16.mxu0 0
    %4543 = vmatpush1.bf16.msra.mxu0 %v159
    %4544 = vmatprep.subr.bf16.mxu0 0
    %4545 = vmatpush1.bf16.msra.mxu0 %v160
    %4546 = vmatprep.subr.bf16.mxu0 0
    %4547 = vmatpush1.bf16.msra.mxu0 %v161
    %4548 = vmatprep.subr.bf16.mxu0 0
    %4549 = vmatpush1.bf16.msra.mxu0 %v162
    %4550 = vmatprep.subr.bf16.mxu0 0
    %4551 = vmatpush1.bf16.msra.mxu0 %v163
    %4552 = vmatprep.subr.bf16.mxu0 0
    %4553 = vmatpush1.bf16.msra.mxu0 %v164
    %4554 = vmatprep.subr.bf16.mxu0 0
    %4555 = vmatpush1.bf16.msra.mxu0 0
    %4556 = vmatprep.subr.bf16.mxu0 0
    %4557 = vmatpush1.bf16.msra.mxu0 0
    %4558 = vmatprep.subr.bf16.mxu0 0
    %4559 = vmatpush1.bf16.msra.mxu0 0
    %4560 = vmatprep.subr.bf16.mxu0 0
    %4561 = vmatpush1.bf16.msra.mxu0 0
    %4562 = vmatprep.subr.bf16.mxu0 0
    %4563 = vmatpush1.bf16.msra.mxu0 0
    %4564 = vmatprep.subr.bf16.mxu0 0
    %4565 = vmatpush1.bf16.msra.mxu0 0
    %4566 = vmatprep.subr.bf16.mxu0 0
    %4567 = vmatpush1.bf16.msra.mxu0 0
    %4568 = vmatprep.subr.bf16.mxu0 0
    %4569 = vmatpush1.bf16.msra.mxu0 0
    %4570 = vmatprep.mubr.bf16.mxu0 0
    %4571 = vmatmul.mubr.bf16.gmra.mrb[0].mxu0 %v4537
    %v4572 = vpop.f32.mrb[0].mxu0
    %v4573 = vadd.f32 %v123, %v4572
    %v4574 = vpop.f32.mrb[0].mxu0
    %v4575 = vpop.f32.mrb[0].mxu0
    %v4576 = vpop.f32.mrb[0].mxu0
    %4577 = vdwg.mxu0
    %v4578 = vtanh.pop %v4573
    %v4579 = vpack.c.bf16 %v4578, %v4578
    %s4580 = scalar_lea.vmem %s5, 832
    %v4581 = vld [vmem:[%s4580] sm:$0xf]
    %v4582 = vld [vmem:[%s4580 + $0x4] sm:$0xf]
    %v4583 = vld [vmem:[%s4580 + $0x8] sm:$0xf]
    %v4584 = vld [vmem:[%s4580 + $0xc] sm:$0xf]
    %v4585 = vld [vmem:[%s4580 + $0x10] sm:$0xf]
    %v4586 = vld [vmem:[%s4580 + $0x14] sm:$0xf]
    %v4587 = vld [vmem:[%s4580 + $0x18] sm:$0xf]
    %v4588 = vld [vmem:[%s4580 + $0x1c] sm:$0xf]
    %v4597 = vunpack.c.l.b16 %v4581
    %v4598 = vunpack.c.l.b16 %v4582
    %v4599 = vunpack.c.l.b16 %v4583
    %v4600 = vunpack.c.l.b16 %v4584
    %v4601 = vunpack.c.l.b16 %v4585
    %v4602 = vunpack.c.l.b16 %v4586
    %v4603 = vunpack.c.l.b16 %v4587
    %v4604 = vunpack.c.l.b16 %v4588
    %v4605 = vpack.c.b16 %v4598, %v4597
    %v4606 = vpack.c.b16 %v4600, %v4599
    %v4607 = vpack.c.b16 %v4602, %v4601
    %v4608 = vpack.c.b16 %v4604, %v4603
    %v4614 = vsel %vm346, %v4579, 0
    %4616 = vmatprep.subr.bf16.mxu0 0
    %4617 = vmatpush1.bf16.msra.mxu0 %v4605
    %4618 = vmatprep.subr.bf16.mxu0 0
    %4619 = vmatpush1.bf16.msra.mxu0 %v4606
    %4620 = vmatprep.subr.bf16.mxu0 0
    %4621 = vmatpush1.bf16.msra.mxu0 %v4607
    %4622 = vmatprep.subr.bf16.mxu0 0
    %4623 = vmatpush1.bf16.msra.mxu0 %v4608
    %4624 = vmatprep.subr.bf16.mxu0 0
    %4625 = vmatpush1.bf16.msra.mxu0 0
    %4626 = vmatprep.subr.bf16.mxu0 0
    %4627 = vmatpush1.bf16.msra.mxu0 0
    %4628 = vmatprep.subr.bf16.mxu0 0
    %4629 = vmatpush1.bf16.msra.mxu0 0
    %4630 = vmatprep.subr.bf16.mxu0 0
    %4631 = vmatpush1.bf16.msra.mxu0 0
    %4632 = vmatprep.subr.bf16.mxu0 0
    %4633 = vmatpush1.bf16.msra.mxu0 0
    %4634 = vmatprep.subr.bf16.mxu0 0
    %4635 = vmatpush1.bf16.msra.mxu0 0
    %4636 = vmatprep.subr.bf16.mxu0 0
    %4637 = vmatpush1.bf16.msra.mxu0 0
    %4638 = vmatprep.subr.bf16.mxu0 0
    %4639 = vmatpush1.bf16.msra.mxu0 0
    %4640 = vmatprep.subr.bf16.mxu0 0
    %4641 = vmatpush1.bf16.msra.mxu0 0
    %4642 = vmatprep.subr.bf16.mxu0 0
    %4643 = vmatpush1.bf16.msra.mxu0 0
    %4644 = vmatprep.subr.bf16.mxu0 0
    %4645 = vmatpush1.bf16.msra.mxu0 0
    %4646 = vmatprep.subr.bf16.mxu0 0
    %4647 = vmatpush1.bf16.msra.mxu0 0
    %4648 = vmatprep.mubr.bf16.mxu0 0
    %4649 = vmatmul.mubr.bf16.gmra.mrb[0].mxu0 %v4614
    %v4650 = vpop.f32.mrb[0].mxu0
    %v4651 = vadd.f32 0.0, %v4650
    %v4652 = vpop.f32.mrb[0].mxu0
    %v4653 = vpop.f32.mrb[0].mxu0
    %v4654 = vpop.f32.mrb[0].mxu0
    %4655 = vdwg.mxu0
    %v4656 = vadd.f32 %v4490, %v4651
    %v4657 = vld [vmem:[%s0 + $0x28] sm:$0xff]
    %v4658 = vld [vmem:[%s0 + $0x30] sm:$0xff]
    %v4659 = vpack.c.bf16 %v4657, %v4657
    %v4660 = vpack.c.bf16 %v4658, %v4658
    %4663 = vrot.lane.b32.xlu0 %v4659, 12
    %v4664 = vpop.permute.xlu0 %4663
    %4665 = vrot.lane.b32.xlu0 %v4660, 12
    %v4666 = vpop.permute.xlu0 %4665
    %vm4667 = vcmask 97280
    %v4668 = vsel %vm4667, %v4664, %v4666
    %v4670 = vsel %vm69, %v4668, 0
    %4672 = vmatprep.subr.bf16.mxu0 0
    %4673 = vmatpush1.bf16.msra.mxu0 %v66
    %4674 = vmatprep.subr.bf16.mxu0 0
    %4675 = vmatpush1.bf16.msra.mxu0 %v75
    %4676 = vmatprep.subr.bf16.mxu0 0
    %4677 = vmatpush1.bf16.msra.mxu0 0
    %4678 = vmatprep.subr.bf16.mxu0 0
    %4679 = vmatpush1.bf16.msra.mxu0 0
    %4680 = vmatprep.subr.bf16.mxu0 0
    %4681 = vmatpush1.bf16.msra.mxu0 0
    %4682 = vmatprep.subr.bf16.mxu0 0
    %4683 = vmatpush1.bf16.msra.mxu0 0
    %4684 = vmatprep.subr.bf16.mxu0 0
    %4685 = vmatpush1.bf16.msra.mxu0 0
    %4686 = vmatprep.subr.bf16.mxu0 0
    %4687 = vmatpush1.bf16.msra.mxu0 0
    %4688 = vmatprep.subr.bf16.mxu0 0
    %4689 = vmatpush1.bf16.msra.mxu0 0
    %4690 = vmatprep.subr.bf16.mxu0 0
    %4691 = vmatpush1.bf16.msra.mxu0 0
    %4692 = vmatprep.subr.bf16.mxu0 0
    %4693 = vmatpush1.bf16.msra.mxu0 0
    %4694 = vmatprep.subr.bf16.mxu0 0
    %4695 = vmatpush1.bf16.msra.mxu0 0
    %4696 = vmatprep.subr.bf16.mxu0 0
    %4697 = vmatpush1.bf16.msra.mxu0 0
    %4698 = vmatprep.subr.bf16.mxu0 0
    %4699 = vmatpush1.bf16.msra.mxu0 0
    %4700 = vmatprep.subr.bf16.mxu0 0
    %4701 = vmatpush1.bf16.msra.mxu0 0
    %4702 = vmatprep.subr.bf16.mxu0 0
    %4703 = vmatpush1.bf16.msra.mxu0 0
    %4704 = vmatprep.mubr.bf16.mxu0 0
    %4705 = vmatmul.mubr.bf16.gmra.mrb[0].mxu0 %v4670
    %v4706 = vpop.f32.mrb[0].mxu0
    %v4707 = vadd.f32 %v56, %v4706
    %v4708 = vpop.f32.mrb[0].mxu0
    %v4709 = vpop.f32.mrb[0].mxu0
    %v4710 = vpop.f32.mrb[0].mxu0
    %4711 = vdwg.mxu0
    %v4712 = vmax.f32 %v4707, 0.0
    %v4713 = vpack.c.bf16 %v4712, %v4712
    %4714 = vmatprep.subr.bf16.mxu0 0
    %4715 = vmatpush1.bf16.msra.mxu0 %v157
    %4716 = vmatprep.subr.bf16.mxu0 0
    %4717 = vmatpush1.bf16.msra.mxu0 %v158
    %4718 = vmatprep.subr.bf16.mxu0 0
    %4719 = vmatpush1.bf16.msra.mxu0 %v159
    %4720 = vmatprep.subr.bf16.mxu0 0
    %4721 = vmatpush1.bf16.msra.mxu0 %v160
    %4722 = vmatprep.subr.bf16.mxu0 0
    %4723 = vmatpush1.bf16.msra.mxu0 %v161
    %4724 = vmatprep.subr.bf16.mxu0 0
    %4725 = vmatpush1.bf16.msra.mxu0 %v162
    %4726 = vmatprep.subr.bf16.mxu0 0
    %4727 = vmatpush1.bf16.msra.mxu0 %v163
    %4728 = vmatprep.subr.bf16.mxu0 0
    %4729 = vmatpush1.bf16.msra.mxu0 %v164
    %4730 = vmatprep.subr.bf16.mxu0 0
    %4731 = vmatpush1.bf16.msra.mxu0 0
    %4732 = vmatprep.subr.bf16.mxu0 0
    %4733 = vmatpush1.bf16.msra.mxu0 0
    %4734 = vmatprep.subr.bf16.mxu0 0
    %4735 = vmatpush1.bf16.msra.mxu0 0
    %4736 = vmatprep.subr.bf16.mxu0 0
    %4737 = vmatpush1.bf16.msra.mxu0 0
    %4738 = vmatprep.subr.bf16.mxu0 0
    %4739 = vmatpush1.bf16.msra.mxu0 0
    %4740 = vmatprep.subr.bf16.mxu0 0
    %4741 = vmatpush1.bf16.msra.mxu0 0
    %4742 = vmatprep.subr.bf16.mxu0 0
    %4743 = vmatpush1.bf16.msra.mxu0 0
    %4744 = vmatprep.subr.bf16.mxu0 0
    %4745 = vmatpush1.bf16.msra.mxu0 0
    %4746 = vmatprep.mubr.bf16.mxu0 0
    %4747 = vmatmul.mubr.bf16.gmra.mrb[0].mxu0 %v4713
    %v4748 = vpop.f32.mrb[0].mxu0
    %v4749 = vadd.f32 %v123, %v4748
    %v4750 = vpop.f32.mrb[0].mxu0
    %v4751 = vpop.f32.mrb[0].mxu0
    %v4752 = vpop.f32.mrb[0].mxu0
    %4753 = vdwg.mxu0
    %v4754 = vtanh.pop %v4749
    %v4755 = vpack.c.bf16 %v4754, %v4754
    %s4756 = scalar_lea.vmem %s5, 864
    %v4757 = vld [vmem:[%s4756] sm:$0xf]
    %v4758 = vld [vmem:[%s4756 + $0x4] sm:$0xf]
    %v4759 = vld [vmem:[%s4756 + $0x8] sm:$0xf]
    %v4760 = vld [vmem:[%s4756 + $0xc] sm:$0xf]
    %v4761 = vld [vmem:[%s4756 + $0x10] sm:$0xf]
    %v4762 = vld [vmem:[%s4756 + $0x14] sm:$0xf]
    %v4763 = vld [vmem:[%s4756 + $0x18] sm:$0xf]
    %v4764 = vld [vmem:[%s4756 + $0x1c] sm:$0xf]
    %v4773 = vunpack.c.l.b16 %v4757
    %v4774 = vunpack.c.l.b16 %v4758
    %v4775 = vunpack.c.l.b16 %v4759
    %v4776 = vunpack.c.l.b16 %v4760
    %v4777 = vunpack.c.l.b16 %v4761
    %v4778 = vunpack.c.l.b16 %v4762
    %v4779 = vunpack.c.l.b16 %v4763
    %v4780 = vunpack.c.l.b16 %v4764
    %v4781 = vpack.c.b16 %v4774, %v4773
    %v4782 = vpack.c.b16 %v4776, %v4775
    %v4783 = vpack.c.b16 %v4778, %v4777
    %v4784 = vpack.c.b16 %v4780, %v4779
    %v4790 = vsel %vm346, %v4755, 0
    %4792 = vmatprep.subr.bf16.mxu0 0
    %4793 = vmatpush1.bf16.msra.mxu0 %v4781
    %4794 = vmatprep.subr.bf16.mxu0 0
    %4795 = vmatpush1.bf16.msra.mxu0 %v4782
    %4796 = vmatprep.subr.bf16.mxu0 0
    %4797 = vmatpush1.bf16.msra.mxu0 %v4783
    %4798 = vmatprep.subr.bf16.mxu0 0
    %4799 = vmatpush1.bf16.msra.mxu0 %v4784
    %4800 = vmatprep.subr.bf16.mxu0 0
    %4801 = vmatpush1.bf16.msra.mxu0 0
    %4802 = vmatprep.subr.bf16.mxu0 0
    %4803 = vmatpush1.bf16.msra.mxu0 0
    %4804 = vmatprep.subr.bf16.mxu0 0
    %4805 = vmatpush1.bf16.msra.mxu0 0
    %4806 = vmatprep.subr.bf16.mxu0 0
    %4807 = vmatpush1.bf16.msra.mxu0 0
    %4808 = vmatprep.subr.bf16.mxu0 0
    %4809 = vmatpush1.bf16.msra.mxu0 0
    %4810 = vmatprep.subr.bf16.mxu0 0
    %4811 = vmatpush1.bf16.msra.mxu0 0
    %4812 = vmatprep.subr.bf16.mxu0 0
    %4813 = vmatpush1.bf16.msra.mxu0 0
    %4814 = vmatprep.subr.bf16.mxu0 0
    %4815 = vmatpush1.bf16.msra.mxu0 0
    %4816 = vmatprep.subr.bf16.mxu0 0
    %4817 = vmatpush1.bf16.msra.mxu0 0
    %4818 = vmatprep.subr.bf16.mxu0 0
    %4819 = vmatpush1.bf16.msra.mxu0 0
    %4820 = vmatprep.subr.bf16.mxu0 0
    %4821 = vmatpush1.bf16.msra.mxu0 0
    %4822 = vmatprep.subr.bf16.mxu0 0
    %4823 = vmatpush1.bf16.msra.mxu0 0
    %4824 = vmatprep.mubr.bf16.mxu0 0
    %4825 = vmatmul.mubr.bf16.gmra.mrb[0].mxu0 %v4790
    %v4826 = vpop.f32.mrb[0].mxu0
    %v4827 = vadd.f32 0.0, %v4826
    %v4828 = vpop.f32.mrb[0].mxu0
    %v4829 = vpop.f32.mrb[0].mxu0
    %v4830 = vpop.f32.mrb[0].mxu0
    %4831 = vdwg.mxu0
    %v4832 = vadd.f32 %v4656, %v4827
    %v4833 = vld [vmem:[%s6] sm:$0x1]
    %v4835 = vlaneseq
    %v4836 = vshrl.u32 %v4835, 7
    %v4837 = vsub.s32 0, %v4836
    %v4838 = vrot.slane %v4833, %v4837
    %v4840 = vadd.f32 %v4832, %v4838
    %vm4841 = vcmask 80896
    %v4842 = vsel %vm4841, %v4840, -inf
    %4843 = vmax.xlane.f32.xlu0 %v4842
    %v4844 = vpop.xlane.xlu0 %4843
    %v4845 = vsub.f32 %v4840, %v4844
    %v4846 = vmul.f32 %v4845, 1.442695
    %v4847 = vpow.pop %v4846
    %v4848 = vsel %vm4841, %v4847, 0.0
    %4849 = vadd.xlane.f32.xlu0 %v4848
    %v4850 = vpop.xlane.xlu0 %4849
    %v4851 = vlog2.pop %v4850
    %v4852 = vmul.f32 %v4851, 0.6931472
    %v4853 = vsub.f32 %v4845, %v4852
    %4854 = vst.msk [vmem:[#allocation2] sm:$0xff] %vm4841, %v4853
    // Predicated region
    $region30: #{tpu_custom_call.1} parent=1 // pred_check
      _
    $region31: #{tpu_custom_call.1} parent=1 // pred_check_branch
      %4856 = sbr.rel (0) target = $region33
    $region32: #{tpu_custom_call.1} parent=1 // pred_region
      %s4858 = ssub.s32 128, 128
      %4859 = vsyncadd [#allocation3], %s4858
      %s4861 = sshll.u32 [#allocation2], 4
      %s4862 = int_to_ptr.vmem [resolvable:$true] %s4861
      %4864 = dma.vmem_to_hbm [thread:$0]  %s4862, 128, %s7, [#allocation3]
    $region33: #{tpu_custom_call.1} parent=1 // pred_fallthru
      _
    // Predicated region
    $region34: #{tpu_custom_call.1} parent=1 // pred_check
      _
    $region35: #{tpu_custom_call.1} parent=1 // pred_check_branch
      %4866 = sbr.rel (0) target = $region37
    $region36: #{tpu_custom_call.1} parent=1 // pred_region
      %4867 = dma.done [#allocation3], 128
    $region37: #{tpu_custom_call.1} parent=1 // pred_fallthru
      _
    %4868 = vsyncpa [#allocation3], 1

</llo_original>
